<compile_context>
chip_gen: v7x
topology: tpu7x:2x2x1
jax: 0.10.0
libtpu: 0.0.40
codegen_flags: <defaults>
</compile_context>

<pallas_src>
import math
import functools

import jax
import jax.numpy as jnp
import numpy as np
from jax import lax
from jax.experimental import pallas as pl
from jax.experimental.pallas import tpu as pltpu

# ---------------------------------------------------------------------------
# model hyper-parameters (small, TPU-tile-friendly)
# ---------------------------------------------------------------------------
DIM = 256          # backbone.dim
NUM_HEADS = 2      # backbone.num_heads -> head_dim = 128 (lane aligned)
HEAD_DIM = DIM // NUM_HEADS
EPS = 1e-6
CTX_DIM = 32


def _ln(x, w, b, eps=EPS):
    """LayerNorm over the last axis (works both inside kernels and in JAX)."""
    mu = jnp.mean(x, axis=-1, keepdims=True)
    xc = x - mu
    var = jnp.mean(xc * xc, axis=-1, keepdims=True)
    return xc * lax.rsqrt(var + eps) * w + b


# ---------------------------------------------------------------------------
# Fused Pallas kernel: all three WanCrossAttentionDiscriminatorBlock heads.
# grid = (3, B); each step handles one (block, batch) pair.
# ---------------------------------------------------------------------------
def fused_cross_attn_kernel(x_ref, q_ref, nw_ref, nb_ref,
                            wk_ref, bk_ref, wv_ref, bv_ref,
                            wo_ref, bo_ref, knw_ref, knb_ref,
                            tok_ref, *, num_heads):
    # x_ref: (L, C) features of one (block, batch) pair (leading dims squeezed)
    x = x_ref[...].astype(jnp.float32)
    x_norm = _ln(x, nw_ref[...], nb_ref[...])              # LayerNorm in f32
    xb = x_norm.astype(jnp.bfloat16)                       # bf16 MXU operand

    # torch Linear y = x @ W.T + b; W is pre-transposed outside -> (in, out)
    k = jnp.dot(xb, wk_ref[...], preferred_element_type=jnp.float32) + bk_ref[...]
    v = jnp.dot(xb, wv_ref[...], preferred_element_type=jnp.float32) + bv_ref[...]
    k = _ln(k, knw_ref[...], knb_ref[...])                 # k_norm in f32

    # q = LN(q_proj(query_token)) precomputed outside the kernel: (1, C) f32
    q = q_ref[...]

    head_dim = q.shape[-1] // num_heads
    scale = 1.0 / math.sqrt(head_dim)

    wo = wo_ref[...]                                       # (C, C) bf16, pre-transposed
    out = bo_ref[...].astype(jnp.float32)                  # (1, C): start from o_proj bias

    for h in range(num_heads):                             # static unrolled head loop
        lo = h * head_dim
        qh = q[:, lo:lo + head_dim].astype(jnp.bfloat16)   # (1, D)
        kh = k[:, lo:lo + head_dim].astype(jnp.bfloat16)   # (L, D)
        vh = v[:, lo:lo + head_dim].astype(jnp.bfloat16)   # (L, D)
        # scores: contract over D with K untransposed ("NT" matmul, no in-kernel .T)
        s = lax.dot_general(qh, kh, (((1,), (1,)), ((), ())),
                            preferred_element_type=jnp.float32) * scale   # (1, L)
        s = s - jnp.max(s, axis=-1, keepdims=True)
        p = jnp.exp(s)
        p = p * pl.reciprocal(jnp.sum(p, axis=-1, keepdims=True), approx=True)
        oh = jnp.dot(p.astype(jnp.bfloat16), vh,
                     preferred_element_type=jnp.float32)                  # (1, D)
        # fold this head's output straight into the O projection (no concat)
        out = out + jnp.dot(oh.astype(jnp.bfloat16), wo[lo:lo + head_dim, :],
                            preferred_element_type=jnp.float32)           # (1, C)

    tok_ref[...] = out.astype(tok_ref.dtype)


def fused_cross_attn(feats, head_params, num_heads=NUM_HEADS):
    """feats: [3, B, L, C] -> attention tokens [3, B, 1, C] (one pallas_call)."""
    nblk, B, L, C = feats.shape

    def blk_spec(shape):
        rest = tuple(int(s) for s in shape[1:])
        return pl.BlockSpec((pl.Squeezed(),) + rest,
                            lambda k, b, _n=len(rest): (k,) + (0,) * _n)

    operands = (head_params["q"], head_params["nw"], head_params["nb"],
                head_params["wk_t"], head_params["bk"],
                head_params["wv_t"], head_params["bv"],
                head_params["wo_t"], head_params["bo"],
                head_params["knw"], head_params["knb"])

    kernel = functools.partial(fused_cross_attn_kernel, num_heads=num_heads)
    return pl.pallas_call(
        kernel,
        out_shape=jax.ShapeDtypeStruct((nblk, B, 1, C), jnp.float32),
        grid=(nblk, B),
        in_specs=[pl.BlockSpec((pl.Squeezed(), pl.Squeezed(), L, C),
                               lambda k, b: (k, b, 0, 0))]
                 + [blk_spec(op.shape) for op in operands],
        out_specs=pl.BlockSpec((pl.Squeezed(), pl.Squeezed(), 1, C),
                               lambda k, b: (k, b, 0, 0)),
        compiler_params=pltpu.CompilerParams(
            dimension_semantics=("parallel", "parallel")),
    )(feats, *operands)


# ---------------------------------------------------------------------------
# One-time parameter prep: hoist query path, pre-transpose + bf16-cast weights
# ---------------------------------------------------------------------------
def prepare_head_params(block_params_list):
    names = ("q", "nw", "nb", "wk_t", "bk", "wv_t", "bv", "wo_t", "bo",
             "knw", "knb")
    stacked = {n: [] for n in names}
    for p in block_params_list:
        (qtok, nw, nb, wq, bq, wk, bk, wv, bv, wo, bo, qnw, qnb, knw, knb) = p
        # batch-invariant query path, computed once (not per grid step)
        q_pre = _ln(qtok @ wq.T + bq, qnw, qnb)            # (1, C) f32
        stacked["q"].append(q_pre)
        stacked["nw"].append(nw); stacked["nb"].append(nb)
        stacked["wk_t"].append(wk.T.astype(jnp.bfloat16)); stacked["bk"].append(bk)
        stacked["wv_t"].append(wv.T.astype(jnp.bfloat16)); stacked["bv"].append(bv)
        stacked["wo_t"].append(wo.T.astype(jnp.bfloat16)); stacked["bo"].append(bo)
        stacked["knw"].append(knw); stacked["knb"].append(knb)
    return {n: jnp.stack(v, axis=0) for n, v in stacked.items()}


# ---------------------------------------------------------------------------
# Synthetic backbone (plain-JAX glue; stands in for the hooked Wan blocks)
# ---------------------------------------------------------------------------
def synthetic_backbone_features(x, t, context, seq_len, bp):
    # x: [B, Cin, T, H, W]  ->  tokens [B, L, DIM]  with patch (1, 2, 2)
    B, Cin, T, H, W = x.shape
    ph = pw = 2
    tok = x.reshape(B, Cin, T, H // ph, ph, W // pw, pw)
    tok = jnp.transpose(tok, (0, 2, 3, 5, 1, 4, 6)).reshape(
        B, T * (H // ph) * (W // pw), Cin * ph * pw)
    assert tok.shape[1] == seq_len, "synthetic backbone expects L == seq_len"

    h = tok @ bp["patch_w"] + bp["patch_b"]                    # [B, L, DIM]
    h = h * (1.0 + jnp.sin(t)[:, None, None])                  # timestep modulation
    ctx = jnp.mean(context, axis=1) @ bp["ctx_w"]              # [B, DIM]
    h = h + ctx[:, None, :]

    feats = []
    for name in ("l16", "l26", "l36"):
        h = jnp.tanh(h @ bp[name + "_w"] + bp[name + "_b"])
        feats.append(h)
    return feats  # outputs of "blocks 16 / 26 / 36"


# ---------------------------------------------------------------------------
# Full discriminator forward (mirrors WanAPTDiscriminator.forward)
# ---------------------------------------------------------------------------
@functools.partial(jax.jit, static_argnums=(3,))
def _forward_impl(x, t, context, seq_len, params):
    s = 1.0 if x.shape[2] == 1 else 12.0
    t_shifted = s * t / (1.0 + (s - 1.0) * t)

    f16, f26, f36 = synthetic_backbone_features(x, t_shifted, context, seq_len,
                                                params["backbone"])
    feats = jnp.stack([f16, f26, f36], axis=0)                 # [3, B, L, C]

    tokens = fused_cross_attn(feats, params["head"])           # [3, B, 1, C]

    concat = jnp.concatenate(
        [tokens[0, :, 0], tokens[1, :, 0], tokens[2, :, 0]], axis=-1)  # [B, 3C]
    lnw, lnb, fw, fb = params["final"]
    # N=1 projection stays in plain jnp (fused by XLA; not worth an MXU kernel)
    logit = _ln(concat, lnw, lnb) @ fw.T + fb                  # [B, 1]
    return logit, tokens


def wan_apt_discriminator_forward(x, t, context, seq_len, params,
                                  return_features=False):
    logit, tokens = _forward_impl(x, t, context, seq_len, params)
    if return_features:
        return logit, [tokens[0], tokens[1], tokens[2]]
    return logit


# ---------------------------------------------------------------------------
# Pure-JAX reference (mirrors the kernel's bf16 MXU-operand casts so the check
# is apples-to-apples; LayerNorm / softmax in f32 exactly like the kernel)
# ---------------------------------------------------------------------------
def cross_attn_ref(x, p, num_heads=NUM_HEADS):
    (qtok, nw, nb, wq, bq, wk, bk, wv, bv, wo, bo, qnw, qnb, knw, knb) = p
    B, L, C = x.shape
    D = C // num_heads
    xn = _ln(x, nw, nb)
    q = jnp.broadcast_to(qtok[None], (B, 1, C)) @ wq.T + bq
    q = _ln(q, qnw, qnb)
    xb = xn.astype(jnp.bfloat16)
    k = jnp.einsum("blc,cd->bld", xb, wk.T.astype(jnp.bfloat16),
                   preferred_element_type=jnp.float32) + bk
    v = jnp.einsum("blc,cd->bld", xb, wv.T.astype(jnp.bfloat16),
                   preferred_element_type=jnp.float32) + bv
    k = _ln(k, knw, knb)
    qh = q.astype(jnp.bfloat16).reshape(B, 1, num_heads, D).transpose(0, 2, 1, 3)
    kh = k.astype(jnp.bfloat16).reshape(B, L, num_heads, D).transpose(0, 2, 1, 3)
    vh = v.astype(jnp.bfloat16).reshape(B, L, num_heads, D).transpose(0, 2, 1, 3)
    s = jnp.einsum("bhqd,bhkd->bhqk", qh, kh,
                   preferred_element_type=jnp.float32) / math.sqrt(D)
    attn = jax.nn.softmax(s, axis=-1)
    out = jnp.einsum("bhqk,bhkd->bhqd", attn.astype(jnp.bfloat16), vh,
                     preferred_element_type=jnp.float32)
    out = out.transpose(0, 2, 1, 3).reshape(B, 1, C)
    return jnp.einsum("bqc,cd->bqd", out.astype(jnp.bfloat16),
                      wo.T.astype(jnp.bfloat16),
                      preferred_element_type=jnp.float32) + bo


def reference_forward(x, t, context, seq_len, params):
    s = 1.0 if x.shape[2] == 1 else 12.0
    t_shifted = s * t / (1.0 + (s - 1.0) * t)
    f16, f26, f36 = synthetic_backbone_features(x, t_shifted, context, seq_len,
                                                params["backbone"])
    feat_16 = cross_attn_ref(f16, params["ca16"])
    feat_26 = cross_attn_ref(f26, params["ca26"])
    feat_36 = cross_attn_ref(f36, params["ca36"])
    concat = jnp.concatenate([feat_16[:, 0], feat_26[:, 0], feat_36[:, 0]], axis=-1)
    lnw, lnb, w, b = params["final"]
    return _ln(concat, lnw, lnb) @ w.T + b


# ---------------------------------------------------------------------------
# Deterministic parameter init (synthetic; matches the module's shapes)
# ---------------------------------------------------------------------------
def _linear_init(key, out_d, in_d):
    kw, kb = jax.random.split(key)
    w = jax.random.normal(kw, (out_d, in_d), jnp.float32) * 0.02
    b = jax.random.normal(kb, (1, out_d), jnp.float32) * 0.02
    return w, b


def _affine_init(key, d):
    kw, kb = jax.random.split(key)
    w = 1.0 + 0.1 * jax.random.normal(kw, (1, d), jnp.float32)
    b = 0.05 * jax.random.normal(kb, (1, d), jnp.float32)
    return w, b


def init_cross_attn_params(key, dim):
    ks = jax.random.split(key, 8)
    qtok = jax.random.normal(ks[0], (1, dim), jnp.float32) / math.sqrt(dim)
    nw, nb = _affine_init(ks[1], dim)
    wq, bq = _linear_init(ks[2], dim, dim)
    wk, bk = _linear_init(ks[3], dim, dim)
    wv, bv = _linear_init(ks[4], dim, dim)
    wo, bo = _linear_init(ks[5], dim, dim)
    qnw, qnb = _affine_init(ks[6], dim)
    knw, knb = _affine_init(ks[7], dim)
    return (qtok, nw, nb, wq, bq, wk, bk, wv, bv, wo, bo, qnw, qnb, knw, knb)


def init_params(key, dim, cin=4, ctx_dim=CTX_DIM):
    ks = jax.random.split(key, 12)
    backbone = {
        "patch_w": 0.1 * jax.random.normal(ks[0], (cin * 4, dim), jnp.float32),
        "patch_b": 0.01 * jax.random.normal(ks[1], (dim,), jnp.float32),
        "ctx_w": 0.1 * jax.random.normal(ks[2], (ctx_dim, dim), jnp.float32),
        "l16_w": jax.random.normal(ks[3], (dim, dim), jnp.float32) / math.sqrt(dim),
        "l16_b": 0.01 * jax.random.normal(ks[4], (dim,), jnp.float32),
        "l26_w": jax.random.normal(ks[5], (dim, dim), jnp.float32) / math.sqrt(dim),
        "l26_b": 0.01 * jax.random.normal(ks[6], (dim,), jnp.float32),
        "l36_w": jax.random.normal(ks[7], (dim, dim), jnp.float32) / math.sqrt(dim),
        "l36_b": 0.01 * jax.random.normal(ks[8], (dim,), jnp.float32),
    }
    lnw, lnb = _affine_init(ks[9], 3 * dim)
    fw, fb = _linear_init(ks[10], 1, 3 * dim)
    params = {
        "backbone": backbone,
        "ca16": init_cross_attn_params(jax.random.fold_in(ks[11], 16), dim),
        "ca26": init_cross_attn_params(jax.random.fold_in(ks[11], 26), dim),
        "ca36": init_cross_attn_params(jax.random.fold_in(ks[11], 36), dim),
        "final": (lnw, lnb, fw, fb),
    }
    # one-time kernel-side prep (hoisted query path, transposed bf16 weights)
    params["head"] = prepare_head_params(
        [params["ca16"], params["ca26"], params["ca36"]])
    return params


# ---------------------------------------------------------------------------
if __name__ == "__main__":
    key = jax.random.PRNGKey(0)
    k_p, k_x, k_c = jax.random.split(key, 3)

    B, Cin, T, H, W = 2, 4, 4, 16, 16
    seq_len = T * (H // 2) * (W // 2)                 # 256 tokens

    x = jax.random.normal(k_x, (B, Cin, T, H, W), jnp.float32)
    t = jnp.array([0.3, 0.7], jnp.float32)
    context = jax.random.normal(k_c, (B, 8, CTX_DIM), jnp.float32)

    params = init_params(k_p, DIM, cin=Cin)

    logit = wan_apt_discriminator_forward(x, t, context, seq_len, params)
    logit = jax.block_until_ready(logit)
    assert logit.shape == (B, 1)

    ref = reference_forward(x, t, context, seq_len, params)
    np.testing.assert_allclose(np.asarray(logit), np.asarray(ref),
                               rtol=1e-2, atol=1e-2)

    print("KERNEL_OK")
</pallas_src>

<mosaic_0001>
module attributes {stable_mosaic.version = 11 : i64} {
  func.func @fused_cross_attn_kernel(%arg0: i32, %arg1: i32, %arg2: memref<1x1x256x256xf32, #tpu.memory_space<vmem>>, %arg3: memref<1x1x256xf32, #tpu.memory_space<vmem>>, %arg4: memref<1x1x256xf32, #tpu.memory_space<vmem>>, %arg5: memref<1x1x256xf32, #tpu.memory_space<vmem>>, %arg6: memref<1x256x256xbf16, #tpu.memory_space<vmem>>, %arg7: memref<1x1x256xf32, #tpu.memory_space<vmem>>, %arg8: memref<1x256x256xbf16, #tpu.memory_space<vmem>>, %arg9: memref<1x1x256xf32, #tpu.memory_space<vmem>>, %arg10: memref<1x256x256xbf16, #tpu.memory_space<vmem>>, %arg11: memref<1x1x256xf32, #tpu.memory_space<vmem>>, %arg12: memref<1x1x256xf32, #tpu.memory_space<vmem>>, %arg13: memref<1x1x256xf32, #tpu.memory_space<vmem>>, %arg14: memref<1x1x1x256xf32, #tpu.memory_space<vmem>>) attributes {dimension_semantics = [#tpu.dimension_semantics<parallel>, #tpu.dimension_semantics<parallel>], iteration_bounds = array<i64: 3, 2>, scalar_prefetch = 0 : i64, scratch_operands = 0 : i64, tpu.core_type = #tpu.core_type<tc>, window_params = [{transform_indices = @transform_0, window_bounds = array<i64: 1, 1, 256, 256>}, {transform_indices = @transform_1, window_bounds = array<i64: 1, 1, 256>}, {transform_indices = @transform_2, window_bounds = array<i64: 1, 1, 256>}, {transform_indices = @transform_3, window_bounds = array<i64: 1, 1, 256>}, {transform_indices = @transform_4, window_bounds = array<i64: 1, 256, 256>}, {transform_indices = @transform_5, window_bounds = array<i64: 1, 1, 256>}, {transform_indices = @transform_6, window_bounds = array<i64: 1, 256, 256>}, {transform_indices = @transform_7, window_bounds = array<i64: 1, 1, 256>}, {transform_indices = @transform_8, window_bounds = array<i64: 1, 256, 256>}, {transform_indices = @transform_9, window_bounds = array<i64: 1, 1, 256>}, {transform_indices = @transform_10, window_bounds = array<i64: 1, 1, 256>}, {transform_indices = @transform_11, window_bounds = array<i64: 1, 1, 256>}, {transform_indices = @transform_12, window_bounds = array<i64: 1, 1, 1, 256>}]} {
    %c0 = arith.constant 0 : index
    %c0_0 = arith.constant 0 : index
    %c0_1 = arith.constant 0 : index
    %c0_2 = arith.constant 0 : index
    %0 = vector.load %arg2[%c0, %c0_0, %c0_1, %c0_2] : memref<1x1x256x256xf32, #tpu.memory_space<vmem>>, vector<1x1x256x256xf32>
    %1 = vector.shape_cast %0 : vector<1x1x256x256xf32> to vector<256x256xf32>
    %c0_3 = arith.constant 0 : index
    %c0_4 = arith.constant 0 : index
    %c0_5 = arith.constant 0 : index
    %2 = vector.load %arg4[%c0_3, %c0_4, %c0_5] : memref<1x1x256xf32, #tpu.memory_space<vmem>>, vector<1x1x256xf32>
    %3 = vector.shape_cast %2 : vector<1x1x256xf32> to vector<1x256xf32>
    %c0_6 = arith.constant 0 : index
    %c0_7 = arith.constant 0 : index
    %c0_8 = arith.constant 0 : index
    %4 = vector.load %arg5[%c0_6, %c0_7, %c0_8] : memref<1x1x256xf32, #tpu.memory_space<vmem>>, vector<1x1x256xf32>
    %5 = vector.shape_cast %4 : vector<1x1x256xf32> to vector<1x256xf32>
    %cst = arith.constant dense<0.000000e+00> : vector<256xf32>
    %6 = vector.multi_reduction <add>, %1, %cst [1] : vector<256x256xf32> to vector<256xf32>
    %7 = vector.shape_cast %6 : vector<256xf32> to vector<256x1xf32>
    %cst_9 = arith.constant 2.560000e+02 : f32
    %8 = vector.broadcast %cst_9 : f32 to vector<256x1xf32>
    %9 = arith.divf %7, %8 : vector<256x1xf32>
    %10 = vector.broadcast %9 : vector<256x1xf32> to vector<256x256xf32>
    %11 = arith.subf %1, %10 : vector<256x256xf32>
    %12 = arith.mulf %11, %11 : vector<256x256xf32>
    %cst_10 = arith.constant dense<0.000000e+00> : vector<256xf32>
    %13 = vector.multi_reduction <add>, %12, %cst_10 [1] : vector<256x256xf32> to vector<256xf32>
    %14 = vector.shape_cast %13 : vector<256xf32> to vector<256x1xf32>
    %cst_11 = arith.constant 2.560000e+02 : f32
    %15 = vector.broadcast %cst_11 : f32 to vector<256x1xf32>
    %16 = arith.divf %14, %15 : vector<256x1xf32>
    %cst_12 = arith.constant 9.99999997E-7 : f32
    %17 = vector.broadcast %cst_12 : f32 to vector<256x1xf32>
    %18 = arith.addf %16, %17 : vector<256x1xf32>
    %19 = math.rsqrt %18 : vector<256x1xf32>
    %20 = vector.broadcast %19 : vector<256x1xf32> to vector<256x256xf32>
    %21 = arith.mulf %11, %20 : vector<256x256xf32>
    %22 = vector.broadcast %3 : vector<1x256xf32> to vector<256x256xf32>
    %23 = arith.mulf %21, %22 : vector<256x256xf32>
    %24 = vector.broadcast %5 : vector<1x256xf32> to vector<256x256xf32>
    %25 = arith.addf %23, %24 : vector<256x256xf32>
    %26 = arith.truncf %25 : vector<256x256xf32> to vector<256x256xbf16>
    %c0_13 = arith.constant 0 : index
    %c0_14 = arith.constant 0 : index
    %c0_15 = arith.constant 0 : index
    %27 = vector.load %arg6[%c0_13, %c0_14, %c0_15] : memref<1x256x256xbf16, #tpu.memory_space<vmem>>, vector<1x256x256xbf16>
    %28 = vector.shape_cast %27 : vector<1x256x256xbf16> to vector<256x256xbf16>
    %cst_16 = arith.constant dense<0.000000e+00> : vector<256x256xf32>
    %29 = tpu.matmul %26, %28, %cst_16 {dimension_numbers = #tpu.dot_dimension_numbers<[1], [0], [0], [1], [0, 0, 1, 1], [], []>} : vector<256x256xbf16>, vector<256x256xbf16>, vector<256x256xf32> -> vector<256x256xf32>
    %c0_17 = arith.constant 0 : index
    %c0_18 = arith.constant 0 : index
    %c0_19 = arith.constant 0 : index
    %30 = vector.load %arg7[%c0_17, %c0_18, %c0_19] : memref<1x1x256xf32, #tpu.memory_space<vmem>>, vector<1x1x256xf32>
    %31 = vector.shape_cast %30 : vector<1x1x256xf32> to vector<1x256xf32>
    %32 = vector.broadcast %31 : vector<1x256xf32> to vector<256x256xf32>
    %33 = arith.addf %29, %32 : vector<256x256xf32>
    %c0_20 = arith.constant 0 : index
    %c0_21 = arith.constant 0 : index
    %c0_22 = arith.constant 0 : index
    %34 = vector.load %arg8[%c0_20, %c0_21, %c0_22] : memref<1x256x256xbf16, #tpu.memory_space<vmem>>, vector<1x256x256xbf16>
    %35 = vector.shape_cast %34 : vector<1x256x256xbf16> to vector<256x256xbf16>
    %cst_23 = arith.constant dense<0.000000e+00> : vector<256x256xf32>
    %36 = tpu.matmul %26, %35, %cst_23 {dimension_numbers = #tpu.dot_dimension_numbers<[1], [0], [0], [1], [0, 0, 1, 1], [], []>} : vector<256x256xbf16>, vector<256x256xbf16>, vector<256x256xf32> -> vector<256x256xf32>
    %c0_24 = arith.constant 0 : index
    %c0_25 = arith.constant 0 : index
    %c0_26 = arith.constant 0 : index
    %37 = vector.load %arg9[%c0_24, %c0_25, %c0_26] : memref<1x1x256xf32, #tpu.memory_space<vmem>>, vector<1x1x256xf32>
    %38 = vector.shape_cast %37 : vector<1x1x256xf32> to vector<1x256xf32>
    %39 = vector.broadcast %38 : vector<1x256xf32> to vector<256x256xf32>
    %40 = arith.addf %36, %39 : vector<256x256xf32>
    %c0_27 = arith.constant 0 : index
    %c0_28 = arith.constant 0 : index
    %c0_29 = arith.constant 0 : index
    %41 = vector.load %arg12[%c0_27, %c0_28, %c0_29] : memref<1x1x256xf32, #tpu.memory_space<vmem>>, vector<1x1x256xf32>
    %42 = vector.shape_cast %41 : vector<1x1x256xf32> to vector<1x256xf32>
    %c0_30 = arith.constant 0 : index
    %c0_31 = arith.constant 0 : index
    %c0_32 = arith.constant 0 : index
    %43 = vector.load %arg13[%c0_30, %c0_31, %c0_32] : memref<1x1x256xf32, #tpu.memory_space<vmem>>, vector<1x1x256xf32>
    %44 = vector.shape_cast %43 : vector<1x1x256xf32> to vector<1x256xf32>
    %cst_33 = arith.constant dense<0.000000e+00> : vector<256xf32>
    %45 = vector.multi_reduction <add>, %33, %cst_33 [1] : vector<256x256xf32> to vector<256xf32>
    %46 = vector.shape_cast %45 : vector<256xf32> to vector<256x1xf32>
    %cst_34 = arith.constant 2.560000e+02 : f32
    %47 = vector.broadcast %cst_34 : f32 to vector<256x1xf32>
    %48 = arith.divf %46, %47 : vector<256x1xf32>
    %49 = vector.broadcast %48 : vector<256x1xf32> to vector<256x256xf32>
    %50 = arith.subf %33, %49 : vector<256x256xf32>
    %51 = arith.mulf %50, %50 : vector<256x256xf32>
    %cst_35 = arith.constant dense<0.000000e+00> : vector<256xf32>
    %52 = vector.multi_reduction <add>, %51, %cst_35 [1] : vector<256x256xf32> to vector<256xf32>
    %53 = vector.shape_cast %52 : vector<256xf32> to vector<256x1xf32>
    %cst_36 = arith.constant 2.560000e+02 : f32
    %54 = vector.broadcast %cst_36 : f32 to vector<256x1xf32>
    %55 = arith.divf %53, %54 : vector<256x1xf32>
    %cst_37 = arith.constant 9.99999997E-7 : f32
    %56 = vector.broadcast %cst_37 : f32 to vector<256x1xf32>
    %57 = arith.addf %55, %56 : vector<256x1xf32>
    %58 = math.rsqrt %57 : vector<256x1xf32>
    %59 = vector.broadcast %58 : vector<256x1xf32> to vector<256x256xf32>
    %60 = arith.mulf %50, %59 : vector<256x256xf32>
    %61 = vector.broadcast %42 : vector<1x256xf32> to vector<256x256xf32>
    %62 = arith.mulf %60, %61 : vector<256x256xf32>
    %63 = vector.broadcast %44 : vector<1x256xf32> to vector<256x256xf32>
    %64 = arith.addf %62, %63 : vector<256x256xf32>
    %c0_38 = arith.constant 0 : index
    %c0_39 = arith.constant 0 : index
    %c0_40 = arith.constant 0 : index
    %65 = vector.load %arg3[%c0_38, %c0_39, %c0_40] : memref<1x1x256xf32, #tpu.memory_space<vmem>>, vector<1x1x256xf32>
    %66 = vector.shape_cast %65 : vector<1x1x256xf32> to vector<1x256xf32>
    %c0_41 = arith.constant 0 : index
    %c0_42 = arith.constant 0 : index
    %c0_43 = arith.constant 0 : index
    %67 = vector.load %arg10[%c0_41, %c0_42, %c0_43] : memref<1x256x256xbf16, #tpu.memory_space<vmem>>, vector<1x256x256xbf16>
    %68 = vector.shape_cast %67 : vector<1x256x256xbf16> to vector<256x256xbf16>
    %c0_44 = arith.constant 0 : index
    %c0_45 = arith.constant 0 : index
    %c0_46 = arith.constant 0 : index
    %69 = vector.load %arg11[%c0_44, %c0_45, %c0_46] : memref<1x1x256xf32, #tpu.memory_space<vmem>>, vector<1x1x256xf32>
    %70 = vector.shape_cast %69 : vector<1x1x256xf32> to vector<1x256xf32>
    %71 = vector.extract_strided_slice %66 {offsets = [0, 0], sizes = [1, 128], strides = [1, 1]} : vector<1x256xf32> to vector<1x128xf32>
    %72 = arith.truncf %71 : vector<1x128xf32> to vector<1x128xbf16>
    %73 = vector.extract_strided_slice %64 {offsets = [0, 0], sizes = [256, 128], strides = [1, 1]} : vector<256x256xf32> to vector<256x128xf32>
    %74 = arith.truncf %73 : vector<256x128xf32> to vector<256x128xbf16>
    %75 = vector.extract_strided_slice %40 {offsets = [0, 0], sizes = [256, 128], strides = [1, 1]} : vector<256x256xf32> to vector<256x128xf32>
    %76 = arith.truncf %75 : vector<256x128xf32> to vector<256x128xbf16>
    %cst_47 = arith.constant dense<0.000000e+00> : vector<1x256xf32>
    %77 = tpu.matmul %72, %74, %cst_47 {dimension_numbers = #tpu.dot_dimension_numbers<[1], [1], [0], [0], [0, 0, 1, 0], [], []>} : vector<1x128xbf16>, vector<256x128xbf16>, vector<1x256xf32> -> vector<1x256xf32>
    %cst_48 = arith.constant 0.0883883461 : f32
    %78 = vector.broadcast %cst_48 : f32 to vector<1x256xf32>
    %79 = arith.mulf %77, %78 : vector<1x256xf32>
    %cst_49 = arith.constant dense<0xFF800000> : vector<1xf32>
    %80 = vector.multi_reduction <maximumf>, %79, %cst_49 [1] : vector<1x256xf32> to vector<1xf32>
    %81 = vector.shape_cast %80 : vector<1xf32> to vector<1x1xf32>
    %82 = vector.broadcast %81 : vector<1x1xf32> to vector<1x256xf32>
    %83 = arith.subf %79, %82 : vector<1x256xf32>
    %84 = math.exp %83 : vector<1x256xf32>
    %cst_50 = arith.constant dense<0.000000e+00> : vector<1xf32>
    %85 = vector.multi_reduction <add>, %84, %cst_50 [1] : vector<1x256xf32> to vector<1xf32>
    %86 = vector.shape_cast %85 : vector<1xf32> to vector<1x1xf32>
    %87 = tpu.reciprocal %86 {approx = true} : vector<1x1xf32> -> vector<1x1xf32>
    %88 = vector.broadcast %87 : vector<1x1xf32> to vector<1x256xf32>
    %89 = arith.mulf %84, %88 : vector<1x256xf32>
    %90 = arith.truncf %89 : vector<1x256xf32> to vector<1x256xbf16>
    %cst_51 = arith.constant dense<0.000000e+00> : vector<1x128xf32>
    %91 = tpu.matmul %90, %76, %cst_51 {dimension_numbers = #tpu.dot_dimension_numbers<[1], [0], [0], [1], [0, 0, 1, 1], [], []>} : vector<1x256xbf16>, vector<256x128xbf16>, vector<1x128xf32> -> vector<1x128xf32>
    %92 = arith.truncf %91 : vector<1x128xf32> to vector<1x128xbf16>
    %93 = vector.extract_strided_slice %68 {offsets = [0, 0], sizes = [128, 256], strides = [1, 1]} : vector<256x256xbf16> to vector<128x256xbf16>
    %cst_52 = arith.constant dense<0.000000e+00> : vector<1x256xf32>
    %94 = tpu.matmul %92, %93, %cst_52 {dimension_numbers = #tpu.dot_dimension_numbers<[1], [0], [0], [1], [0, 0, 1, 1], [], []>} : vector<1x128xbf16>, vector<128x256xbf16>, vector<1x256xf32> -> vector<1x256xf32>
    %95 = arith.addf %70, %94 : vector<1x256xf32>
    %96 = vector.extract_strided_slice %66 {offsets = [0, 128], sizes = [1, 128], strides = [1, 1]} : vector<1x256xf32> to vector<1x128xf32>
    %97 = arith.truncf %96 : vector<1x128xf32> to vector<1x128xbf16>
    %98 = vector.extract_strided_slice %64 {offsets = [0, 128], sizes = [256, 128], strides = [1, 1]} : vector<256x256xf32> to vector<256x128xf32>
    %99 = arith.truncf %98 : vector<256x128xf32> to vector<256x128xbf16>
    %100 = vector.extract_strided_slice %40 {offsets = [0, 128], sizes = [256, 128], strides = [1, 1]} : vector<256x256xf32> to vector<256x128xf32>
    %101 = arith.truncf %100 : vector<256x128xf32> to vector<256x128xbf16>
    %cst_53 = arith.constant dense<0.000000e+00> : vector<1x256xf32>
    %102 = tpu.matmul %97, %99, %cst_53 {dimension_numbers = #tpu.dot_dimension_numbers<[1], [1], [0], [0], [0, 0, 1, 0], [], []>} : vector<1x128xbf16>, vector<256x128xbf16>, vector<1x256xf32> -> vector<1x256xf32>
    %cst_54 = arith.constant 0.0883883461 : f32
    %103 = vector.broadcast %cst_54 : f32 to vector<1x256xf32>
    %104 = arith.mulf %102, %103 : vector<1x256xf32>
    %cst_55 = arith.constant dense<0xFF800000> : vector<1xf32>
    %105 = vector.multi_reduction <maximumf>, %104, %cst_55 [1] : vector<1x256xf32> to vector<1xf32>
    %106 = vector.shape_cast %105 : vector<1xf32> to vector<1x1xf32>
    %107 = vector.broadcast %106 : vector<1x1xf32> to vector<1x256xf32>
    %108 = arith.subf %104, %107 : vector<1x256xf32>
    %109 = math.exp %108 : vector<1x256xf32>
    %cst_56 = arith.constant dense<0.000000e+00> : vector<1xf32>
    %110 = vector.multi_reduction <add>, %109, %cst_56 [1] : vector<1x256xf32> to vector<1xf32>
    %111 = vector.shape_cast %110 : vector<1xf32> to vector<1x1xf32>
    %112 = tpu.reciprocal %111 {approx = true} : vector<1x1xf32> -> vector<1x1xf32>
    %113 = vector.broadcast %112 : vector<1x1xf32> to vector<1x256xf32>
    %114 = arith.mulf %109, %113 : vector<1x256xf32>
    %115 = arith.truncf %114 : vector<1x256xf32> to vector<1x256xbf16>
    %cst_57 = arith.constant dense<0.000000e+00> : vector<1x128xf32>
    %116 = tpu.matmul %115, %101, %cst_57 {dimension_numbers = #tpu.dot_dimension_numbers<[1], [0], [0], [1], [0, 0, 1, 1], [], []>} : vector<1x256xbf16>, vector<256x128xbf16>, vector<1x128xf32> -> vector<1x128xf32>
    %117 = arith.truncf %116 : vector<1x128xf32> to vector<1x128xbf16>
    %118 = vector.extract_strided_slice %68 {offsets = [128, 0], sizes = [128, 256], strides = [1, 1]} : vector<256x256xbf16> to vector<128x256xbf16>
    %cst_58 = arith.constant dense<0.000000e+00> : vector<1x256xf32>
    %119 = tpu.matmul %117, %118, %cst_58 {dimension_numbers = #tpu.dot_dimension_numbers<[1], [0], [0], [1], [0, 0, 1, 1], [], []>} : vector<1x128xbf16>, vector<128x256xbf16>, vector<1x256xf32> -> vector<1x256xf32>
    %120 = arith.addf %95, %119 : vector<1x256xf32>
    %c0_59 = arith.constant 0 : index
    %c0_60 = arith.constant 0 : index
    %c0_61 = arith.constant 0 : index
    %c0_62 = arith.constant 0 : index
    %121 = vector.load %arg14[%c0_59, %c0_60, %c0_61, %c0_62] : memref<1x1x1x256xf32, #tpu.memory_space<vmem>>, vector<1x1x1x256xf32>
    %122 = vector.shape_cast %121 : vector<1x1x1x256xf32> to vector<1x256xf32>
    %123 = vector.shape_cast %120 : vector<1x256xf32> to vector<1x1x1x256xf32>
    tpu.vector_store %arg14[%c0_59, %c0_60, %c0_61, %c0_62], %123 {strides = array<i32>} : memref<1x1x1x256xf32, #tpu.memory_space<vmem>>, vector<1x1x1x256xf32>,
    return
  }
  func.func @transform_0(%arg0: i32, %arg1: i32) -> (i32, i32, i32, i32) {
    %c0_i32 = arith.constant 0 : i32
    %c0_i32_0 = arith.constant 0 : i32
    %c0_i32_1 = arith.constant 0 : i32
    return %arg0, %arg1, %c0_i32, %c0_i32_0 : i32, i32, i32, i32
  }
  func.func @transform_1(%arg0: i32, %arg1: i32) -> (i32, i32, i32) {
    %c0_i32 = arith.constant 0 : i32
    %c0_i32_0 = arith.constant 0 : i32
    %c0_i32_1 = arith.constant 0 : i32
    return %arg0, %c0_i32, %c0_i32_0 : i32, i32, i32
  }
  func.func @transform_2(%arg0: i32, %arg1: i32) -> (i32, i32, i32) {
    %c0_i32 = arith.constant 0 : i32
    %c0_i32_0 = arith.constant 0 : i32
    %c0_i32_1 = arith.constant 0 : i32
    return %arg0, %c0_i32, %c0_i32_0 : i32, i32, i32
  }
  func.func @transform_3(%arg0: i32, %arg1: i32) -> (i32, i32, i32) {
    %c0_i32 = arith.constant 0 : i32
    %c0_i32_0 = arith.constant 0 : i32
    %c0_i32_1 = arith.constant 0 : i32
    return %arg0, %c0_i32, %c0_i32_0 : i32, i32, i32
  }
  func.func @transform_4(%arg0: i32, %arg1: i32) -> (i32, i32, i32) {
    %c0_i32 = arith.constant 0 : i32
    %c0_i32_0 = arith.constant 0 : i32
    %c0_i32_1 = arith.constant 0 : i32
    return %arg0, %c0_i32, %c0_i32_0 : i32, i32, i32
  }
  func.func @transform_5(%arg0: i32, %arg1: i32) -> (i32, i32, i32) {
    %c0_i32 = arith.constant 0 : i32
    %c0_i32_0 = arith.constant 0 : i32
    %c0_i32_1 = arith.constant 0 : i32
    return %arg0, %c0_i32, %c0_i32_0 : i32, i32, i32
  }
  func.func @transform_6(%arg0: i32, %arg1: i32) -> (i32, i32, i32) {
    %c0_i32 = arith.constant 0 : i32
    %c0_i32_0 = arith.constant 0 : i32
    %c0_i32_1 = arith.constant 0 : i32
    return %arg0, %c0_i32, %c0_i32_0 : i32, i32, i32
  }
  func.func @transform_7(%arg0: i32, %arg1: i32) -> (i32, i32, i32) {
    %c0_i32 = arith.constant 0 : i32
    %c0_i32_0 = arith.constant 0 : i32
    %c0_i32_1 = arith.constant 0 : i32
    return %arg0, %c0_i32, %c0_i32_0 : i32, i32, i32
  }
  func.func @transform_8(%arg0: i32, %arg1: i32) -> (i32, i32, i32) {
    %c0_i32 = arith.constant 0 : i32
    %c0_i32_0 = arith.constant 0 : i32
    %c0_i32_1 = arith.constant 0 : i32
    return %arg0, %c0_i32, %c0_i32_0 : i32, i32, i32
  }
  func.func @transform_9(%arg0: i32, %arg1: i32) -> (i32, i32, i32) {
    %c0_i32 = arith.constant 0 : i32
    %c0_i32_0 = arith.constant 0 : i32
    %c0_i32_1 = arith.constant 0 : i32
    return %arg0, %c0_i32, %c0_i32_0 : i32, i32, i32
  }
  func.func @transform_10(%arg0: i32, %arg1: i32) -> (i32, i32, i32) {
    %c0_i32 = arith.constant 0 : i32
    %c0_i32_0 = arith.constant 0 : i32
    %c0_i32_1 = arith.constant 0 : i32
    return %arg0, %c0_i32, %c0_i32_0 : i32, i32, i32
  }
  func.func @transform_11(%arg0: i32, %arg1: i32) -> (i32, i32, i32) {
    %c0_i32 = arith.constant 0 : i32
    %c0_i32_0 = arith.constant 0 : i32
    %c0_i32_1 = arith.constant 0 : i32
    return %arg0, %c0_i32, %c0_i32_0 : i32, i32, i32
  }
  func.func @transform_12(%arg0: i32, %arg1: i32) -> (i32, i32, i32, i32) {
    %c0_i32 = arith.constant 0 : i32
    %c0_i32_0 = arith.constant 0 : i32
    %c0_i32_1 = arith.constant 0 : i32
    return %arg0, %arg1, %c0_i32, %c0_i32_0 : i32, i32, i32, i32
  }
}

</mosaic_0001>

<llo_original>
// kernel: _forward_impl.1
$region0: #{_forward_impl.1}
  #allocation0 [shape = 'u32[]', space=smem, size = 0x4, offset = 0x4, fixed_abs, tag = 'smem constant byte address 0x4 - core index']
  #allocation1 [shape = 'u32[144,128]{1,0:T(1,128)}', space=vmem, size = 0x12000, scoped, tag = 'internal scratch']
  %s0 = inlined_call_operand.vmem [shape: f32[3,2,256,256], index: 0, kind: input, shape index: {}]
  %s1 = inlined_call_operand.vmem [shape: f32[3,1,256], index: 1, kind: input, shape index: {}]
  %s2 = inlined_call_operand.vmem [shape: f32[3,1,256], index: 2, kind: input, shape index: {}]
  %s3 = inlined_call_operand.vmem [shape: f32[3,1,256], index: 3, kind: input, shape index: {}]
  %s4 = inlined_call_operand.vmem [shape: bf16[3,256,256], index: 4, kind: input, shape index: {}]
  %s5 = inlined_call_operand.vmem [shape: f32[3,1,256], index: 5, kind: input, shape index: {}]
  %s6 = inlined_call_operand.vmem [shape: bf16[3,256,256], index: 6, kind: input, shape index: {}]
  %s7 = inlined_call_operand.vmem [shape: f32[3,1,256], index: 7, kind: input, shape index: {}]
  %s8 = inlined_call_operand.vmem [shape: bf16[3,256,256], index: 8, kind: input, shape index: {}]
  %s9 = inlined_call_operand.vmem [shape: f32[3,1,256], index: 9, kind: input, shape index: {}]
  %s10 = inlined_call_operand.vmem [shape: f32[3,1,256], index: 10, kind: input, shape index: {}]
  %s11 = inlined_call_operand.vmem [shape: f32[3,1,256], index: 11, kind: input, shape index: {}]
  %s12 = inlined_call_operand.vmem [shape: f32[3,2,1,256], index: 12, kind: output, shape index: {}]
  %s13 = sld [smem:[#allocation0]]
  $region81: #{_forward_impl.1} parent=0
    _
  %s15 = ssub.s32 1, %s13
  %s16 = scalar_select 0, %s15, %s13
  loop: start=0, step=1, limit=8
  $region2: #{_forward_impl.1} parent=0 // loop_pre_header
    _
  $region3: #{_forward_impl.1} parent=0 // loop_header
    %s18 = sphi 0, %s22
    %p19 = scmp.ge.s32.totalorder %s18, 8
    %s25 = sphi 0, %s37
    %s26 = sphi 0, %s33
    %s27 = sphi 0, %s25
    %s28 = sphi 0, %s26
    %s29 = sphi 0, %s27
    %s30 = sphi 0, %s28
    %s42 = sphi 0, %s44
    %s45 = sphi 0, %s42
    %s46 = sphi 0, %s45
    %s62 = sphi 0, %s46
    %s68 = sphi 0, %s70
    %s71 = sphi 0, %s68
    %s72 = sphi 0, %s71
    %s88 = sphi 0, %s72
    %s94 = sphi 0, %s96
    %s97 = sphi 0, %s94
    %s98 = sphi 0, %s97
    %s114 = sphi 0, %s98
    %s120 = sphi 0, %s122
    %s123 = sphi 0, %s120
    %s124 = sphi 0, %s123
    %s140 = sphi 0, %s124
    %s146 = sphi 0, %s148
    %s149 = sphi 0, %s146
    %s150 = sphi 0, %s149
    %s166 = sphi 0, %s150
    %s172 = sphi 0, %s174
    %s175 = sphi 0, %s172
    %s176 = sphi 0, %s175
    %s192 = sphi 0, %s176
    %s198 = sphi 0, %s200
    %s201 = sphi 0, %s198
    %s202 = sphi 0, %s201
    %s218 = sphi 0, %s202
    %s224 = sphi 0, %s226
    %s227 = sphi 0, %s224
    %s228 = sphi 0, %s227
    %s244 = sphi 0, %s228
    %s250 = sphi 0, %s252
    %s253 = sphi 0, %s250
    %s254 = sphi 0, %s253
    %s270 = sphi 0, %s254
    %s276 = sphi 0, %s278
    %s279 = sphi 0, %s276
    %s280 = sphi 0, %s279
    %s296 = sphi 0, %s280
    %s302 = sphi 0, %s304
    %s305 = sphi 0, %s302
    %s306 = sphi 0, %s305
    %s322 = sphi 0, %s306
    %s328 = sphi 0, %s330
    %s331 = sphi 0, %s328
    %s332 = sphi 0, %s331
    %s348 = sphi 0, %s332
    %s356 = sphi 0, %s358
    %s359 = sphi 0, %s356
    %s360 = sphi 0, %s359
    %s376 = sphi 0, %s360
  $region4: #{_forward_impl.1} parent=0 // loop_header_branch
    %21 = sbr.rel (%p19) target = $region8
  $region5: #{_forward_impl.1} parent=0 // loop_body
    %s23 = ssub.s32 %s18, 1
    %s24 = ssub.s32 %s18, 2
    %s31 = sadd.s32 1, %s26
    %p32 = scmp.ge.s32.totalorder %s31, 2
    %s33 = scalar_select %p32, 0, %s31
    %s34 = sadd.s32 1, %s25
    %s35 = scalar_select %p32, %s34, %s25
    %p36 = scmp.ge.s32.totalorder %s35, 3
    %s37 = scalar_select %p36, 0, %s35
    %s38 = ssub.s32 %s25, %s37
    %s39 = ssub.s32 %s26, %s33
    %s40 = sor.u32 %s38, %s39
    %p41 = scmp.eq.s32.totalorder %s40, 0
    %s43 = sadd.s32 %s42, 1
    %s44 = scalar_select %p41, %s42, %s43
    %p47 = pneg %p41
    %p48 = scmp.eq.s32.totalorder %s18, 5
    %p49 = por %p47, %p48
    %p50 = scmp.ne.s32.totalorder %s42, %s45
    %p51 = scmp.eq.s32.totalorder %s18, 0
    %p52 = por %p50, %p51
    %p53 = scmp.ne.s32.totalorder %s42, %s45
    %p54 = scmp.eq.s32.totalorder %s23, 5
    %p55 = por %p53, %p54
    %p56 = scmp.ne.s32.totalorder %s45, %s46
    %p57 = scmp.eq.s32.totalorder %s23, 0
    %p58 = por %p56, %p57
    %p59 = scmp.ne.s32.totalorder %s45, %s46
    %p60 = scmp.eq.s32.totalorder %s24, 5
    %p61 = por %p59, %p60
    %p63 = scmp.ne.s32.totalorder %s46, %s62
    %p64 = scmp.eq.s32.totalorder %s24, 0
    %p65 = por %p63, %p64
    %s66 = ssub.s32 %s25, %s37
    %p67 = scmp.eq.s32.totalorder %s66, 0
    %s69 = sadd.s32 %s68, 1
    %s70 = scalar_select %p67, %s68, %s69
    %p73 = pneg %p67
    %p74 = scmp.eq.s32.totalorder %s18, 5
    %p75 = por %p73, %p74
    %p76 = scmp.ne.s32.totalorder %s68, %s71
    %p77 = scmp.eq.s32.totalorder %s18, 0
    %p78 = por %p76, %p77
    %p79 = scmp.ne.s32.totalorder %s68, %s71
    %p80 = scmp.eq.s32.totalorder %s23, 5
    %p81 = por %p79, %p80
    %p82 = scmp.ne.s32.totalorder %s71, %s72
    %p83 = scmp.eq.s32.totalorder %s23, 0
    %p84 = por %p82, %p83
    %p85 = scmp.ne.s32.totalorder %s71, %s72
    %p86 = scmp.eq.s32.totalorder %s24, 5
    %p87 = por %p85, %p86
    %p89 = scmp.ne.s32.totalorder %s72, %s88
    %p90 = scmp.eq.s32.totalorder %s24, 0
    %p91 = por %p89, %p90
    %s92 = ssub.s32 %s25, %s37
    %p93 = scmp.eq.s32.totalorder %s92, 0
    %s95 = sadd.s32 %s94, 1
    %s96 = scalar_select %p93, %s94, %s95
    %p99 = pneg %p93
    %p100 = scmp.eq.s32.totalorder %s18, 5
    %p101 = por %p99, %p100
    %p102 = scmp.ne.s32.totalorder %s94, %s97
    %p103 = scmp.eq.s32.totalorder %s18, 0
    %p104 = por %p102, %p103
    %p105 = scmp.ne.s32.totalorder %s94, %s97
    %p106 = scmp.eq.s32.totalorder %s23, 5
    %p107 = por %p105, %p106
    %p108 = scmp.ne.s32.totalorder %s97, %s98
    %p109 = scmp.eq.s32.totalorder %s23, 0
    %p110 = por %p108, %p109
    %p111 = scmp.ne.s32.totalorder %s97, %s98
    %p112 = scmp.eq.s32.totalorder %s24, 5
    %p113 = por %p111, %p112
    %p115 = scmp.ne.s32.totalorder %s98, %s114
    %p116 = scmp.eq.s32.totalorder %s24, 0
    %p117 = por %p115, %p116
    %s118 = ssub.s32 %s25, %s37
    %p119 = scmp.eq.s32.totalorder %s118, 0
    %s121 = sadd.s32 %s120, 1
    %s122 = scalar_select %p119, %s120, %s121
    %p125 = pneg %p119
    %p126 = scmp.eq.s32.totalorder %s18, 5
    %p127 = por %p125, %p126
    %p128 = scmp.ne.s32.totalorder %s120, %s123
    %p129 = scmp.eq.s32.totalorder %s18, 0
    %p130 = por %p128, %p129
    %p131 = scmp.ne.s32.totalorder %s120, %s123
    %p132 = scmp.eq.s32.totalorder %s23, 5
    %p133 = por %p131, %p132
    %p134 = scmp.ne.s32.totalorder %s123, %s124
    %p135 = scmp.eq.s32.totalorder %s23, 0
    %p136 = por %p134, %p135
    %p137 = scmp.ne.s32.totalorder %s123, %s124
    %p138 = scmp.eq.s32.totalorder %s24, 5
    %p139 = por %p137, %p138
    %p141 = scmp.ne.s32.totalorder %s124, %s140
    %p142 = scmp.eq.s32.totalorder %s24, 0
    %p143 = por %p141, %p142
    %s144 = ssub.s32 %s25, %s37
    %p145 = scmp.eq.s32.totalorder %s144, 0
    %s147 = sadd.s32 %s146, 1
    %s148 = scalar_select %p145, %s146, %s147
    %p151 = pneg %p145
    %p152 = scmp.eq.s32.totalorder %s18, 5
    %p153 = por %p151, %p152
    %p154 = scmp.ne.s32.totalorder %s146, %s149
    %p155 = scmp.eq.s32.totalorder %s18, 0
    %p156 = por %p154, %p155
    %p157 = scmp.ne.s32.totalorder %s146, %s149
    %p158 = scmp.eq.s32.totalorder %s23, 5
    %p159 = por %p157, %p158
    %p160 = scmp.ne.s32.totalorder %s149, %s150
    %p161 = scmp.eq.s32.totalorder %s23, 0
    %p162 = por %p160, %p161
    %p163 = scmp.ne.s32.totalorder %s149, %s150
    %p164 = scmp.eq.s32.totalorder %s24, 5
    %p165 = por %p163, %p164
    %p167 = scmp.ne.s32.totalorder %s150, %s166
    %p168 = scmp.eq.s32.totalorder %s24, 0
    %p169 = por %p167, %p168
    %s170 = ssub.s32 %s25, %s37
    %p171 = scmp.eq.s32.totalorder %s170, 0
    %s173 = sadd.s32 %s172, 1
    %s174 = scalar_select %p171, %s172, %s173
    %p177 = pneg %p171
    %p178 = scmp.eq.s32.totalorder %s18, 5
    %p179 = por %p177, %p178
    %p180 = scmp.ne.s32.totalorder %s172, %s175
    %p181 = scmp.eq.s32.totalorder %s18, 0
    %p182 = por %p180, %p181
    %p183 = scmp.ne.s32.totalorder %s172, %s175
    %p184 = scmp.eq.s32.totalorder %s23, 5
    %p185 = por %p183, %p184
    %p186 = scmp.ne.s32.totalorder %s175, %s176
    %p187 = scmp.eq.s32.totalorder %s23, 0
    %p188 = por %p186, %p187
    %p189 = scmp.ne.s32.totalorder %s175, %s176
    %p190 = scmp.eq.s32.totalorder %s24, 5
    %p191 = por %p189, %p190
    %p193 = scmp.ne.s32.totalorder %s176, %s192
    %p194 = scmp.eq.s32.totalorder %s24, 0
    %p195 = por %p193, %p194
    %s196 = ssub.s32 %s25, %s37
    %p197 = scmp.eq.s32.totalorder %s196, 0
    %s199 = sadd.s32 %s198, 1
    %s200 = scalar_select %p197, %s198, %s199
    %p203 = pneg %p197
    %p204 = scmp.eq.s32.totalorder %s18, 5
    %p205 = por %p203, %p204
    %p206 = scmp.ne.s32.totalorder %s198, %s201
    %p207 = scmp.eq.s32.totalorder %s18, 0
    %p208 = por %p206, %p207
    %p209 = scmp.ne.s32.totalorder %s198, %s201
    %p210 = scmp.eq.s32.totalorder %s23, 5
    %p211 = por %p209, %p210
    %p212 = scmp.ne.s32.totalorder %s201, %s202
    %p213 = scmp.eq.s32.totalorder %s23, 0
    %p214 = por %p212, %p213
    %p215 = scmp.ne.s32.totalorder %s201, %s202
    %p216 = scmp.eq.s32.totalorder %s24, 5
    %p217 = por %p215, %p216
    %p219 = scmp.ne.s32.totalorder %s202, %s218
    %p220 = scmp.eq.s32.totalorder %s24, 0
    %p221 = por %p219, %p220
    %s222 = ssub.s32 %s25, %s37
    %p223 = scmp.eq.s32.totalorder %s222, 0
    %s225 = sadd.s32 %s224, 1
    %s226 = scalar_select %p223, %s224, %s225
    %p229 = pneg %p223
    %p230 = scmp.eq.s32.totalorder %s18, 5
    %p231 = por %p229, %p230
    %p232 = scmp.ne.s32.totalorder %s224, %s227
    %p233 = scmp.eq.s32.totalorder %s18, 0
    %p234 = por %p232, %p233
    %p235 = scmp.ne.s32.totalorder %s224, %s227
    %p236 = scmp.eq.s32.totalorder %s23, 5
    %p237 = por %p235, %p236
    %p238 = scmp.ne.s32.totalorder %s227, %s228
    %p239 = scmp.eq.s32.totalorder %s23, 0
    %p240 = por %p238, %p239
    %p241 = scmp.ne.s32.totalorder %s227, %s228
    %p242 = scmp.eq.s32.totalorder %s24, 5
    %p243 = por %p241, %p242
    %p245 = scmp.ne.s32.totalorder %s228, %s244
    %p246 = scmp.eq.s32.totalorder %s24, 0
    %p247 = por %p245, %p246
    %s248 = ssub.s32 %s25, %s37
    %p249 = scmp.eq.s32.totalorder %s248, 0
    %s251 = sadd.s32 %s250, 1
    %s252 = scalar_select %p249, %s250, %s251
    %p255 = pneg %p249
    %p256 = scmp.eq.s32.totalorder %s18, 5
    %p257 = por %p255, %p256
    %p258 = scmp.ne.s32.totalorder %s250, %s253
    %p259 = scmp.eq.s32.totalorder %s18, 0
    %p260 = por %p258, %p259
    %p261 = scmp.ne.s32.totalorder %s250, %s253
    %p262 = scmp.eq.s32.totalorder %s23, 5
    %p263 = por %p261, %p262
    %p264 = scmp.ne.s32.totalorder %s253, %s254
    %p265 = scmp.eq.s32.totalorder %s23, 0
    %p266 = por %p264, %p265
    %p267 = scmp.ne.s32.totalorder %s253, %s254
    %p268 = scmp.eq.s32.totalorder %s24, 5
    %p269 = por %p267, %p268
    %p271 = scmp.ne.s32.totalorder %s254, %s270
    %p272 = scmp.eq.s32.totalorder %s24, 0
    %p273 = por %p271, %p272
    %s274 = ssub.s32 %s25, %s37
    %p275 = scmp.eq.s32.totalorder %s274, 0
    %s277 = sadd.s32 %s276, 1
    %s278 = scalar_select %p275, %s276, %s277
    %p281 = pneg %p275
    %p282 = scmp.eq.s32.totalorder %s18, 5
    %p283 = por %p281, %p282
    %p284 = scmp.ne.s32.totalorder %s276, %s279
    %p285 = scmp.eq.s32.totalorder %s18, 0
    %p286 = por %p284, %p285
    %p287 = scmp.ne.s32.totalorder %s276, %s279
    %p288 = scmp.eq.s32.totalorder %s23, 5
    %p289 = por %p287, %p288
    %p290 = scmp.ne.s32.totalorder %s279, %s280
    %p291 = scmp.eq.s32.totalorder %s23, 0
    %p292 = por %p290, %p291
    %p293 = scmp.ne.s32.totalorder %s279, %s280
    %p294 = scmp.eq.s32.totalorder %s24, 5
    %p295 = por %p293, %p294
    %p297 = scmp.ne.s32.totalorder %s280, %s296
    %p298 = scmp.eq.s32.totalorder %s24, 0
    %p299 = por %p297, %p298
    %s300 = ssub.s32 %s25, %s37
    %p301 = scmp.eq.s32.totalorder %s300, 0
    %s303 = sadd.s32 %s302, 1
    %s304 = scalar_select %p301, %s302, %s303
    %p307 = pneg %p301
    %p308 = scmp.eq.s32.totalorder %s18, 5
    %p309 = por %p307, %p308
    %p310 = scmp.ne.s32.totalorder %s302, %s305
    %p311 = scmp.eq.s32.totalorder %s18, 0
    %p312 = por %p310, %p311
    %p313 = scmp.ne.s32.totalorder %s302, %s305
    %p314 = scmp.eq.s32.totalorder %s23, 5
    %p315 = por %p313, %p314
    %p316 = scmp.ne.s32.totalorder %s305, %s306
    %p317 = scmp.eq.s32.totalorder %s23, 0
    %p318 = por %p316, %p317
    %p319 = scmp.ne.s32.totalorder %s305, %s306
    %p320 = scmp.eq.s32.totalorder %s24, 5
    %p321 = por %p319, %p320
    %p323 = scmp.ne.s32.totalorder %s306, %s322
    %p324 = scmp.eq.s32.totalorder %s24, 0
    %p325 = por %p323, %p324
    %s326 = ssub.s32 %s25, %s37
    %p327 = scmp.eq.s32.totalorder %s326, 0
    %s329 = sadd.s32 %s328, 1
    %s330 = scalar_select %p327, %s328, %s329
    %p333 = pneg %p327
    %p334 = scmp.eq.s32.totalorder %s18, 5
    %p335 = por %p333, %p334
    %p336 = scmp.ne.s32.totalorder %s328, %s331
    %p337 = scmp.eq.s32.totalorder %s18, 0
    %p338 = por %p336, %p337
    %p339 = scmp.ne.s32.totalorder %s328, %s331
    %p340 = scmp.eq.s32.totalorder %s23, 5
    %p341 = por %p339, %p340
    %p342 = scmp.ne.s32.totalorder %s331, %s332
    %p343 = scmp.eq.s32.totalorder %s23, 0
    %p344 = por %p342, %p343
    %p345 = scmp.ne.s32.totalorder %s331, %s332
    %p346 = scmp.eq.s32.totalorder %s24, 5
    %p347 = por %p345, %p346
    %p349 = scmp.ne.s32.totalorder %s332, %s348
    %p350 = scmp.eq.s32.totalorder %s24, 0
    %p351 = por %p349, %p350
    %s352 = ssub.s32 %s25, %s37
    %s353 = ssub.s32 %s26, %s33
    %s354 = sor.u32 %s352, %s353
    %p355 = scmp.eq.s32.totalorder %s354, 0
    %s357 = sadd.s32 %s356, 1
    %s358 = scalar_select %p355, %s356, %s357
    %p361 = pneg %p355
    %p362 = scmp.eq.s32.totalorder %s18, 5
    %p363 = por %p361, %p362
    %p364 = scmp.ne.s32.totalorder %s356, %s359
    %p365 = scmp.eq.s32.totalorder %s18, 0
    %p366 = por %p364, %p365
    %p367 = scmp.ne.s32.totalorder %s356, %s359
    %p368 = scmp.eq.s32.totalorder %s23, 5
    %p369 = por %p367, %p368
    %p370 = scmp.ne.s32.totalorder %s359, %s360
    %p371 = scmp.eq.s32.totalorder %s23, 0
    %p372 = por %p370, %p371
    %p373 = scmp.ne.s32.totalorder %s359, %s360
    %p374 = scmp.eq.s32.totalorder %s24, 5
    %p375 = por %p373, %p374
    %p377 = scmp.ne.s32.totalorder %s360, %s376
    %p378 = scmp.eq.s32.totalorder %s24, 0
    %p379 = por %p377, %p378
    %p380 = scmp.le.s32.totalorder 1, %s18
    %p381 = scmp.lt.s32.totalorder %s18, 7
    %p382 = pnand %p380, %p381
    %p383 = pneg %p382
    // Predicated region
    $region9: #{_forward_impl.1} parent=5 // pred_check
      _
    $region10: #{_forward_impl.1} parent=5 // pred_check_branch
      %385 = sbr.rel (%p382) target = $region12
    $region11: #{_forward_impl.1} parent=5 // pred_region
      %s386 = ssub.s32 %s18, 1
    $region12: #{_forward_impl.1} parent=5 // pred_fallthru
      _
    %p387 = scmp.lt.s32.totalorder %s18, 6
    // Predicated region
    $region13: #{_forward_impl.1} parent=5 // pred_check
      %p388 = pneg %p387
    $region14: #{_forward_impl.1} parent=5 // pred_check_branch
      %390 = sbr.rel (%p388) target = $region16
    $region15: #{_forward_impl.1} parent=5 // pred_region
      // Predicated region
      $region17: #{_forward_impl.1} parent=15 // pred_check
        %p391 = pneg %p52
      $region18: #{_forward_impl.1} parent=15 // pred_check_branch
        %393 = sbr.rel (%p391) target = $region20
      $region19: #{_forward_impl.1} parent=15 // pred_region
        %p394 = scmp.lt.s32.totalorder %s25, 2
        %s395 = scalar_select %p394, %s25, 2
        %p396 = scmp.lt.s32.totalorder %s26, 1
        %s397 = scalar_select %p396, %s26, 1
        %s398 = smul.addr %s397, 64
        %s399 = smul.addr %s395, 128
        %s400 = sadd.s32 %s398, %s399
        %s401 = smul.addr %s400, 8
        %s402 = scalar_lea.vmem %s0, %s401
      $region20: #{_forward_impl.1} parent=15 // pred_fallthru
        _
      // Predicated region
      $region21: #{_forward_impl.1} parent=15 // pred_check
        %p403 = pneg %p78
      $region22: #{_forward_impl.1} parent=15 // pred_check_branch
        %405 = sbr.rel (%p403) target = $region24
      $region23: #{_forward_impl.1} parent=15 // pred_region
        %p406 = scmp.lt.s32.totalorder %s25, 2
        %s407 = scalar_select %p406, %s25, 2
        %s408 = smul.addr %s407, 2
        %s409 = scalar_lea.vmem %s1, %s408
      $region24: #{_forward_impl.1} parent=15 // pred_fallthru
        _
      // Predicated region
      $region25: #{_forward_impl.1} parent=15 // pred_check
        %p410 = pneg %p104
      $region26: #{_forward_impl.1} parent=15 // pred_check_branch
        %412 = sbr.rel (%p410) target = $region28
      $region27: #{_forward_impl.1} parent=15 // pred_region
        %p413 = scmp.lt.s32.totalorder %s25, 2
        %s414 = scalar_select %p413, %s25, 2
        %s415 = smul.addr %s414, 2
        %s416 = scalar_lea.vmem %s2, %s415
      $region28: #{_forward_impl.1} parent=15 // pred_fallthru
        _
      // Predicated region
      $region29: #{_forward_impl.1} parent=15 // pred_check
        %p417 = pneg %p130
      $region30: #{_forward_impl.1} parent=15 // pred_check_branch
        %419 = sbr.rel (%p417) target = $region32
      $region31: #{_forward_impl.1} parent=15 // pred_region
        %p420 = scmp.lt.s32.totalorder %s25, 2
        %s421 = scalar_select %p420, %s25, 2
        %s422 = smul.addr %s421, 2
        %s423 = scalar_lea.vmem %s3, %s422
      $region32: #{_forward_impl.1} parent=15 // pred_fallthru
        _
      // Predicated region
      $region33: #{_forward_impl.1} parent=15 // pred_check
        %p424 = pneg %p156
      $region34: #{_forward_impl.1} parent=15 // pred_check_branch
        %426 = sbr.rel (%p424) target = $region36
      $region35: #{_forward_impl.1} parent=15 // pred_region
        %p427 = scmp.lt.s32.totalorder %s25, 2
        %s428 = scalar_select %p427, %s25, 2
        %s429 = smul.addr %s428, 64
        %s430 = smul.addr %s429, 4
        %s431 = scalar_lea.vmem %s4, %s430
      $region36: #{_forward_impl.1} parent=15 // pred_fallthru
        _
      // Predicated region
      $region37: #{_forward_impl.1} parent=15 // pred_check
        %p432 = pneg %p182
      $region38: #{_forward_impl.1} parent=15 // pred_check_branch
        %434 = sbr.rel (%p432) target = $region40
      $region39: #{_forward_impl.1} parent=15 // pred_region
        %p435 = scmp.lt.s32.totalorder %s25, 2
        %s436 = scalar_select %p435, %s25, 2
        %s437 = smul.addr %s436, 2
        %s438 = scalar_lea.vmem %s5, %s437
      $region40: #{_forward_impl.1} parent=15 // pred_fallthru
        _
      // Predicated region
      $region41: #{_forward_impl.1} parent=15 // pred_check
        %p439 = pneg %p208
      $region42: #{_forward_impl.1} parent=15 // pred_check_branch
        %441 = sbr.rel (%p439) target = $region44
      $region43: #{_forward_impl.1} parent=15 // pred_region
        %p442 = scmp.lt.s32.totalorder %s25, 2
        %s443 = scalar_select %p442, %s25, 2
        %s444 = smul.addr %s443, 64
        %s445 = smul.addr %s444, 4
        %s446 = scalar_lea.vmem %s6, %s445
      $region44: #{_forward_impl.1} parent=15 // pred_fallthru
        _
      // Predicated region
      $region45: #{_forward_impl.1} parent=15 // pred_check
        %p447 = pneg %p234
      $region46: #{_forward_impl.1} parent=15 // pred_check_branch
        %449 = sbr.rel (%p447) target = $region48
      $region47: #{_forward_impl.1} parent=15 // pred_region
        %p450 = scmp.lt.s32.totalorder %s25, 2
        %s451 = scalar_select %p450, %s25, 2
        %s452 = smul.addr %s451, 2
        %s453 = scalar_lea.vmem %s7, %s452
      $region48: #{_forward_impl.1} parent=15 // pred_fallthru
        _
      // Predicated region
      $region49: #{_forward_impl.1} parent=15 // pred_check
        %p454 = pneg %p260
      $region50: #{_forward_impl.1} parent=15 // pred_check_branch
        %456 = sbr.rel (%p454) target = $region52
      $region51: #{_forward_impl.1} parent=15 // pred_region
        %p457 = scmp.lt.s32.totalorder %s25, 2
        %s458 = scalar_select %p457, %s25, 2
        %s459 = smul.addr %s458, 64
        %s460 = smul.addr %s459, 4
        %s461 = scalar_lea.vmem %s8, %s460
      $region52: #{_forward_impl.1} parent=15 // pred_fallthru
        _
      // Predicated region
      $region53: #{_forward_impl.1} parent=15 // pred_check
        %p462 = pneg %p286
      $region54: #{_forward_impl.1} parent=15 // pred_check_branch
        %464 = sbr.rel (%p462) target = $region56
      $region55: #{_forward_impl.1} parent=15 // pred_region
        %p465 = scmp.lt.s32.totalorder %s25, 2
        %s466 = scalar_select %p465, %s25, 2
        %s467 = smul.addr %s466, 2
        %s468 = scalar_lea.vmem %s9, %s467
      $region56: #{_forward_impl.1} parent=15 // pred_fallthru
        _
      // Predicated region
      $region57: #{_forward_impl.1} parent=15 // pred_check
        %p469 = pneg %p312
      $region58: #{_forward_impl.1} parent=15 // pred_check_branch
        %471 = sbr.rel (%p469) target = $region60
      $region59: #{_forward_impl.1} parent=15 // pred_region
        %p472 = scmp.lt.s32.totalorder %s25, 2
        %s473 = scalar_select %p472, %s25, 2
        %s474 = smul.addr %s473, 2
        %s475 = scalar_lea.vmem %s10, %s474
      $region60: #{_forward_impl.1} parent=15 // pred_fallthru
        _
      // Predicated region
      $region61: #{_forward_impl.1} parent=15 // pred_check
        %p476 = pneg %p338
      $region62: #{_forward_impl.1} parent=15 // pred_check_branch
        %478 = sbr.rel (%p476) target = $region64
      $region63: #{_forward_impl.1} parent=15 // pred_region
        %p479 = scmp.lt.s32.totalorder %s25, 2
        %s480 = scalar_select %p479, %s25, 2
        %s481 = smul.addr %s480, 2
        %s482 = scalar_lea.vmem %s11, %s481
      $region64: #{_forward_impl.1} parent=15 // pred_fallthru
        _
    $region16: #{_forward_impl.1} parent=5 // pred_fallthru
      _
    %p483 = scmp.le.s32.totalorder 1, %s18
    %p484 = scmp.lt.s32.totalorder %s18, 7
    %p485 = pnand %p483, %p484
    %p486 = pneg %p485
    // Predicated region
    $region65: #{_forward_impl.1} parent=5 // pred_check
      _
    $region66: #{_forward_impl.1} parent=5 // pred_check_branch
      %488 = sbr.rel (%p485) target = $region68
    $region67: #{_forward_impl.1} parent=5 // pred_region
      %s489 = ssub.s32 %s18, 1
      %p490 = scmp.lt.s32.totalorder %s27, 2
      %s491 = scalar_select %p490, %s27, 2
      %p492 = scmp.lt.s32.totalorder %s28, 1
      %s493 = scalar_select %p492, %s28, 1
      %s494 = smul.addr %s493, 64
      %s495 = smul.addr %s491, 128
      %s496 = sadd.s32 %s494, %s495
      %s497 = smul.addr %s496, 8
      %s498 = scalar_lea.vmem %s0, %s497
      %p499 = pneg %p58
      %p500 = pneg %p55
      %p501 = scmp.lt.s32.totalorder %s27, 2
      %s502 = scalar_select %p501, %s27, 2
      %s503 = smul.addr %s502, 2
      %s504 = scalar_lea.vmem %s1, %s503
      %p505 = pneg %p84
      %p506 = pneg %p81
      %p507 = scmp.lt.s32.totalorder %s27, 2
      %s508 = scalar_select %p507, %s27, 2
      %s509 = smul.addr %s508, 2
      %s510 = scalar_lea.vmem %s2, %s509
      %p511 = pneg %p110
      %p512 = pneg %p107
      %p513 = scmp.lt.s32.totalorder %s27, 2
      %s514 = scalar_select %p513, %s27, 2
      %s515 = smul.addr %s514, 2
      %s516 = scalar_lea.vmem %s3, %s515
      %p517 = pneg %p136
      %p518 = pneg %p133
      %p519 = scmp.lt.s32.totalorder %s27, 2
      %s520 = scalar_select %p519, %s27, 2
      %s521 = smul.addr %s520, 64
      %s522 = smul.addr %s521, 4
      %s523 = scalar_lea.vmem %s4, %s522
      %p524 = pneg %p162
      %p525 = pneg %p159
      %p526 = scmp.lt.s32.totalorder %s27, 2
      %s527 = scalar_select %p526, %s27, 2
      %s528 = smul.addr %s527, 2
      %s529 = scalar_lea.vmem %s5, %s528
      %p530 = pneg %p188
      %p531 = pneg %p185
      %p532 = scmp.lt.s32.totalorder %s27, 2
      %s533 = scalar_select %p532, %s27, 2
      %s534 = smul.addr %s533, 64
      %s535 = smul.addr %s534, 4
      %s536 = scalar_lea.vmem %s6, %s535
      %p537 = pneg %p214
      %p538 = pneg %p211
      %p539 = scmp.lt.s32.totalorder %s27, 2
      %s540 = scalar_select %p539, %s27, 2
      %s541 = smul.addr %s540, 2
      %s542 = scalar_lea.vmem %s7, %s541
      %p543 = pneg %p240
      %p544 = pneg %p237
      %p545 = scmp.lt.s32.totalorder %s27, 2
      %s546 = scalar_select %p545, %s27, 2
      %s547 = smul.addr %s546, 64
      %s548 = smul.addr %s547, 4
      %s549 = scalar_lea.vmem %s8, %s548
      %p550 = pneg %p266
      %p551 = pneg %p263
      %p552 = scmp.lt.s32.totalorder %s27, 2
      %s553 = scalar_select %p552, %s27, 2
      %s554 = smul.addr %s553, 2
      %s555 = scalar_lea.vmem %s9, %s554
      %p556 = pneg %p292
      %p557 = pneg %p289
      %p558 = scmp.lt.s32.totalorder %s27, 2
      %s559 = scalar_select %p558, %s27, 2
      %s560 = smul.addr %s559, 2
      %s561 = scalar_lea.vmem %s10, %s560
      %p562 = pneg %p318
      %p563 = pneg %p315
      %p564 = scmp.lt.s32.totalorder %s27, 2
      %s565 = scalar_select %p564, %s27, 2
      %s566 = smul.addr %s565, 2
      %s567 = scalar_lea.vmem %s11, %s566
      %p568 = pneg %p344
      %p569 = pneg %p341
      %p570 = pneg %p372
      %p571 = pneg %p369
      %p572 = scmp.lt.s32.totalorder %s27, 2
      %s573 = scalar_select %p572, %s27, 2
      %p574 = scmp.lt.s32.totalorder %s28, 1
      %s575 = scalar_select %p574, %s28, 1
      %s576 = smul.addr %s575, 2
      %s577 = smul.addr %s573, 4
      %s578 = sadd.s32 %s576, %s577
      %s579 = scalar_lea.vmem %s12, %s578
      %p580 = scmp.lt.s32.totalorder %s27, 2
      %s581 = scalar_select %p580, %s27, 2
      %p582 = scmp.lt.s32.totalorder %s28, 1
      %s583 = scalar_select %p582, %s28, 1
      %s584 = smul.addr %s583, 64
      %s585 = smul.addr %s581, 128
      %s586 = sadd.s32 %s584, %s585
      %s587 = smul.addr %s586, 8
      %s588 = scalar_lea.vmem %s0, %s587
      %p589 = scmp.lt.s32.totalorder %s27, 2
      %s590 = scalar_select %p589, %s27, 2
      %s591 = smul.addr %s590, 2
      %s592 = scalar_lea.vmem %s1, %s591
      %p593 = scmp.lt.s32.totalorder %s27, 2
      %s594 = scalar_select %p593, %s27, 2
      %s595 = smul.addr %s594, 2
      %s596 = scalar_lea.vmem %s2, %s595
      %p597 = scmp.lt.s32.totalorder %s27, 2
      %s598 = scalar_select %p597, %s27, 2
      %s599 = smul.addr %s598, 2
      %s600 = scalar_lea.vmem %s3, %s599
      %p601 = scmp.lt.s32.totalorder %s27, 2
      %s602 = scalar_select %p601, %s27, 2
      %s603 = smul.addr %s602, 64
      %s604 = smul.addr %s603, 4
      %s605 = scalar_lea.vmem %s4, %s604
      %p606 = scmp.lt.s32.totalorder %s27, 2
      %s607 = scalar_select %p606, %s27, 2
      %s608 = smul.addr %s607, 2
      %s609 = scalar_lea.vmem %s5, %s608
      %p610 = scmp.lt.s32.totalorder %s27, 2
      %s611 = scalar_select %p610, %s27, 2
      %s612 = smul.addr %s611, 64
      %s613 = smul.addr %s612, 4
      %s614 = scalar_lea.vmem %s6, %s613
      %p615 = scmp.lt.s32.totalorder %s27, 2
      %s616 = scalar_select %p615, %s27, 2
      %s617 = smul.addr %s616, 2
      %s618 = scalar_lea.vmem %s7, %s617
      %p619 = scmp.lt.s32.totalorder %s27, 2
      %s620 = scalar_select %p619, %s27, 2
      %s621 = smul.addr %s620, 64
      %s622 = smul.addr %s621, 4
      %s623 = scalar_lea.vmem %s8, %s622
      %p624 = scmp.lt.s32.totalorder %s27, 2
      %s625 = scalar_select %p624, %s27, 2
      %s626 = smul.addr %s625, 2
      %s627 = scalar_lea.vmem %s9, %s626
      %p628 = scmp.lt.s32.totalorder %s27, 2
      %s629 = scalar_select %p628, %s27, 2
      %s630 = smul.addr %s629, 2
      %s631 = scalar_lea.vmem %s10, %s630
      %p632 = scmp.lt.s32.totalorder %s27, 2
      %s633 = scalar_select %p632, %s27, 2
      %s634 = smul.addr %s633, 2
      %s635 = scalar_lea.vmem %s11, %s634
      %p636 = scmp.lt.s32.totalorder %s27, 2
      %s637 = scalar_select %p636, %s27, 2
      %p638 = scmp.lt.s32.totalorder %s28, 1
      %s639 = scalar_select %p638, %s28, 1
      %s640 = smul.addr %s639, 2
      %s641 = smul.addr %s637, 4
      %s642 = sadd.s32 %s640, %s641
      %s643 = scalar_lea.vmem %s12, %s642
      %v645 = vld [vmem:[%s588] sm:$0xff]
      %v646 = vld [vmem:[%s588 + $0x8] sm:$0xff]
      %v647 = vld [vmem:[%s588 + $0x10] sm:$0xff]
      %v648 = vld [vmem:[%s588 + $0x18] sm:$0xff]
      %v649 = vld [vmem:[%s588 + $0x20] sm:$0xff]
      %v650 = vld [vmem:[%s588 + $0x28] sm:$0xff]
      %v651 = vld [vmem:[%s588 + $0x30] sm:$0xff]
      %v652 = vld [vmem:[%s588 + $0x38] sm:$0xff]
      %v653 = vld [vmem:[%s588 + $0x40] sm:$0xff]
      %v654 = vld [vmem:[%s588 + $0x48] sm:$0xff]
      %v655 = vld [vmem:[%s588 + $0x50] sm:$0xff]
      %v656 = vld [vmem:[%s588 + $0x58] sm:$0xff]
      %v657 = vld [vmem:[%s588 + $0x60] sm:$0xff]
      %v658 = vld [vmem:[%s588 + $0x68] sm:$0xff]
      %v659 = vld [vmem:[%s588 + $0x70] sm:$0xff]
      %v660 = vld [vmem:[%s588 + $0x78] sm:$0xff]
      %v661 = vld [vmem:[%s588 + $0x80] sm:$0xff]
      %v662 = vld [vmem:[%s588 + $0x88] sm:$0xff]
      %v663 = vld [vmem:[%s588 + $0x90] sm:$0xff]
      %v664 = vld [vmem:[%s588 + $0x98] sm:$0xff]
      %v665 = vld [vmem:[%s588 + $0xa0] sm:$0xff]
      %v666 = vld [vmem:[%s588 + $0xa8] sm:$0xff]
      %v667 = vld [vmem:[%s588 + $0xb0] sm:$0xff]
      %v668 = vld [vmem:[%s588 + $0xb8] sm:$0xff]
      %v669 = vld [vmem:[%s588 + $0xc0] sm:$0xff]
      %v670 = vld [vmem:[%s588 + $0xc8] sm:$0xff]
      %v671 = vld [vmem:[%s588 + $0xd0] sm:$0xff]
      %v672 = vld [vmem:[%s588 + $0xd8] sm:$0xff]
      %v673 = vld [vmem:[%s588 + $0xe0] sm:$0xff]
      %v674 = vld [vmem:[%s588 + $0xe8] sm:$0xff]
      %v675 = vld [vmem:[%s588 + $0xf0] sm:$0xff]
      %v676 = vld [vmem:[%s588 + $0xf8] sm:$0xff]
      %v677 = vld [vmem:[%s588 + $0x100] sm:$0xff]
      %v678 = vld [vmem:[%s588 + $0x108] sm:$0xff]
      %v679 = vld [vmem:[%s588 + $0x110] sm:$0xff]
      %v680 = vld [vmem:[%s588 + $0x118] sm:$0xff]
      %v681 = vld [vmem:[%s588 + $0x120] sm:$0xff]
      %v682 = vld [vmem:[%s588 + $0x128] sm:$0xff]
      %v683 = vld [vmem:[%s588 + $0x130] sm:$0xff]
      %v684 = vld [vmem:[%s588 + $0x138] sm:$0xff]
      %v685 = vld [vmem:[%s588 + $0x140] sm:$0xff]
      %v686 = vld [vmem:[%s588 + $0x148] sm:$0xff]
      %v687 = vld [vmem:[%s588 + $0x150] sm:$0xff]
      %v688 = vld [vmem:[%s588 + $0x158] sm:$0xff]
      %v689 = vld [vmem:[%s588 + $0x160] sm:$0xff]
      %v690 = vld [vmem:[%s588 + $0x168] sm:$0xff]
      %v691 = vld [vmem:[%s588 + $0x170] sm:$0xff]
      %v692 = vld [vmem:[%s588 + $0x178] sm:$0xff]
      %v693 = vld [vmem:[%s588 + $0x180] sm:$0xff]
      %v694 = vld [vmem:[%s588 + $0x188] sm:$0xff]
      %v695 = vld [vmem:[%s588 + $0x190] sm:$0xff]
      %v696 = vld [vmem:[%s588 + $0x198] sm:$0xff]
      %v697 = vld [vmem:[%s588 + $0x1a0] sm:$0xff]
      %v698 = vld [vmem:[%s588 + $0x1a8] sm:$0xff]
      %v699 = vld [vmem:[%s588 + $0x1b0] sm:$0xff]
      %v700 = vld [vmem:[%s588 + $0x1b8] sm:$0xff]
      %v701 = vld [vmem:[%s588 + $0x1c0] sm:$0xff]
      %v702 = vld [vmem:[%s588 + $0x1c8] sm:$0xff]
      %v703 = vld [vmem:[%s588 + $0x1d0] sm:$0xff]
      %v704 = vld [vmem:[%s588 + $0x1d8] sm:$0xff]
      %v705 = vld [vmem:[%s588 + $0x1e0] sm:$0xff]
      %v706 = vld [vmem:[%s588 + $0x1e8] sm:$0xff]
      %v707 = vld [vmem:[%s588 + $0x1f0] sm:$0xff]
      %v708 = vld [vmem:[%s588 + $0x1f8] sm:$0xff]
      %v709 = vld [vmem:[%s596] sm:$0x3]
      %v710 = vld [vmem:[%s600] sm:$0x3]
      %v711 = vadd.f32 %v645, %v646
      %712 = vadd.xlane.f32.xlu0 %v711
      %v713 = vpop.xlane.xlu0 %712
      %v714 = vadd.f32 %v647, %v648
      %715 = vadd.xlane.f32.xlu0 %v714
      %v716 = vpop.xlane.xlu0 %715
      %v717 = vadd.f32 %v649, %v650
      %718 = vadd.xlane.f32.xlu0 %v717
      %v719 = vpop.xlane.xlu0 %718
      %v720 = vadd.f32 %v651, %v652
      %721 = vadd.xlane.f32.xlu0 %v720
      %v722 = vpop.xlane.xlu0 %721
      %v723 = vadd.f32 %v653, %v654
      %724 = vadd.xlane.f32.xlu0 %v723
      %v725 = vpop.xlane.xlu0 %724
      %v726 = vadd.f32 %v655, %v656
      %727 = vadd.xlane.f32.xlu0 %v726
      %v728 = vpop.xlane.xlu0 %727
      %v729 = vadd.f32 %v657, %v658
      %730 = vadd.xlane.f32.xlu0 %v729
      %v731 = vpop.xlane.xlu0 %730
      %v732 = vadd.f32 %v659, %v660
      %733 = vadd.xlane.f32.xlu0 %v732
      %v734 = vpop.xlane.xlu0 %733
      %v735 = vadd.f32 %v661, %v662
      %736 = vadd.xlane.f32.xlu0 %v735
      %v737 = vpop.xlane.xlu0 %736
      %v738 = vadd.f32 %v663, %v664
      %739 = vadd.xlane.f32.xlu0 %v738
      %v740 = vpop.xlane.xlu0 %739
      %v741 = vadd.f32 %v665, %v666
      %742 = vadd.xlane.f32.xlu0 %v741
      %v743 = vpop.xlane.xlu0 %742
      %v744 = vadd.f32 %v667, %v668
      %745 = vadd.xlane.f32.xlu0 %v744
      %v746 = vpop.xlane.xlu0 %745
      %v747 = vadd.f32 %v669, %v670
      %748 = vadd.xlane.f32.xlu0 %v747
      %v749 = vpop.xlane.xlu0 %748
      %v750 = vadd.f32 %v671, %v672
      %751 = vadd.xlane.f32.xlu0 %v750
      %v752 = vpop.xlane.xlu0 %751
      %v753 = vadd.f32 %v673, %v674
      %754 = vadd.xlane.f32.xlu0 %v753
      %v755 = vpop.xlane.xlu0 %754
      %v756 = vadd.f32 %v675, %v676
      %757 = vadd.xlane.f32.xlu0 %v756
      %v758 = vpop.xlane.xlu0 %757
      %v759 = vadd.f32 %v677, %v678
      %760 = vadd.xlane.f32.xlu0 %v759
      %v761 = vpop.xlane.xlu0 %760
      %v762 = vadd.f32 %v679, %v680
      %763 = vadd.xlane.f32.xlu0 %v762
      %v764 = vpop.xlane.xlu0 %763
      %v765 = vadd.f32 %v681, %v682
      %766 = vadd.xlane.f32.xlu0 %v765
      %v767 = vpop.xlane.xlu0 %766
      %v768 = vadd.f32 %v683, %v684
      %769 = vadd.xlane.f32.xlu0 %v768
      %v770 = vpop.xlane.xlu0 %769
      %v771 = vadd.f32 %v685, %v686
      %772 = vadd.xlane.f32.xlu0 %v771
      %v773 = vpop.xlane.xlu0 %772
      %v774 = vadd.f32 %v687, %v688
      %775 = vadd.xlane.f32.xlu0 %v774
      %v776 = vpop.xlane.xlu0 %775
      %v777 = vadd.f32 %v689, %v690
      %778 = vadd.xlane.f32.xlu0 %v777
      %v779 = vpop.xlane.xlu0 %778
      %v780 = vadd.f32 %v691, %v692
      %781 = vadd.xlane.f32.xlu0 %v780
      %v782 = vpop.xlane.xlu0 %781
      %v783 = vadd.f32 %v693, %v694
      %784 = vadd.xlane.f32.xlu0 %v783
      %v785 = vpop.xlane.xlu0 %784
      %v786 = vadd.f32 %v695, %v696
      %787 = vadd.xlane.f32.xlu0 %v786
      %v788 = vpop.xlane.xlu0 %787
      %v789 = vadd.f32 %v697, %v698
      %790 = vadd.xlane.f32.xlu0 %v789
      %v791 = vpop.xlane.xlu0 %790
      %v792 = vadd.f32 %v699, %v700
      %793 = vadd.xlane.f32.xlu0 %v792
      %v794 = vpop.xlane.xlu0 %793
      %v795 = vadd.f32 %v701, %v702
      %796 = vadd.xlane.f32.xlu0 %v795
      %v797 = vpop.xlane.xlu0 %796
      %v798 = vadd.f32 %v703, %v704
      %799 = vadd.xlane.f32.xlu0 %v798
      %v800 = vpop.xlane.xlu0 %799
      %v801 = vadd.f32 %v705, %v706
      %802 = vadd.xlane.f32.xlu0 %v801
      %v803 = vpop.xlane.xlu0 %802
      %v804 = vadd.f32 %v707, %v708
      %805 = vadd.xlane.f32.xlu0 %v804
      %v806 = vpop.xlane.xlu0 %805
      %v807 = vrcp.pop 256.0
      %v808 = vmul.f32 %v713, %v807
      %v809 = vmul.f32 %v716, %v807
      %v810 = vmul.f32 %v719, %v807
      %v811 = vmul.f32 %v722, %v807
      %v812 = vmul.f32 %v725, %v807
      %v813 = vmul.f32 %v728, %v807
      %v814 = vmul.f32 %v731, %v807
      %v815 = vmul.f32 %v734, %v807
      %v816 = vmul.f32 %v737, %v807
      %v817 = vmul.f32 %v740, %v807
      %v818 = vmul.f32 %v743, %v807
      %v819 = vmul.f32 %v746, %v807
      %v820 = vmul.f32 %v749, %v807
      %v821 = vmul.f32 %v752, %v807
      %v822 = vmul.f32 %v755, %v807
      %v823 = vmul.f32 %v758, %v807
      %v824 = vmul.f32 %v761, %v807
      %v825 = vmul.f32 %v764, %v807
      %v826 = vmul.f32 %v767, %v807
      %v827 = vmul.f32 %v770, %v807
      %v828 = vmul.f32 %v773, %v807
      %v829 = vmul.f32 %v776, %v807
      %v830 = vmul.f32 %v779, %v807
      %v831 = vmul.f32 %v782, %v807
      %v832 = vmul.f32 %v785, %v807
      %v833 = vmul.f32 %v788, %v807
      %v834 = vmul.f32 %v791, %v807
      %v835 = vmul.f32 %v794, %v807
      %v836 = vmul.f32 %v797, %v807
      %v837 = vmul.f32 %v800, %v807
      %v838 = vmul.f32 %v803, %v807
      %v839 = vmul.f32 %v806, %v807
      %v840 = vsub.f32 %v645, %v808
      %v841 = vsub.f32 %v646, %v808
      %v842 = vsub.f32 %v647, %v809
      %v843 = vsub.f32 %v648, %v809
      %v844 = vsub.f32 %v649, %v810
      %v845 = vsub.f32 %v650, %v810
      %v846 = vsub.f32 %v651, %v811
      %v847 = vsub.f32 %v652, %v811
      %v848 = vsub.f32 %v653, %v812
      %v849 = vsub.f32 %v654, %v812
      %v850 = vsub.f32 %v655, %v813
      %v851 = vsub.f32 %v656, %v813
      %v852 = vsub.f32 %v657, %v814
      %v853 = vsub.f32 %v658, %v814
      %v854 = vsub.f32 %v659, %v815
      %v855 = vsub.f32 %v660, %v815
      %v856 = vsub.f32 %v661, %v816
      %v857 = vsub.f32 %v662, %v816
      %v858 = vsub.f32 %v663, %v817
      %v859 = vsub.f32 %v664, %v817
      %v860 = vsub.f32 %v665, %v818
      %v861 = vsub.f32 %v666, %v818
      %v862 = vsub.f32 %v667, %v819
      %v863 = vsub.f32 %v668, %v819
      %v864 = vsub.f32 %v669, %v820
      %v865 = vsub.f32 %v670, %v820
      %v866 = vsub.f32 %v671, %v821
      %v867 = vsub.f32 %v672, %v821
      %v868 = vsub.f32 %v673, %v822
      %v869 = vsub.f32 %v674, %v822
      %v870 = vsub.f32 %v675, %v823
      %v871 = vsub.f32 %v676, %v823
      %v872 = vsub.f32 %v677, %v824
      %v873 = vsub.f32 %v678, %v824
      %v874 = vsub.f32 %v679, %v825
      %v875 = vsub.f32 %v680, %v825
      %v876 = vsub.f32 %v681, %v826
      %v877 = vsub.f32 %v682, %v826
      %v878 = vsub.f32 %v683, %v827
      %v879 = vsub.f32 %v684, %v827
      %v880 = vsub.f32 %v685, %v828
      %v881 = vsub.f32 %v686, %v828
      %v882 = vsub.f32 %v687, %v829
      %v883 = vsub.f32 %v688, %v829
      %v884 = vsub.f32 %v689, %v830
      %v885 = vsub.f32 %v690, %v830
      %v886 = vsub.f32 %v691, %v831
      %v887 = vsub.f32 %v692, %v831
      %v888 = vsub.f32 %v693, %v832
      %v889 = vsub.f32 %v694, %v832
      %v890 = vsub.f32 %v695, %v833
      %v891 = vsub.f32 %v696, %v833
      %v892 = vsub.f32 %v697, %v834
      %v893 = vsub.f32 %v698, %v834
      %v894 = vsub.f32 %v699, %v835
      %v895 = vsub.f32 %v700, %v835
      %v896 = vsub.f32 %v701, %v836
      %v897 = vsub.f32 %v702, %v836
      %v898 = vsub.f32 %v703, %v837
      %v899 = vsub.f32 %v704, %v837
      %v900 = vsub.f32 %v705, %v838
      %v901 = vsub.f32 %v706, %v838
      %v902 = vsub.f32 %v707, %v839
      %v903 = vsub.f32 %v708, %v839
      %v904 = vmul.f32 %v840, %v840
      %v905 = vmul.f32 %v841, %v841
      %v906 = vmul.f32 %v842, %v842
      %v907 = vmul.f32 %v843, %v843
      %v908 = vmul.f32 %v844, %v844
      %v909 = vmul.f32 %v845, %v845
      %v910 = vmul.f32 %v846, %v846
      %v911 = vmul.f32 %v847, %v847
      %v912 = vmul.f32 %v848, %v848
      %v913 = vmul.f32 %v849, %v849
      %v914 = vmul.f32 %v850, %v850
      %v915 = vmul.f32 %v851, %v851
      %v916 = vmul.f32 %v852, %v852
      %v917 = vmul.f32 %v853, %v853
      %v918 = vmul.f32 %v854, %v854
      %v919 = vmul.f32 %v855, %v855
      %v920 = vmul.f32 %v856, %v856
      %v921 = vmul.f32 %v857, %v857
      %v922 = vmul.f32 %v858, %v858
      %v923 = vmul.f32 %v859, %v859
      %v924 = vmul.f32 %v860, %v860
      %v925 = vmul.f32 %v861, %v861
      %v926 = vmul.f32 %v862, %v862
      %v927 = vmul.f32 %v863, %v863
      %v928 = vmul.f32 %v864, %v864
      %v929 = vmul.f32 %v865, %v865
      %v930 = vmul.f32 %v866, %v866
      %v931 = vmul.f32 %v867, %v867
      %v932 = vmul.f32 %v868, %v868
      %v933 = vmul.f32 %v869, %v869
      %v934 = vmul.f32 %v870, %v870
      %v935 = vmul.f32 %v871, %v871
      %v936 = vmul.f32 %v872, %v872
      %v937 = vmul.f32 %v873, %v873
      %v938 = vmul.f32 %v874, %v874
      %v939 = vmul.f32 %v875, %v875
      %v940 = vmul.f32 %v876, %v876
      %v941 = vmul.f32 %v877, %v877
      %v942 = vmul.f32 %v878, %v878
      %v943 = vmul.f32 %v879, %v879
      %v944 = vmul.f32 %v880, %v880
      %v945 = vmul.f32 %v881, %v881
      %v946 = vmul.f32 %v882, %v882
      %v947 = vmul.f32 %v883, %v883
      %v948 = vmul.f32 %v884, %v884
      %v949 = vmul.f32 %v885, %v885
      %v950 = vmul.f32 %v886, %v886
      %v951 = vmul.f32 %v887, %v887
      %v952 = vmul.f32 %v888, %v888
      %v953 = vmul.f32 %v889, %v889
      %v954 = vmul.f32 %v890, %v890
      %v955 = vmul.f32 %v891, %v891
      %v956 = vmul.f32 %v892, %v892
      %v957 = vmul.f32 %v893, %v893
      %v958 = vmul.f32 %v894, %v894
      %v959 = vmul.f32 %v895, %v895
      %v960 = vmul.f32 %v896, %v896
      %v961 = vmul.f32 %v897, %v897
      %v962 = vmul.f32 %v898, %v898
      %v963 = vmul.f32 %v899, %v899
      %v964 = vmul.f32 %v900, %v900
      %v965 = vmul.f32 %v901, %v901
      %v966 = vmul.f32 %v902, %v902
      %v967 = vmul.f32 %v903, %v903
      %v968 = vadd.f32 %v904, %v905
      %969 = vadd.xlane.f32.xlu0 %v968
      %v970 = vpop.xlane.xlu0 %969
      %v971 = vadd.f32 %v906, %v907
      %972 = vadd.xlane.f32.xlu0 %v971
      %v973 = vpop.xlane.xlu0 %972
      %v974 = vadd.f32 %v908, %v909
      %975 = vadd.xlane.f32.xlu0 %v974
      %v976 = vpop.xlane.xlu0 %975
      %v977 = vadd.f32 %v910, %v911
      %978 = vadd.xlane.f32.xlu0 %v977
      %v979 = vpop.xlane.xlu0 %978
      %v980 = vadd.f32 %v912, %v913
      %981 = vadd.xlane.f32.xlu0 %v980
      %v982 = vpop.xlane.xlu0 %981
      %v983 = vadd.f32 %v914, %v915
      %984 = vadd.xlane.f32.xlu0 %v983
      %v985 = vpop.xlane.xlu0 %984
      %v986 = vadd.f32 %v916, %v917
      %987 = vadd.xlane.f32.xlu0 %v986
      %v988 = vpop.xlane.xlu0 %987
      %v989 = vadd.f32 %v918, %v919
      %990 = vadd.xlane.f32.xlu0 %v989
      %v991 = vpop.xlane.xlu0 %990
      %v992 = vadd.f32 %v920, %v921
      %993 = vadd.xlane.f32.xlu0 %v992
      %v994 = vpop.xlane.xlu0 %993
      %v995 = vadd.f32 %v922, %v923
      %996 = vadd.xlane.f32.xlu0 %v995
      %v997 = vpop.xlane.xlu0 %996
      %v998 = vadd.f32 %v924, %v925
      %999 = vadd.xlane.f32.xlu0 %v998
      %v1000 = vpop.xlane.xlu0 %999
      %v1001 = vadd.f32 %v926, %v927
      %1002 = vadd.xlane.f32.xlu0 %v1001
      %v1003 = vpop.xlane.xlu0 %1002
      %v1004 = vadd.f32 %v928, %v929
      %1005 = vadd.xlane.f32.xlu0 %v1004
      %v1006 = vpop.xlane.xlu0 %1005
      %v1007 = vadd.f32 %v930, %v931
      %1008 = vadd.xlane.f32.xlu0 %v1007
      %v1009 = vpop.xlane.xlu0 %1008
      %v1010 = vadd.f32 %v932, %v933
      %1011 = vadd.xlane.f32.xlu0 %v1010
      %v1012 = vpop.xlane.xlu0 %1011
      %v1013 = vadd.f32 %v934, %v935
      %1014 = vadd.xlane.f32.xlu0 %v1013
      %v1015 = vpop.xlane.xlu0 %1014
      %v1016 = vadd.f32 %v936, %v937
      %1017 = vadd.xlane.f32.xlu0 %v1016
      %v1018 = vpop.xlane.xlu0 %1017
      %v1019 = vadd.f32 %v938, %v939
      %1020 = vadd.xlane.f32.xlu0 %v1019
      %v1021 = vpop.xlane.xlu0 %1020
      %v1022 = vadd.f32 %v940, %v941
      %1023 = vadd.xlane.f32.xlu0 %v1022
      %v1024 = vpop.xlane.xlu0 %1023
      %v1025 = vadd.f32 %v942, %v943
      %1026 = vadd.xlane.f32.xlu0 %v1025
      %v1027 = vpop.xlane.xlu0 %1026
      %v1028 = vadd.f32 %v944, %v945
      %1029 = vadd.xlane.f32.xlu0 %v1028
      %v1030 = vpop.xlane.xlu0 %1029
      %v1031 = vadd.f32 %v946, %v947
      %1032 = vadd.xlane.f32.xlu0 %v1031
      %v1033 = vpop.xlane.xlu0 %1032
      %v1034 = vadd.f32 %v948, %v949
      %1035 = vadd.xlane.f32.xlu0 %v1034
      %v1036 = vpop.xlane.xlu0 %1035
      %v1037 = vadd.f32 %v950, %v951
      %1038 = vadd.xlane.f32.xlu0 %v1037
      %v1039 = vpop.xlane.xlu0 %1038
      %v1040 = vadd.f32 %v952, %v953
      %1041 = vadd.xlane.f32.xlu0 %v1040
      %v1042 = vpop.xlane.xlu0 %1041
      %v1043 = vadd.f32 %v954, %v955
      %1044 = vadd.xlane.f32.xlu0 %v1043
      %v1045 = vpop.xlane.xlu0 %1044
      %v1046 = vadd.f32 %v956, %v957
      %1047 = vadd.xlane.f32.xlu0 %v1046
      %v1048 = vpop.xlane.xlu0 %1047
      %v1049 = vadd.f32 %v958, %v959
      %1050 = vadd.xlane.f32.xlu0 %v1049
      %v1051 = vpop.xlane.xlu0 %1050
      %v1052 = vadd.f32 %v960, %v961
      %1053 = vadd.xlane.f32.xlu0 %v1052
      %v1054 = vpop.xlane.xlu0 %1053
      %v1055 = vadd.f32 %v962, %v963
      %1056 = vadd.xlane.f32.xlu0 %v1055
      %v1057 = vpop.xlane.xlu0 %1056
      %v1058 = vadd.f32 %v964, %v965
      %1059 = vadd.xlane.f32.xlu0 %v1058
      %v1060 = vpop.xlane.xlu0 %1059
      %v1061 = vadd.f32 %v966, %v967
      %1062 = vadd.xlane.f32.xlu0 %v1061
      %v1063 = vpop.xlane.xlu0 %1062
      %v1064 = vmul.f32 %v970, %v807
      %v1065 = vmul.f32 %v973, %v807
      %v1066 = vmul.f32 %v976, %v807
      %v1067 = vmul.f32 %v979, %v807
      %v1068 = vmul.f32 %v982, %v807
      %v1069 = vmul.f32 %v985, %v807
      %v1070 = vmul.f32 %v988, %v807
      %v1071 = vmul.f32 %v991, %v807
      %v1072 = vmul.f32 %v994, %v807
      %v1073 = vmul.f32 %v997, %v807
      %v1074 = vmul.f32 %v1000, %v807
      %v1075 = vmul.f32 %v1003, %v807
      %v1076 = vmul.f32 %v1006, %v807
      %v1077 = vmul.f32 %v1009, %v807
      %v1078 = vmul.f32 %v1012, %v807
      %v1079 = vmul.f32 %v1015, %v807
      %v1080 = vmul.f32 %v1018, %v807
      %v1081 = vmul.f32 %v1021, %v807
      %v1082 = vmul.f32 %v1024, %v807
      %v1083 = vmul.f32 %v1027, %v807
      %v1084 = vmul.f32 %v1030, %v807
      %v1085 = vmul.f32 %v1033, %v807
      %v1086 = vmul.f32 %v1036, %v807
      %v1087 = vmul.f32 %v1039, %v807
      %v1088 = vmul.f32 %v1042, %v807
      %v1089 = vmul.f32 %v1045, %v807
      %v1090 = vmul.f32 %v1048, %v807
      %v1091 = vmul.f32 %v1051, %v807
      %v1092 = vmul.f32 %v1054, %v807
      %v1093 = vmul.f32 %v1057, %v807
      %v1094 = vmul.f32 %v1060, %v807
      %v1095 = vmul.f32 %v1063, %v807
      %v1096 = vadd.f32 %v1064, 1e-06
      %v1097 = vadd.f32 %v1065, 1e-06
      %v1098 = vadd.f32 %v1066, 1e-06
      %v1099 = vadd.f32 %v1067, 1e-06
      %v1100 = vadd.f32 %v1068, 1e-06
      %v1101 = vadd.f32 %v1069, 1e-06
      %v1102 = vadd.f32 %v1070, 1e-06
      %v1103 = vadd.f32 %v1071, 1e-06
      %v1104 = vadd.f32 %v1072, 1e-06
      %v1105 = vadd.f32 %v1073, 1e-06
      %v1106 = vadd.f32 %v1074, 1e-06
      %v1107 = vadd.f32 %v1075, 1e-06
      %v1108 = vadd.f32 %v1076, 1e-06
      %v1109 = vadd.f32 %v1077, 1e-06
      %v1110 = vadd.f32 %v1078, 1e-06
      %v1111 = vadd.f32 %v1079, 1e-06
      %v1112 = vadd.f32 %v1080, 1e-06
      %v1113 = vadd.f32 %v1081, 1e-06
      %v1114 = vadd.f32 %v1082, 1e-06
      %v1115 = vadd.f32 %v1083, 1e-06
      %v1116 = vadd.f32 %v1084, 1e-06
      %v1117 = vadd.f32 %v1085, 1e-06
      %v1118 = vadd.f32 %v1086, 1e-06
      %v1119 = vadd.f32 %v1087, 1e-06
      %v1120 = vadd.f32 %v1088, 1e-06
      %v1121 = vadd.f32 %v1089, 1e-06
      %v1122 = vadd.f32 %v1090, 1e-06
      %v1123 = vadd.f32 %v1091, 1e-06
      %v1124 = vadd.f32 %v1092, 1e-06
      %v1125 = vadd.f32 %v1093, 1e-06
      %v1126 = vadd.f32 %v1094, 1e-06
      %v1127 = vadd.f32 %v1095, 1e-06
      %v1128 = vrsqrt.pop %v1096
      %v1129 = vrsqrt.pop %v1097
      %v1130 = vrsqrt.pop %v1098
      %v1131 = vrsqrt.pop %v1099
      %v1132 = vrsqrt.pop %v1100
      %v1133 = vrsqrt.pop %v1101
      %v1134 = vrsqrt.pop %v1102
      %v1135 = vrsqrt.pop %v1103
      %v1136 = vrsqrt.pop %v1104
      %v1137 = vrsqrt.pop %v1105
      %v1138 = vrsqrt.pop %v1106
      %v1139 = vrsqrt.pop %v1107
      %v1140 = vrsqrt.pop %v1108
      %v1141 = vrsqrt.pop %v1109
      %v1142 = vrsqrt.pop %v1110
      %v1143 = vrsqrt.pop %v1111
      %v1144 = vrsqrt.pop %v1112
      %v1145 = vrsqrt.pop %v1113
      %v1146 = vrsqrt.pop %v1114
      %v1147 = vrsqrt.pop %v1115
      %v1148 = vrsqrt.pop %v1116
      %v1149 = vrsqrt.pop %v1117
      %v1150 = vrsqrt.pop %v1118
      %v1151 = vrsqrt.pop %v1119
      %v1152 = vrsqrt.pop %v1120
      %v1153 = vrsqrt.pop %v1121
      %v1154 = vrsqrt.pop %v1122
      %v1155 = vrsqrt.pop %v1123
      %v1156 = vrsqrt.pop %v1124
      %v1157 = vrsqrt.pop %v1125
      %v1158 = vrsqrt.pop %v1126
      %v1159 = vrsqrt.pop %v1127
      %v1160 = vmul.f32 %v840, %v1128
      %v1161 = vmul.f32 %v841, %v1128
      %v1162 = vmul.f32 %v842, %v1129
      %v1163 = vmul.f32 %v843, %v1129
      %v1164 = vmul.f32 %v844, %v1130
      %v1165 = vmul.f32 %v845, %v1130
      %v1166 = vmul.f32 %v846, %v1131
      %v1167 = vmul.f32 %v847, %v1131
      %v1168 = vmul.f32 %v848, %v1132
      %v1169 = vmul.f32 %v849, %v1132
      %v1170 = vmul.f32 %v850, %v1133
      %v1171 = vmul.f32 %v851, %v1133
      %v1172 = vmul.f32 %v852, %v1134
      %v1173 = vmul.f32 %v853, %v1134
      %v1174 = vmul.f32 %v854, %v1135
      %v1175 = vmul.f32 %v855, %v1135
      %v1176 = vmul.f32 %v856, %v1136
      %v1177 = vmul.f32 %v857, %v1136
      %v1178 = vmul.f32 %v858, %v1137
      %v1179 = vmul.f32 %v859, %v1137
      %v1180 = vmul.f32 %v860, %v1138
      %v1181 = vmul.f32 %v861, %v1138
      %v1182 = vmul.f32 %v862, %v1139
      %v1183 = vmul.f32 %v863, %v1139
      %v1184 = vmul.f32 %v864, %v1140
      %v1185 = vmul.f32 %v865, %v1140
      %v1186 = vmul.f32 %v866, %v1141
      %v1187 = vmul.f32 %v867, %v1141
      %v1188 = vmul.f32 %v868, %v1142
      %v1189 = vmul.f32 %v869, %v1142
      %v1190 = vmul.f32 %v870, %v1143
      %v1191 = vmul.f32 %v871, %v1143
      %v1192 = vmul.f32 %v872, %v1144
      %v1193 = vmul.f32 %v873, %v1144
      %v1194 = vmul.f32 %v874, %v1145
      %v1195 = vmul.f32 %v875, %v1145
      %v1196 = vmul.f32 %v876, %v1146
      %v1197 = vmul.f32 %v877, %v1146
      %v1198 = vmul.f32 %v878, %v1147
      %v1199 = vmul.f32 %v879, %v1147
      %v1200 = vmul.f32 %v880, %v1148
      %v1201 = vmul.f32 %v881, %v1148
      %v1202 = vmul.f32 %v882, %v1149
      %v1203 = vmul.f32 %v883, %v1149
      %v1204 = vmul.f32 %v884, %v1150
      %v1205 = vmul.f32 %v885, %v1150
      %v1206 = vmul.f32 %v886, %v1151
      %v1207 = vmul.f32 %v887, %v1151
      %v1208 = vmul.f32 %v888, %v1152
      %v1209 = vmul.f32 %v889, %v1152
      %v1210 = vmul.f32 %v890, %v1153
      %v1211 = vmul.f32 %v891, %v1153
      %v1212 = vmul.f32 %v892, %v1154
      %v1213 = vmul.f32 %v893, %v1154
      %v1214 = vmul.f32 %v894, %v1155
      %v1215 = vmul.f32 %v895, %v1155
      %v1216 = vmul.f32 %v896, %v1156
      %v1217 = vmul.f32 %v897, %v1156
      %v1218 = vmul.f32 %v898, %v1157
      %v1219 = vmul.f32 %v899, %v1157
      %v1220 = vmul.f32 %v900, %v1158
      %v1221 = vmul.f32 %v901, %v1158
      %v1222 = vmul.f32 %v902, %v1159
      %v1223 = vmul.f32 %v903, %v1159
      %v1225 = vlaneseq
      %v1226 = vshrl.u32 %v1225, 7
      %v1227 = vsub.s32 0, %v1226
      %v1228 = vrot.slane %v709, %v1227
      %v1229 = vlaneseq
      %v1230 = vshrl.u32 %v1229, 7
      %v1231 = vsub.s32 1, %v1230
      %v1232 = vrot.slane %v709, %v1231
      %v1235 = vmul.f32 %v1160, %v1228
      %v1236 = vmul.f32 %v1161, %v1232
      %v1237 = vmul.f32 %v1162, %v1228
      %v1238 = vmul.f32 %v1163, %v1232
      %v1239 = vmul.f32 %v1164, %v1228
      %v1240 = vmul.f32 %v1165, %v1232
      %v1241 = vmul.f32 %v1166, %v1228
      %v1242 = vmul.f32 %v1167, %v1232
      %v1243 = vmul.f32 %v1168, %v1228
      %v1244 = vmul.f32 %v1169, %v1232
      %v1245 = vmul.f32 %v1170, %v1228
      %v1246 = vmul.f32 %v1171, %v1232
      %v1247 = vmul.f32 %v1172, %v1228
      %v1248 = vmul.f32 %v1173, %v1232
      %v1249 = vmul.f32 %v1174, %v1228
      %v1250 = vmul.f32 %v1175, %v1232
      %v1251 = vmul.f32 %v1176, %v1228
      %v1252 = vmul.f32 %v1177, %v1232
      %v1253 = vmul.f32 %v1178, %v1228
      %v1254 = vmul.f32 %v1179, %v1232
      %v1255 = vmul.f32 %v1180, %v1228
      %v1256 = vmul.f32 %v1181, %v1232
      %v1257 = vmul.f32 %v1182, %v1228
      %v1258 = vmul.f32 %v1183, %v1232
      %v1259 = vmul.f32 %v1184, %v1228
      %v1260 = vmul.f32 %v1185, %v1232
      %v1261 = vmul.f32 %v1186, %v1228
      %v1262 = vmul.f32 %v1187, %v1232
      %v1263 = vmul.f32 %v1188, %v1228
      %v1264 = vmul.f32 %v1189, %v1232
      %v1265 = vmul.f32 %v1190, %v1228
      %v1266 = vmul.f32 %v1191, %v1232
      %v1267 = vmul.f32 %v1192, %v1228
      %v1268 = vmul.f32 %v1193, %v1232
      %v1269 = vmul.f32 %v1194, %v1228
      %v1270 = vmul.f32 %v1195, %v1232
      %v1271 = vmul.f32 %v1196, %v1228
      %v1272 = vmul.f32 %v1197, %v1232
      %v1273 = vmul.f32 %v1198, %v1228
      %v1274 = vmul.f32 %v1199, %v1232
      %v1275 = vmul.f32 %v1200, %v1228
      %v1276 = vmul.f32 %v1201, %v1232
      %v1277 = vmul.f32 %v1202, %v1228
      %v1278 = vmul.f32 %v1203, %v1232
      %v1279 = vmul.f32 %v1204, %v1228
      %v1280 = vmul.f32 %v1205, %v1232
      %v1281 = vmul.f32 %v1206, %v1228
      %v1282 = vmul.f32 %v1207, %v1232
      %v1283 = vmul.f32 %v1208, %v1228
      %v1284 = vmul.f32 %v1209, %v1232
      %v1285 = vmul.f32 %v1210, %v1228
      %v1286 = vmul.f32 %v1211, %v1232
      %v1287 = vmul.f32 %v1212, %v1228
      %v1288 = vmul.f32 %v1213, %v1232
      %v1289 = vmul.f32 %v1214, %v1228
      %v1290 = vmul.f32 %v1215, %v1232
      %v1291 = vmul.f32 %v1216, %v1228
      %v1292 = vmul.f32 %v1217, %v1232
      %v1293 = vmul.f32 %v1218, %v1228
      %v1294 = vmul.f32 %v1219, %v1232
      %v1295 = vmul.f32 %v1220, %v1228
      %v1296 = vmul.f32 %v1221, %v1232
      %v1297 = vmul.f32 %v1222, %v1228
      %v1298 = vmul.f32 %v1223, %v1232
      %v1300 = vlaneseq
      %v1301 = vshrl.u32 %v1300, 7
      %v1302 = vsub.s32 0, %v1301
      %v1303 = vrot.slane %v710, %v1302
      %v1304 = vlaneseq
      %v1305 = vshrl.u32 %v1304, 7
      %v1306 = vsub.s32 1, %v1305
      %v1307 = vrot.slane %v710, %v1306
      %v1310 = vadd.f32 %v1235, %v1303
      %v1311 = vadd.f32 %v1236, %v1307
      %v1312 = vadd.f32 %v1237, %v1303
      %v1313 = vadd.f32 %v1238, %v1307
      %v1314 = vadd.f32 %v1239, %v1303
      %v1315 = vadd.f32 %v1240, %v1307
      %v1316 = vadd.f32 %v1241, %v1303
      %v1317 = vadd.f32 %v1242, %v1307
      %v1318 = vadd.f32 %v1243, %v1303
      %v1319 = vadd.f32 %v1244, %v1307
      %v1320 = vadd.f32 %v1245, %v1303
      %v1321 = vadd.f32 %v1246, %v1307
      %v1322 = vadd.f32 %v1247, %v1303
      %v1323 = vadd.f32 %v1248, %v1307
      %v1324 = vadd.f32 %v1249, %v1303
      %v1325 = vadd.f32 %v1250, %v1307
      %v1326 = vadd.f32 %v1251, %v1303
      %v1327 = vadd.f32 %v1252, %v1307
      %v1328 = vadd.f32 %v1253, %v1303
      %v1329 = vadd.f32 %v1254, %v1307
      %v1330 = vadd.f32 %v1255, %v1303
      %v1331 = vadd.f32 %v1256, %v1307
      %v1332 = vadd.f32 %v1257, %v1303
      %v1333 = vadd.f32 %v1258, %v1307
      %v1334 = vadd.f32 %v1259, %v1303
      %v1335 = vadd.f32 %v1260, %v1307
      %v1336 = vadd.f32 %v1261, %v1303
      %v1337 = vadd.f32 %v1262, %v1307
      %v1338 = vadd.f32 %v1263, %v1303
      %v1339 = vadd.f32 %v1264, %v1307
      %v1340 = vadd.f32 %v1265, %v1303
      %v1341 = vadd.f32 %v1266, %v1307
      %v1342 = vadd.f32 %v1267, %v1303
      %v1343 = vadd.f32 %v1268, %v1307
      %v1344 = vadd.f32 %v1269, %v1303
      %v1345 = vadd.f32 %v1270, %v1307
      %v1346 = vadd.f32 %v1271, %v1303
      %v1347 = vadd.f32 %v1272, %v1307
      %v1348 = vadd.f32 %v1273, %v1303
      %v1349 = vadd.f32 %v1274, %v1307
      %v1350 = vadd.f32 %v1275, %v1303
      %v1351 = vadd.f32 %v1276, %v1307
      %v1352 = vadd.f32 %v1277, %v1303
      %v1353 = vadd.f32 %v1278, %v1307
      %v1354 = vadd.f32 %v1279, %v1303
      %v1355 = vadd.f32 %v1280, %v1307
      %v1356 = vadd.f32 %v1281, %v1303
      %v1357 = vadd.f32 %v1282, %v1307
      %v1358 = vadd.f32 %v1283, %v1303
      %v1359 = vadd.f32 %v1284, %v1307
      %v1360 = vadd.f32 %v1285, %v1303
      %v1361 = vadd.f32 %v1286, %v1307
      %v1362 = vadd.f32 %v1287, %v1303
      %v1363 = vadd.f32 %v1288, %v1307
      %v1364 = vadd.f32 %v1289, %v1303
      %v1365 = vadd.f32 %v1290, %v1307
      %v1366 = vadd.f32 %v1291, %v1303
      %v1367 = vadd.f32 %v1292, %v1307
      %v1368 = vadd.f32 %v1293, %v1303
      %v1369 = vadd.f32 %v1294, %v1307
      %v1370 = vadd.f32 %v1295, %v1303
      %v1371 = vadd.f32 %v1296, %v1307
      %v1372 = vadd.f32 %v1297, %v1303
      %v1373 = vadd.f32 %v1298, %v1307
      %v1374 = vpack.c.bf16 %v1312, %v1310
      %v1375 = vpack.c.bf16 %v1313, %v1311
      %v1376 = vpack.c.bf16 %v1316, %v1314
      %v1377 = vpack.c.bf16 %v1317, %v1315
      %v1378 = vpack.c.bf16 %v1320, %v1318
      %v1379 = vpack.c.bf16 %v1321, %v1319
      %v1380 = vpack.c.bf16 %v1324, %v1322
      %v1381 = vpack.c.bf16 %v1325, %v1323
      %v1382 = vpack.c.bf16 %v1328, %v1326
      %v1383 = vpack.c.bf16 %v1329, %v1327
      %v1384 = vpack.c.bf16 %v1332, %v1330
      %v1385 = vpack.c.bf16 %v1333, %v1331
      %v1386 = vpack.c.bf16 %v1336, %v1334
      %v1387 = vpack.c.bf16 %v1337, %v1335
      %v1388 = vpack.c.bf16 %v1340, %v1338
      %v1389 = vpack.c.bf16 %v1341, %v1339
      %v1390 = vpack.c.bf16 %v1344, %v1342
      %v1391 = vpack.c.bf16 %v1345, %v1343
      %v1392 = vpack.c.bf16 %v1348, %v1346
      %v1393 = vpack.c.bf16 %v1349, %v1347
      %v1394 = vpack.c.bf16 %v1352, %v1350
      %v1395 = vpack.c.bf16 %v1353, %v1351
      %v1396 = vpack.c.bf16 %v1356, %v1354
      %v1397 = vpack.c.bf16 %v1357, %v1355
      %v1398 = vpack.c.bf16 %v1360, %v1358
      %v1399 = vpack.c.bf16 %v1361, %v1359
      %v1400 = vpack.c.bf16 %v1364, %v1362
      %v1401 = vpack.c.bf16 %v1365, %v1363
      %v1402 = vpack.c.bf16 %v1368, %v1366
      %v1403 = vpack.c.bf16 %v1369, %v1367
      %v1404 = vpack.c.bf16 %v1372, %v1370
      %v1405 = vpack.c.bf16 %v1373, %v1371
      %v1406 = vld [vmem:[%s605] sm:$0xff]
      %v1407 = vld [vmem:[%s605 + $0x8] sm:$0xff]
      %v1408 = vld [vmem:[%s605 + $0x10] sm:$0xff]
      %v1409 = vld [vmem:[%s605 + $0x18] sm:$0xff]
      %v1410 = vld [vmem:[%s605 + $0x20] sm:$0xff]
      %v1411 = vld [vmem:[%s605 + $0x28] sm:$0xff]
      %v1412 = vld [vmem:[%s605 + $0x30] sm:$0xff]
      %v1413 = vld [vmem:[%s605 + $0x38] sm:$0xff]
      %v1414 = vld [vmem:[%s605 + $0x40] sm:$0xff]
      %v1415 = vld [vmem:[%s605 + $0x48] sm:$0xff]
      %v1416 = vld [vmem:[%s605 + $0x50] sm:$0xff]
      %v1417 = vld [vmem:[%s605 + $0x58] sm:$0xff]
      %v1418 = vld [vmem:[%s605 + $0x60] sm:$0xff]
      %v1419 = vld [vmem:[%s605 + $0x68] sm:$0xff]
      %v1420 = vld [vmem:[%s605 + $0x70] sm:$0xff]
      %v1421 = vld [vmem:[%s605 + $0x78] sm:$0xff]
      %v1422 = vld [vmem:[%s605 + $0x80] sm:$0xff]
      %v1423 = vld [vmem:[%s605 + $0x88] sm:$0xff]
      %v1424 = vld [vmem:[%s605 + $0x90] sm:$0xff]
      %v1425 = vld [vmem:[%s605 + $0x98] sm:$0xff]
      %v1426 = vld [vmem:[%s605 + $0xa0] sm:$0xff]
      %v1427 = vld [vmem:[%s605 + $0xa8] sm:$0xff]
      %v1428 = vld [vmem:[%s605 + $0xb0] sm:$0xff]
      %v1429 = vld [vmem:[%s605 + $0xb8] sm:$0xff]
      %v1430 = vld [vmem:[%s605 + $0xc0] sm:$0xff]
      %v1431 = vld [vmem:[%s605 + $0xc8] sm:$0xff]
      %v1432 = vld [vmem:[%s605 + $0xd0] sm:$0xff]
      %v1433 = vld [vmem:[%s605 + $0xd8] sm:$0xff]
      %v1434 = vld [vmem:[%s605 + $0xe0] sm:$0xff]
      %v1435 = vld [vmem:[%s605 + $0xe8] sm:$0xff]
      %v1436 = vld [vmem:[%s605 + $0xf0] sm:$0xff]
      %v1437 = vld [vmem:[%s605 + $0xf8] sm:$0xff]
      %v1438 = vld [vmem:[%s609] sm:$0x3]
      %v1440 = vlaneseq
      %v1441 = vshrl.u32 %v1440, 7
      %v1442 = vsub.s32 0, %v1441
      %v1443 = vrot.slane %v1438, %v1442
      %v1444 = vlaneseq
      %v1445 = vshrl.u32 %v1444, 7
      %v1446 = vsub.s32 1, %v1445
      %v1447 = vrot.slane %v1438, %v1446
      %v1482 = vunpack.c.l.b16 %v1406
      %v1483 = vunpack.c.h.b16 %v1406
      %v1484 = vunpack.c.l.b16 %v1407
      %v1485 = vunpack.c.h.b16 %v1407
      %v1486 = vunpack.c.l.b16 %v1408
      %v1487 = vunpack.c.h.b16 %v1408
      %v1488 = vunpack.c.l.b16 %v1409
      %v1489 = vunpack.c.h.b16 %v1409
      %v1490 = vunpack.c.l.b16 %v1410
      %v1491 = vunpack.c.h.b16 %v1410
      %v1492 = vunpack.c.l.b16 %v1411
      %v1493 = vunpack.c.h.b16 %v1411
      %v1494 = vunpack.c.l.b16 %v1412
      %v1495 = vunpack.c.h.b16 %v1412
      %v1496 = vunpack.c.l.b16 %v1413
      %v1497 = vunpack.c.h.b16 %v1413
      %v1498 = vunpack.c.l.b16 %v1414
      %v1499 = vunpack.c.h.b16 %v1414
      %v1500 = vunpack.c.l.b16 %v1415
      %v1501 = vunpack.c.h.b16 %v1415
      %v1502 = vunpack.c.l.b16 %v1416
      %v1503 = vunpack.c.h.b16 %v1416
      %v1504 = vunpack.c.l.b16 %v1417
      %v1505 = vunpack.c.h.b16 %v1417
      %v1506 = vunpack.c.l.b16 %v1418
      %v1507 = vunpack.c.h.b16 %v1418
      %v1508 = vunpack.c.l.b16 %v1419
      %v1509 = vunpack.c.h.b16 %v1419
      %v1510 = vunpack.c.l.b16 %v1420
      %v1511 = vunpack.c.h.b16 %v1420
      %v1512 = vunpack.c.l.b16 %v1421
      %v1513 = vunpack.c.h.b16 %v1421
      %v1514 = vunpack.c.l.b16 %v1422
      %v1515 = vunpack.c.h.b16 %v1422
      %v1516 = vunpack.c.l.b16 %v1423
      %v1517 = vunpack.c.h.b16 %v1423
      %v1518 = vunpack.c.l.b16 %v1424
      %v1519 = vunpack.c.h.b16 %v1424
      %v1520 = vunpack.c.l.b16 %v1425
      %v1521 = vunpack.c.h.b16 %v1425
      %v1522 = vunpack.c.l.b16 %v1426
      %v1523 = vunpack.c.h.b16 %v1426
      %v1524 = vunpack.c.l.b16 %v1427
      %v1525 = vunpack.c.h.b16 %v1427
      %v1526 = vunpack.c.l.b16 %v1428
      %v1527 = vunpack.c.h.b16 %v1428
      %v1528 = vunpack.c.l.b16 %v1429
      %v1529 = vunpack.c.h.b16 %v1429
      %v1530 = vunpack.c.l.b16 %v1430
      %v1531 = vunpack.c.h.b16 %v1430
      %v1532 = vunpack.c.l.b16 %v1431
      %v1533 = vunpack.c.h.b16 %v1431
      %v1534 = vunpack.c.l.b16 %v1432
      %v1535 = vunpack.c.h.b16 %v1432
      %v1536 = vunpack.c.l.b16 %v1433
      %v1537 = vunpack.c.h.b16 %v1433
      %v1538 = vunpack.c.l.b16 %v1434
      %v1539 = vunpack.c.h.b16 %v1434
      %v1540 = vunpack.c.l.b16 %v1435
      %v1541 = vunpack.c.h.b16 %v1435
      %v1542 = vunpack.c.l.b16 %v1436
      %v1543 = vunpack.c.h.b16 %v1436
      %v1544 = vunpack.c.l.b16 %v1437
      %v1545 = vunpack.c.h.b16 %v1437
      %v1546 = vpack.c.b16 %v1484, %v1482
      %v1547 = vpack.c.b16 %v1485, %v1483
      %v1548 = vpack.c.b16 %v1488, %v1486
      %v1549 = vpack.c.b16 %v1489, %v1487
      %v1550 = vpack.c.b16 %v1492, %v1490
      %v1551 = vpack.c.b16 %v1493, %v1491
      %v1552 = vpack.c.b16 %v1496, %v1494
      %v1553 = vpack.c.b16 %v1497, %v1495
      %v1554 = vpack.c.b16 %v1500, %v1498
      %v1555 = vpack.c.b16 %v1501, %v1499
      %v1556 = vpack.c.b16 %v1504, %v1502
      %v1557 = vpack.c.b16 %v1505, %v1503
      %v1558 = vpack.c.b16 %v1508, %v1506
      %v1559 = vpack.c.b16 %v1509, %v1507
      %v1560 = vpack.c.b16 %v1512, %v1510
      %v1561 = vpack.c.b16 %v1513, %v1511
      %v1562 = vpack.c.b16 %v1516, %v1514
      %v1563 = vpack.c.b16 %v1517, %v1515
      %v1564 = vpack.c.b16 %v1520, %v1518
      %v1565 = vpack.c.b16 %v1521, %v1519
      %v1566 = vpack.c.b16 %v1524, %v1522
      %v1567 = vpack.c.b16 %v1525, %v1523
      %v1568 = vpack.c.b16 %v1528, %v1526
      %v1569 = vpack.c.b16 %v1529, %v1527
      %v1570 = vpack.c.b16 %v1532, %v1530
      %v1571 = vpack.c.b16 %v1533, %v1531
      %v1572 = vpack.c.b16 %v1536, %v1534
      %v1573 = vpack.c.b16 %v1537, %v1535
      %v1574 = vpack.c.b16 %v1540, %v1538
      %v1575 = vpack.c.b16 %v1541, %v1539
      %v1576 = vpack.c.b16 %v1544, %v1542
      %v1577 = vpack.c.b16 %v1545, %v1543
      %1610 = vmatprep.subr.bf16.mxu0 %v1547
      %1611 = vmatpush1.bf16.msra.mxu0 %v1546
      %1612 = vmatprep.subr.bf16.mxu0 %v1549
      %1613 = vmatpush1.bf16.msra.mxu0 %v1548
      %1614 = vmatprep.subr.bf16.mxu0 %v1551
      %1615 = vmatpush1.bf16.msra.mxu0 %v1550
      %1616 = vmatprep.subr.bf16.mxu0 %v1553
      %1617 = vmatpush1.bf16.msra.mxu0 %v1552
      %1618 = vmatprep.subr.bf16.mxu0 %v1555
      %1619 = vmatpush1.bf16.msra.mxu0 %v1554
      %1620 = vmatprep.subr.bf16.mxu0 %v1557
      %1621 = vmatpush1.bf16.msra.mxu0 %v1556
      %1622 = vmatprep.subr.bf16.mxu0 %v1559
      %1623 = vmatpush1.bf16.msra.mxu0 %v1558
      %1624 = vmatprep.subr.bf16.mxu0 %v1561
      %1625 = vmatpush1.bf16.msra.mxu0 %v1560
      %1626 = vmatprep.subr.bf16.mxu0 %v1563
      %1627 = vmatpush1.bf16.msra.mxu0 %v1562
      %1628 = vmatprep.subr.bf16.mxu0 %v1565
      %1629 = vmatpush1.bf16.msra.mxu0 %v1564
      %1630 = vmatprep.subr.bf16.mxu0 %v1567
      %1631 = vmatpush1.bf16.msra.mxu0 %v1566
      %1632 = vmatprep.subr.bf16.mxu0 %v1569
      %1633 = vmatpush1.bf16.msra.mxu0 %v1568
      %1634 = vmatprep.subr.bf16.mxu0 %v1571
      %1635 = vmatpush1.bf16.msra.mxu0 %v1570
      %1636 = vmatprep.subr.bf16.mxu0 %v1573
      %1637 = vmatpush1.bf16.msra.mxu0 %v1572
      %1638 = vmatprep.subr.bf16.mxu0 %v1575
      %1639 = vmatpush1.bf16.msra.mxu0 %v1574
      %1640 = vmatprep.subr.bf16.mxu0 %v1577
      %1641 = vmatpush1.bf16.msra.mxu0 %v1576
      %1642 = vmatprep.mubr.bf16.mxu0 %v1375
      %1643 = vmatmul.mubr.bf16.gmra.mrb[0].mxu0 %v1374
      %v1644 = vpop.f32.mrb[0].mxu0
      %v1645 = vadd.f32 %v1443, %v1644
      %v1646 = vpop.f32.mrb[0].mxu0
      %v1647 = vadd.f32 %v1447, %v1646
      %v1648 = vpop.f32.mrb[0].mxu0
      %v1649 = vadd.f32 %v1443, %v1648
      %v1650 = vpop.f32.mrb[0].mxu0
      %v1651 = vadd.f32 %v1447, %v1650
      %1652 = vmatprep.mubr.bf16.mxu0 %v1377
      %1653 = vmatmul.mubr.bf16.gmra.mrb[0].mxu0 %v1376
      %v1654 = vpop.f32.mrb[0].mxu0
      %v1655 = vadd.f32 %v1443, %v1654
      %v1656 = vpop.f32.mrb[0].mxu0
      %v1657 = vadd.f32 %v1447, %v1656
      %v1658 = vpop.f32.mrb[0].mxu0
      %v1659 = vadd.f32 %v1443, %v1658
      %v1660 = vpop.f32.mrb[0].mxu0
      %v1661 = vadd.f32 %v1447, %v1660
      %1662 = vmatprep.mubr.bf16.mxu0 %v1379
      %1663 = vmatmul.mubr.bf16.gmra.mrb[0].mxu0 %v1378
      %v1664 = vpop.f32.mrb[0].mxu0
      %v1665 = vadd.f32 %v1443, %v1664
      %v1666 = vpop.f32.mrb[0].mxu0
      %v1667 = vadd.f32 %v1447, %v1666
      %v1668 = vpop.f32.mrb[0].mxu0
      %v1669 = vadd.f32 %v1443, %v1668
      %v1670 = vpop.f32.mrb[0].mxu0
      %v1671 = vadd.f32 %v1447, %v1670
      %1672 = vmatprep.mubr.bf16.mxu0 %v1381
      %1673 = vmatmul.mubr.bf16.gmra.mrb[0].mxu0 %v1380
      %v1674 = vpop.f32.mrb[0].mxu0
      %v1675 = vadd.f32 %v1443, %v1674
      %v1676 = vpop.f32.mrb[0].mxu0
      %v1677 = vadd.f32 %v1447, %v1676
      %v1678 = vpop.f32.mrb[0].mxu0
      %v1679 = vadd.f32 %v1443, %v1678
      %v1680 = vpop.f32.mrb[0].mxu0
      %v1681 = vadd.f32 %v1447, %v1680
      %1682 = vmatprep.mubr.bf16.mxu0 %v1383
      %1683 = vmatmul.mubr.bf16.gmra.mrb[0].mxu0 %v1382
      %v1684 = vpop.f32.mrb[0].mxu0
      %v1685 = vadd.f32 %v1443, %v1684
      %v1686 = vpop.f32.mrb[0].mxu0
      %v1687 = vadd.f32 %v1447, %v1686
      %v1688 = vpop.f32.mrb[0].mxu0
      %v1689 = vadd.f32 %v1443, %v1688
      %v1690 = vpop.f32.mrb[0].mxu0
      %v1691 = vadd.f32 %v1447, %v1690
      %1692 = vmatprep.mubr.bf16.mxu0 %v1385
      %1693 = vmatmul.mubr.bf16.gmra.mrb[0].mxu0 %v1384
      %v1694 = vpop.f32.mrb[0].mxu0
      %v1695 = vadd.f32 %v1443, %v1694
      %v1696 = vpop.f32.mrb[0].mxu0
      %v1697 = vadd.f32 %v1447, %v1696
      %v1698 = vpop.f32.mrb[0].mxu0
      %v1699 = vadd.f32 %v1443, %v1698
      %v1700 = vpop.f32.mrb[0].mxu0
      %v1701 = vadd.f32 %v1447, %v1700
      %1702 = vmatprep.mubr.bf16.mxu0 %v1387
      %1703 = vmatmul.mubr.bf16.gmra.mrb[0].mxu0 %v1386
      %v1704 = vpop.f32.mrb[0].mxu0
      %v1705 = vadd.f32 %v1443, %v1704
      %v1706 = vpop.f32.mrb[0].mxu0
      %v1707 = vadd.f32 %v1447, %v1706
      %v1708 = vpop.f32.mrb[0].mxu0
      %v1709 = vadd.f32 %v1443, %v1708
      %v1710 = vpop.f32.mrb[0].mxu0
      %v1711 = vadd.f32 %v1447, %v1710
      %1712 = vmatprep.mubr.bf16.mxu0 %v1389
      %1713 = vmatmul.mubr.bf16.gmra.mrb[0].mxu0 %v1388
      %v1714 = vpop.f32.mrb[0].mxu0
      %v1715 = vadd.f32 %v1443, %v1714
      %v1716 = vpop.f32.mrb[0].mxu0
      %v1717 = vadd.f32 %v1447, %v1716
      %v1718 = vpop.f32.mrb[0].mxu0
      %v1719 = vadd.f32 %v1443, %v1718
      %v1720 = vpop.f32.mrb[0].mxu0
      %v1721 = vadd.f32 %v1447, %v1720
      %1722 = vmatprep.mubr.bf16.mxu0 %v1391
      %1723 = vmatmul.mubr.bf16.gmra.mrb[0].mxu0 %v1390
      %v1724 = vpop.f32.mrb[0].mxu0
      %v1725 = vadd.f32 %v1443, %v1724
      %v1726 = vpop.f32.mrb[0].mxu0
      %v1727 = vadd.f32 %v1447, %v1726
      %v1728 = vpop.f32.mrb[0].mxu0
      %v1729 = vadd.f32 %v1443, %v1728
      %v1730 = vpop.f32.mrb[0].mxu0
      %v1731 = vadd.f32 %v1447, %v1730
      %1732 = vmatprep.mubr.bf16.mxu0 %v1393
      %1733 = vmatmul.mubr.bf16.gmra.mrb[0].mxu0 %v1392
      %v1734 = vpop.f32.mrb[0].mxu0
      %v1735 = vadd.f32 %v1443, %v1734
      %v1736 = vpop.f32.mrb[0].mxu0
      %v1737 = vadd.f32 %v1447, %v1736
      %v1738 = vpop.f32.mrb[0].mxu0
      %v1739 = vadd.f32 %v1443, %v1738
      %v1740 = vpop.f32.mrb[0].mxu0
      %v1741 = vadd.f32 %v1447, %v1740
      %1742 = vmatprep.mubr.bf16.mxu0 %v1395
      %1743 = vmatmul.mubr.bf16.gmra.mrb[0].mxu0 %v1394
      %v1744 = vpop.f32.mrb[0].mxu0
      %v1745 = vadd.f32 %v1443, %v1744
      %v1746 = vpop.f32.mrb[0].mxu0
      %v1747 = vadd.f32 %v1447, %v1746
      %v1748 = vpop.f32.mrb[0].mxu0
      %v1749 = vadd.f32 %v1443, %v1748
      %v1750 = vpop.f32.mrb[0].mxu0
      %v1751 = vadd.f32 %v1447, %v1750
      %1752 = vmatprep.mubr.bf16.mxu0 %v1397
      %1753 = vmatmul.mubr.bf16.gmra.mrb[0].mxu0 %v1396
      %v1754 = vpop.f32.mrb[0].mxu0
      %v1755 = vadd.f32 %v1443, %v1754
      %v1756 = vpop.f32.mrb[0].mxu0
      %v1757 = vadd.f32 %v1447, %v1756
      %v1758 = vpop.f32.mrb[0].mxu0
      %v1759 = vadd.f32 %v1443, %v1758
      %v1760 = vpop.f32.mrb[0].mxu0
      %v1761 = vadd.f32 %v1447, %v1760
      %1762 = vmatprep.mubr.bf16.mxu0 %v1399
      %1763 = vmatmul.mubr.bf16.gmra.mrb[0].mxu0 %v1398
      %v1764 = vpop.f32.mrb[0].mxu0
      %v1765 = vadd.f32 %v1443, %v1764
      %v1766 = vpop.f32.mrb[0].mxu0
      %v1767 = vadd.f32 %v1447, %v1766
      %v1768 = vpop.f32.mrb[0].mxu0
      %v1769 = vadd.f32 %v1443, %v1768
      %v1770 = vpop.f32.mrb[0].mxu0
      %v1771 = vadd.f32 %v1447, %v1770
      %1772 = vmatprep.mubr.bf16.mxu0 %v1401
      %1773 = vmatmul.mubr.bf16.gmra.mrb[0].mxu0 %v1400
      %v1774 = vpop.f32.mrb[0].mxu0
      %v1775 = vadd.f32 %v1443, %v1774
      %v1776 = vpop.f32.mrb[0].mxu0
      %v1777 = vadd.f32 %v1447, %v1776
      %v1778 = vpop.f32.mrb[0].mxu0
      %v1779 = vadd.f32 %v1443, %v1778
      %v1780 = vpop.f32.mrb[0].mxu0
      %v1781 = vadd.f32 %v1447, %v1780
      %1782 = vmatprep.mubr.bf16.mxu0 %v1403
      %1783 = vmatmul.mubr.bf16.gmra.mrb[0].mxu0 %v1402
      %v1784 = vpop.f32.mrb[0].mxu0
      %v1785 = vadd.f32 %v1443, %v1784
      %v1786 = vpop.f32.mrb[0].mxu0
      %v1787 = vadd.f32 %v1447, %v1786
      %v1788 = vpop.f32.mrb[0].mxu0
      %v1789 = vadd.f32 %v1443, %v1788
      %v1790 = vpop.f32.mrb[0].mxu0
      %v1791 = vadd.f32 %v1447, %v1790
      %1792 = vmatprep.mubr.bf16.mxu0 %v1405
      %1793 = vmatmul.mubr.bf16.gmra.mrb[0].mxu0 %v1404
      %v1794 = vpop.f32.mrb[0].mxu0
      %v1795 = vadd.f32 %v1443, %v1794
      %v1796 = vpop.f32.mrb[0].mxu0
      %v1797 = vadd.f32 %v1447, %v1796
      %v1798 = vpop.f32.mrb[0].mxu0
      %v1799 = vadd.f32 %v1443, %v1798
      %v1800 = vpop.f32.mrb[0].mxu0
      %v1801 = vadd.f32 %v1447, %v1800
      %1802 = vdwg.mxu0
      %v1803 = vld [vmem:[%s614] sm:$0xff]
      %v1804 = vld [vmem:[%s614 + $0x8] sm:$0xff]
      %v1805 = vld [vmem:[%s614 + $0x10] sm:$0xff]
      %v1806 = vld [vmem:[%s614 + $0x18] sm:$0xff]
      %v1807 = vld [vmem:[%s614 + $0x20] sm:$0xff]
      %v1808 = vld [vmem:[%s614 + $0x28] sm:$0xff]
      %v1809 = vld [vmem:[%s614 + $0x30] sm:$0xff]
      %v1810 = vld [vmem:[%s614 + $0x38] sm:$0xff]
      %v1811 = vld [vmem:[%s614 + $0x40] sm:$0xff]
      %v1812 = vld [vmem:[%s614 + $0x48] sm:$0xff]
      %v1813 = vld [vmem:[%s614 + $0x50] sm:$0xff]
      %v1814 = vld [vmem:[%s614 + $0x58] sm:$0xff]
      %v1815 = vld [vmem:[%s614 + $0x60] sm:$0xff]
      %v1816 = vld [vmem:[%s614 + $0x68] sm:$0xff]
      %v1817 = vld [vmem:[%s614 + $0x70] sm:$0xff]
      %v1818 = vld [vmem:[%s614 + $0x78] sm:$0xff]
      %v1819 = vld [vmem:[%s614 + $0x80] sm:$0xff]
      %v1820 = vld [vmem:[%s614 + $0x88] sm:$0xff]
      %v1821 = vld [vmem:[%s614 + $0x90] sm:$0xff]
      %v1822 = vld [vmem:[%s614 + $0x98] sm:$0xff]
      %v1823 = vld [vmem:[%s614 + $0xa0] sm:$0xff]
      %v1824 = vld [vmem:[%s614 + $0xa8] sm:$0xff]
      %v1825 = vld [vmem:[%s614 + $0xb0] sm:$0xff]
      %v1826 = vld [vmem:[%s614 + $0xb8] sm:$0xff]
      %v1827 = vld [vmem:[%s614 + $0xc0] sm:$0xff]
      %v1828 = vld [vmem:[%s614 + $0xc8] sm:$0xff]
      %v1829 = vld [vmem:[%s614 + $0xd0] sm:$0xff]
      %v1830 = vld [vmem:[%s614 + $0xd8] sm:$0xff]
      %v1831 = vld [vmem:[%s614 + $0xe0] sm:$0xff]
      %v1832 = vld [vmem:[%s614 + $0xe8] sm:$0xff]
      %v1833 = vld [vmem:[%s614 + $0xf0] sm:$0xff]
      %v1834 = vld [vmem:[%s614 + $0xf8] sm:$0xff]
      %v1835 = vld [vmem:[%s618] sm:$0x3]
      %v1837 = vlaneseq
      %v1838 = vshrl.u32 %v1837, 7
      %v1839 = vsub.s32 0, %v1838
      %v1840 = vrot.slane %v1835, %v1839
      %v1841 = vlaneseq
      %v1842 = vshrl.u32 %v1841, 7
      %v1843 = vsub.s32 1, %v1842
      %v1844 = vrot.slane %v1835, %v1843
      %v1879 = vunpack.c.l.b16 %v1803
      %v1880 = vunpack.c.h.b16 %v1803
      %v1881 = vunpack.c.l.b16 %v1804
      %v1882 = vunpack.c.h.b16 %v1804
      %v1883 = vunpack.c.l.b16 %v1805
      %v1884 = vunpack.c.h.b16 %v1805
      %v1885 = vunpack.c.l.b16 %v1806
      %v1886 = vunpack.c.h.b16 %v1806
      %v1887 = vunpack.c.l.b16 %v1807
      %v1888 = vunpack.c.h.b16 %v1807
      %v1889 = vunpack.c.l.b16 %v1808
      %v1890 = vunpack.c.h.b16 %v1808
      %v1891 = vunpack.c.l.b16 %v1809
      %v1892 = vunpack.c.h.b16 %v1809
      %v1893 = vunpack.c.l.b16 %v1810
      %v1894 = vunpack.c.h.b16 %v1810
      %v1895 = vunpack.c.l.b16 %v1811
      %v1896 = vunpack.c.h.b16 %v1811
      %v1897 = vunpack.c.l.b16 %v1812
      %v1898 = vunpack.c.h.b16 %v1812
      %v1899 = vunpack.c.l.b16 %v1813
      %v1900 = vunpack.c.h.b16 %v1813
      %v1901 = vunpack.c.l.b16 %v1814
      %v1902 = vunpack.c.h.b16 %v1814
      %v1903 = vunpack.c.l.b16 %v1815
      %v1904 = vunpack.c.h.b16 %v1815
      %v1905 = vunpack.c.l.b16 %v1816
      %v1906 = vunpack.c.h.b16 %v1816
      %v1907 = vunpack.c.l.b16 %v1817
      %v1908 = vunpack.c.h.b16 %v1817
      %v1909 = vunpack.c.l.b16 %v1818
      %v1910 = vunpack.c.h.b16 %v1818
      %v1911 = vunpack.c.l.b16 %v1819
      %v1912 = vunpack.c.h.b16 %v1819
      %v1913 = vunpack.c.l.b16 %v1820
      %v1914 = vunpack.c.h.b16 %v1820
      %v1915 = vunpack.c.l.b16 %v1821
      %v1916 = vunpack.c.h.b16 %v1821
      %v1917 = vunpack.c.l.b16 %v1822
      %v1918 = vunpack.c.h.b16 %v1822
      %v1919 = vunpack.c.l.b16 %v1823
      %v1920 = vunpack.c.h.b16 %v1823
      %v1921 = vunpack.c.l.b16 %v1824
      %v1922 = vunpack.c.h.b16 %v1824
      %v1923 = vunpack.c.l.b16 %v1825
      %v1924 = vunpack.c.h.b16 %v1825
      %v1925 = vunpack.c.l.b16 %v1826
      %v1926 = vunpack.c.h.b16 %v1826
      %v1927 = vunpack.c.l.b16 %v1827
      %v1928 = vunpack.c.h.b16 %v1827
      %v1929 = vunpack.c.l.b16 %v1828
      %v1930 = vunpack.c.h.b16 %v1828
      %v1931 = vunpack.c.l.b16 %v1829
      %v1932 = vunpack.c.h.b16 %v1829
      %v1933 = vunpack.c.l.b16 %v1830
      %v1934 = vunpack.c.h.b16 %v1830
      %v1935 = vunpack.c.l.b16 %v1831
      %v1936 = vunpack.c.h.b16 %v1831
      %v1937 = vunpack.c.l.b16 %v1832
      %v1938 = vunpack.c.h.b16 %v1832
      %v1939 = vunpack.c.l.b16 %v1833
      %v1940 = vunpack.c.h.b16 %v1833
      %v1941 = vunpack.c.l.b16 %v1834
      %v1942 = vunpack.c.h.b16 %v1834
      %v1943 = vpack.c.b16 %v1881, %v1879
      %v1944 = vpack.c.b16 %v1882, %v1880
      %v1945 = vpack.c.b16 %v1885, %v1883
      %v1946 = vpack.c.b16 %v1886, %v1884
      %v1947 = vpack.c.b16 %v1889, %v1887
      %v1948 = vpack.c.b16 %v1890, %v1888
      %v1949 = vpack.c.b16 %v1893, %v1891
      %v1950 = vpack.c.b16 %v1894, %v1892
      %v1951 = vpack.c.b16 %v1897, %v1895
      %v1952 = vpack.c.b16 %v1898, %v1896
      %v1953 = vpack.c.b16 %v1901, %v1899
      %v1954 = vpack.c.b16 %v1902, %v1900
      %v1955 = vpack.c.b16 %v1905, %v1903
      %v1956 = vpack.c.b16 %v1906, %v1904
      %v1957 = vpack.c.b16 %v1909, %v1907
      %v1958 = vpack.c.b16 %v1910, %v1908
      %v1959 = vpack.c.b16 %v1913, %v1911
      %v1960 = vpack.c.b16 %v1914, %v1912
      %v1961 = vpack.c.b16 %v1917, %v1915
      %v1962 = vpack.c.b16 %v1918, %v1916
      %v1963 = vpack.c.b16 %v1921, %v1919
      %v1964 = vpack.c.b16 %v1922, %v1920
      %v1965 = vpack.c.b16 %v1925, %v1923
      %v1966 = vpack.c.b16 %v1926, %v1924
      %v1967 = vpack.c.b16 %v1929, %v1927
      %v1968 = vpack.c.b16 %v1930, %v1928
      %v1969 = vpack.c.b16 %v1933, %v1931
      %v1970 = vpack.c.b16 %v1934, %v1932
      %v1971 = vpack.c.b16 %v1937, %v1935
      %v1972 = vpack.c.b16 %v1938, %v1936
      %v1973 = vpack.c.b16 %v1941, %v1939
      %v1974 = vpack.c.b16 %v1942, %v1940
      %2007 = vmatprep.subr.bf16.mxu0 %v1944
      %2008 = vmatpush1.bf16.msra.mxu0 %v1943
      %2009 = vmatprep.subr.bf16.mxu0 %v1946
      %2010 = vmatpush1.bf16.msra.mxu0 %v1945
      %2011 = vmatprep.subr.bf16.mxu0 %v1948
      %2012 = vmatpush1.bf16.msra.mxu0 %v1947
      %2013 = vmatprep.subr.bf16.mxu0 %v1950
      %2014 = vmatpush1.bf16.msra.mxu0 %v1949
      %2015 = vmatprep.subr.bf16.mxu0 %v1952
      %2016 = vmatpush1.bf16.msra.mxu0 %v1951
      %2017 = vmatprep.subr.bf16.mxu0 %v1954
      %2018 = vmatpush1.bf16.msra.mxu0 %v1953
      %2019 = vmatprep.subr.bf16.mxu0 %v1956
      %2020 = vmatpush1.bf16.msra.mxu0 %v1955
      %2021 = vmatprep.subr.bf16.mxu0 %v1958
      %2022 = vmatpush1.bf16.msra.mxu0 %v1957
      %2023 = vmatprep.subr.bf16.mxu0 %v1960
      %2024 = vmatpush1.bf16.msra.mxu0 %v1959
      %2025 = vmatprep.subr.bf16.mxu0 %v1962
      %2026 = vmatpush1.bf16.msra.mxu0 %v1961
      %2027 = vmatprep.subr.bf16.mxu0 %v1964
      %2028 = vmatpush1.bf16.msra.mxu0 %v1963
      %2029 = vmatprep.subr.bf16.mxu0 %v1966
      %2030 = vmatpush1.bf16.msra.mxu0 %v1965
      %2031 = vmatprep.subr.bf16.mxu0 %v1968
      %2032 = vmatpush1.bf16.msra.mxu0 %v1967
      %2033 = vmatprep.subr.bf16.mxu0 %v1970
      %2034 = vmatpush1.bf16.msra.mxu0 %v1969
      %2035 = vmatprep.subr.bf16.mxu0 %v1972
      %2036 = vmatpush1.bf16.msra.mxu0 %v1971
      %2037 = vmatprep.subr.bf16.mxu0 %v1974
      %2038 = vmatpush1.bf16.msra.mxu0 %v1973
      %2039 = vmatprep.mubr.bf16.mxu0 %v1375
      %2040 = vmatmul.mubr.bf16.gmra.mrb[0].mxu0 %v1374
      %v2041 = vpop.f32.mrb[0].mxu0
      %v2042 = vadd.f32 %v1840, %v2041
      %v2043 = vpop.f32.mrb[0].mxu0
      %v2044 = vadd.f32 %v1844, %v2043
      %v2045 = vpop.f32.mrb[0].mxu0
      %v2046 = vadd.f32 %v1840, %v2045
      %v2047 = vpop.f32.mrb[0].mxu0
      %v2048 = vadd.f32 %v1844, %v2047
      %2049 = vmatprep.mubr.bf16.mxu0 %v1377
      %2050 = vmatmul.mubr.bf16.gmra.mrb[0].mxu0 %v1376
      %v2051 = vpop.f32.mrb[0].mxu0
      %v2052 = vadd.f32 %v1840, %v2051
      %v2053 = vpop.f32.mrb[0].mxu0
      %v2054 = vadd.f32 %v1844, %v2053
      %v2055 = vpop.f32.mrb[0].mxu0
      %v2056 = vadd.f32 %v1840, %v2055
      %v2057 = vpop.f32.mrb[0].mxu0
      %v2058 = vadd.f32 %v1844, %v2057
      %2059 = vmatprep.mubr.bf16.mxu0 %v1379
      %2060 = vmatmul.mubr.bf16.gmra.mrb[0].mxu0 %v1378
      %v2061 = vpop.f32.mrb[0].mxu0
      %v2062 = vadd.f32 %v1840, %v2061
      %v2063 = vpop.f32.mrb[0].mxu0
      %v2064 = vadd.f32 %v1844, %v2063
      %v2065 = vpop.f32.mrb[0].mxu0
      %v2066 = vadd.f32 %v1840, %v2065
      %v2067 = vpop.f32.mrb[0].mxu0
      %v2068 = vadd.f32 %v1844, %v2067
      %2069 = vmatprep.mubr.bf16.mxu0 %v1381
      %2070 = vmatmul.mubr.bf16.gmra.mrb[0].mxu0 %v1380
      %v2071 = vpop.f32.mrb[0].mxu0
      %v2072 = vadd.f32 %v1840, %v2071
      %v2073 = vpop.f32.mrb[0].mxu0
      %v2074 = vadd.f32 %v1844, %v2073
      %v2075 = vpop.f32.mrb[0].mxu0
      %v2076 = vadd.f32 %v1840, %v2075
      %v2077 = vpop.f32.mrb[0].mxu0
      %v2078 = vadd.f32 %v1844, %v2077
      %2079 = vmatprep.mubr.bf16.mxu0 %v1383
      %2080 = vmatmul.mubr.bf16.gmra.mrb[0].mxu0 %v1382
      %v2081 = vpop.f32.mrb[0].mxu0
      %v2082 = vadd.f32 %v1840, %v2081
      %v2083 = vpop.f32.mrb[0].mxu0
      %v2084 = vadd.f32 %v1844, %v2083
      %v2085 = vpop.f32.mrb[0].mxu0
      %v2086 = vadd.f32 %v1840, %v2085
      %v2087 = vpop.f32.mrb[0].mxu0
      %v2088 = vadd.f32 %v1844, %v2087
      %2089 = vmatprep.mubr.bf16.mxu0 %v1385
      %2090 = vmatmul.mubr.bf16.gmra.mrb[0].mxu0 %v1384
      %v2091 = vpop.f32.mrb[0].mxu0
      %v2092 = vadd.f32 %v1840, %v2091
      %v2093 = vpop.f32.mrb[0].mxu0
      %v2094 = vadd.f32 %v1844, %v2093
      %v2095 = vpop.f32.mrb[0].mxu0
      %v2096 = vadd.f32 %v1840, %v2095
      %v2097 = vpop.f32.mrb[0].mxu0
      %v2098 = vadd.f32 %v1844, %v2097
      %2099 = vmatprep.mubr.bf16.mxu0 %v1387
      %2100 = vmatmul.mubr.bf16.gmra.mrb[0].mxu0 %v1386
      %v2101 = vpop.f32.mrb[0].mxu0
      %v2102 = vadd.f32 %v1840, %v2101
      %v2103 = vpop.f32.mrb[0].mxu0
      %v2104 = vadd.f32 %v1844, %v2103
      %v2105 = vpop.f32.mrb[0].mxu0
      %v2106 = vadd.f32 %v1840, %v2105
      %v2107 = vpop.f32.mrb[0].mxu0
      %v2108 = vadd.f32 %v1844, %v2107
      %2109 = vmatprep.mubr.bf16.mxu0 %v1389
      %2110 = vmatmul.mubr.bf16.gmra.mrb[0].mxu0 %v1388
      %v2111 = vpop.f32.mrb[0].mxu0
      %v2112 = vadd.f32 %v1840, %v2111
      %v2113 = vpop.f32.mrb[0].mxu0
      %v2114 = vadd.f32 %v1844, %v2113
      %v2115 = vpop.f32.mrb[0].mxu0
      %v2116 = vadd.f32 %v1840, %v2115
      %v2117 = vpop.f32.mrb[0].mxu0
      %v2118 = vadd.f32 %v1844, %v2117
      %2119 = vmatprep.mubr.bf16.mxu0 %v1391
      %2120 = vmatmul.mubr.bf16.gmra.mrb[0].mxu0 %v1390
      %v2121 = vpop.f32.mrb[0].mxu0
      %v2122 = vadd.f32 %v1840, %v2121
      %v2123 = vpop.f32.mrb[0].mxu0
      %v2124 = vadd.f32 %v1844, %v2123
      %v2125 = vpop.f32.mrb[0].mxu0
      %v2126 = vadd.f32 %v1840, %v2125
      %v2127 = vpop.f32.mrb[0].mxu0
      %v2128 = vadd.f32 %v1844, %v2127
      %2129 = vmatprep.mubr.bf16.mxu0 %v1393
      %2130 = vmatmul.mubr.bf16.gmra.mrb[0].mxu0 %v1392
      %v2131 = vpop.f32.mrb[0].mxu0
      %v2132 = vadd.f32 %v1840, %v2131
      %v2133 = vpop.f32.mrb[0].mxu0
      %v2134 = vadd.f32 %v1844, %v2133
      %v2135 = vpop.f32.mrb[0].mxu0
      %v2136 = vadd.f32 %v1840, %v2135
      %v2137 = vpop.f32.mrb[0].mxu0
      %v2138 = vadd.f32 %v1844, %v2137
      %2139 = vmatprep.mubr.bf16.mxu0 %v1395
      %2140 = vmatmul.mubr.bf16.gmra.mrb[0].mxu0 %v1394
      %v2141 = vpop.f32.mrb[0].mxu0
      %v2142 = vadd.f32 %v1840, %v2141
      %v2143 = vpop.f32.mrb[0].mxu0
      %v2144 = vadd.f32 %v1844, %v2143
      %v2145 = vpop.f32.mrb[0].mxu0
      %v2146 = vadd.f32 %v1840, %v2145
      %v2147 = vpop.f32.mrb[0].mxu0
      %v2148 = vadd.f32 %v1844, %v2147
      %2149 = vmatprep.mubr.bf16.mxu0 %v1397
      %2150 = vmatmul.mubr.bf16.gmra.mrb[0].mxu0 %v1396
      %v2151 = vpop.f32.mrb[0].mxu0
      %v2152 = vadd.f32 %v1840, %v2151
      %v2153 = vpop.f32.mrb[0].mxu0
      %v2154 = vadd.f32 %v1844, %v2153
      %v2155 = vpop.f32.mrb[0].mxu0
      %v2156 = vadd.f32 %v1840, %v2155
      %v2157 = vpop.f32.mrb[0].mxu0
      %v2158 = vadd.f32 %v1844, %v2157
      %2159 = vmatprep.mubr.bf16.mxu0 %v1399
      %2160 = vmatmul.mubr.bf16.gmra.mrb[0].mxu0 %v1398
      %v2161 = vpop.f32.mrb[0].mxu0
      %v2162 = vadd.f32 %v1840, %v2161
      %v2163 = vpop.f32.mrb[0].mxu0
      %v2164 = vadd.f32 %v1844, %v2163
      %v2165 = vpop.f32.mrb[0].mxu0
      %v2166 = vadd.f32 %v1840, %v2165
      %v2167 = vpop.f32.mrb[0].mxu0
      %v2168 = vadd.f32 %v1844, %v2167
      %2169 = vmatprep.mubr.bf16.mxu0 %v1401
      %2170 = vmatmul.mubr.bf16.gmra.mrb[0].mxu0 %v1400
      %v2171 = vpop.f32.mrb[0].mxu0
      %v2172 = vadd.f32 %v1840, %v2171
      %v2173 = vpop.f32.mrb[0].mxu0
      %v2174 = vadd.f32 %v1844, %v2173
      %v2175 = vpop.f32.mrb[0].mxu0
      %v2176 = vadd.f32 %v1840, %v2175
      %v2177 = vpop.f32.mrb[0].mxu0
      %v2178 = vadd.f32 %v1844, %v2177
      %2179 = vmatprep.mubr.bf16.mxu0 %v1403
      %2180 = vmatmul.mubr.bf16.gmra.mrb[0].mxu0 %v1402
      %v2181 = vpop.f32.mrb[0].mxu0
      %v2182 = vadd.f32 %v1840, %v2181
      %v2183 = vpop.f32.mrb[0].mxu0
      %v2184 = vadd.f32 %v1844, %v2183
      %v2185 = vpop.f32.mrb[0].mxu0
      %v2186 = vadd.f32 %v1840, %v2185
      %v2187 = vpop.f32.mrb[0].mxu0
      %v2188 = vadd.f32 %v1844, %v2187
      %2189 = vmatprep.mubr.bf16.mxu0 %v1405
      %2190 = vmatmul.mubr.bf16.gmra.mrb[0].mxu0 %v1404
      %v2191 = vpop.f32.mrb[0].mxu0
      %v2192 = vadd.f32 %v1840, %v2191
      %v2193 = vpop.f32.mrb[0].mxu0
      %v2194 = vadd.f32 %v1844, %v2193
      %v2195 = vpop.f32.mrb[0].mxu0
      %v2196 = vadd.f32 %v1840, %v2195
      %v2197 = vpop.f32.mrb[0].mxu0
      %v2198 = vadd.f32 %v1844, %v2197
      %2199 = vdwg.mxu0
      %v2200 = vld [vmem:[%s631] sm:$0x3]
      %v2201 = vld [vmem:[%s635] sm:$0x3]
      %v2202 = vadd.f32 %v1645, %v1647
      %2203 = vadd.xlane.f32.xlu0 %v2202
      %v2204 = vpop.xlane.xlu0 %2203
      %v2205 = vadd.f32 %v1649, %v1651
      %2206 = vadd.xlane.f32.xlu0 %v2205
      %v2207 = vpop.xlane.xlu0 %2206
      %v2208 = vadd.f32 %v1655, %v1657
      %2209 = vadd.xlane.f32.xlu0 %v2208
      %v2210 = vpop.xlane.xlu0 %2209
      %v2211 = vadd.f32 %v1659, %v1661
      %2212 = vadd.xlane.f32.xlu0 %v2211
      %v2213 = vpop.xlane.xlu0 %2212
      %v2214 = vadd.f32 %v1665, %v1667
      %2215 = vadd.xlane.f32.xlu0 %v2214
      %v2216 = vpop.xlane.xlu0 %2215
      %v2217 = vadd.f32 %v1669, %v1671
      %2218 = vadd.xlane.f32.xlu0 %v2217
      %v2219 = vpop.xlane.xlu0 %2218
      %v2220 = vadd.f32 %v1675, %v1677
      %2221 = vadd.xlane.f32.xlu0 %v2220
      %v2222 = vpop.xlane.xlu0 %2221
      %v2223 = vadd.f32 %v1679, %v1681
      %2224 = vadd.xlane.f32.xlu0 %v2223
      %v2225 = vpop.xlane.xlu0 %2224
      %v2226 = vadd.f32 %v1685, %v1687
      %2227 = vadd.xlane.f32.xlu0 %v2226
      %v2228 = vpop.xlane.xlu0 %2227
      %v2229 = vadd.f32 %v1689, %v1691
      %2230 = vadd.xlane.f32.xlu0 %v2229
      %v2231 = vpop.xlane.xlu0 %2230
      %v2232 = vadd.f32 %v1695, %v1697
      %2233 = vadd.xlane.f32.xlu0 %v2232
      %v2234 = vpop.xlane.xlu0 %2233
      %v2235 = vadd.f32 %v1699, %v1701
      %2236 = vadd.xlane.f32.xlu0 %v2235
      %v2237 = vpop.xlane.xlu0 %2236
      %v2238 = vadd.f32 %v1705, %v1707
      %2239 = vadd.xlane.f32.xlu0 %v2238
      %v2240 = vpop.xlane.xlu0 %2239
      %v2241 = vadd.f32 %v1709, %v1711
      %2242 = vadd.xlane.f32.xlu0 %v2241
      %v2243 = vpop.xlane.xlu0 %2242
      %v2244 = vadd.f32 %v1715, %v1717
      %2245 = vadd.xlane.f32.xlu0 %v2244
      %v2246 = vpop.xlane.xlu0 %2245
      %v2247 = vadd.f32 %v1719, %v1721
      %2248 = vadd.xlane.f32.xlu0 %v2247
      %v2249 = vpop.xlane.xlu0 %2248
      %v2250 = vadd.f32 %v1725, %v1727
      %2251 = vadd.xlane.f32.xlu0 %v2250
      %v2252 = vpop.xlane.xlu0 %2251
      %v2253 = vadd.f32 %v1729, %v1731
      %2254 = vadd.xlane.f32.xlu0 %v2253
      %v2255 = vpop.xlane.xlu0 %2254
      %v2256 = vadd.f32 %v1735, %v1737
      %2257 = vadd.xlane.f32.xlu0 %v2256
      %v2258 = vpop.xlane.xlu0 %2257
      %v2259 = vadd.f32 %v1739, %v1741
      %2260 = vadd.xlane.f32.xlu0 %v2259
      %v2261 = vpop.xlane.xlu0 %2260
      %v2262 = vadd.f32 %v1745, %v1747
      %2263 = vadd.xlane.f32.xlu0 %v2262
      %v2264 = vpop.xlane.xlu0 %2263
      %v2265 = vadd.f32 %v1749, %v1751
      %2266 = vadd.xlane.f32.xlu0 %v2265
      %v2267 = vpop.xlane.xlu0 %2266
      %v2268 = vadd.f32 %v1755, %v1757
      %2269 = vadd.xlane.f32.xlu0 %v2268
      %v2270 = vpop.xlane.xlu0 %2269
      %v2271 = vadd.f32 %v1759, %v1761
      %2272 = vadd.xlane.f32.xlu0 %v2271
      %v2273 = vpop.xlane.xlu0 %2272
      %v2274 = vadd.f32 %v1765, %v1767
      %2275 = vadd.xlane.f32.xlu0 %v2274
      %v2276 = vpop.xlane.xlu0 %2275
      %v2277 = vadd.f32 %v1769, %v1771
      %2278 = vadd.xlane.f32.xlu0 %v2277
      %v2279 = vpop.xlane.xlu0 %2278
      %v2280 = vadd.f32 %v1775, %v1777
      %2281 = vadd.xlane.f32.xlu0 %v2280
      %v2282 = vpop.xlane.xlu0 %2281
      %v2283 = vadd.f32 %v1779, %v1781
      %2284 = vadd.xlane.f32.xlu0 %v2283
      %v2285 = vpop.xlane.xlu0 %2284
      %v2286 = vadd.f32 %v1785, %v1787
      %2287 = vadd.xlane.f32.xlu0 %v2286
      %v2288 = vpop.xlane.xlu0 %2287
      %v2289 = vadd.f32 %v1789, %v1791
      %2290 = vadd.xlane.f32.xlu0 %v2289
      %v2291 = vpop.xlane.xlu0 %2290
      %v2292 = vadd.f32 %v1795, %v1797
      %2293 = vadd.xlane.f32.xlu0 %v2292
      %v2294 = vpop.xlane.xlu0 %2293
      %v2295 = vadd.f32 %v1799, %v1801
      %2296 = vadd.xlane.f32.xlu0 %v2295
      %v2297 = vpop.xlane.xlu0 %2296
      %v2298 = vmul.f32 %v2204, %v807
      %v2299 = vmul.f32 %v2207, %v807
      %v2300 = vmul.f32 %v2210, %v807
      %v2301 = vmul.f32 %v2213, %v807
      %v2302 = vmul.f32 %v2216, %v807
      %v2303 = vmul.f32 %v2219, %v807
      %v2304 = vmul.f32 %v2222, %v807
      %v2305 = vmul.f32 %v2225, %v807
      %v2306 = vmul.f32 %v2228, %v807
      %v2307 = vmul.f32 %v2231, %v807
      %v2308 = vmul.f32 %v2234, %v807
      %v2309 = vmul.f32 %v2237, %v807
      %v2310 = vmul.f32 %v2240, %v807
      %v2311 = vmul.f32 %v2243, %v807
      %v2312 = vmul.f32 %v2246, %v807
      %v2313 = vmul.f32 %v2249, %v807
      %v2314 = vmul.f32 %v2252, %v807
      %v2315 = vmul.f32 %v2255, %v807
      %v2316 = vmul.f32 %v2258, %v807
      %v2317 = vmul.f32 %v2261, %v807
      %v2318 = vmul.f32 %v2264, %v807
      %v2319 = vmul.f32 %v2267, %v807
      %v2320 = vmul.f32 %v2270, %v807
      %v2321 = vmul.f32 %v2273, %v807
      %v2322 = vmul.f32 %v2276, %v807
      %v2323 = vmul.f32 %v2279, %v807
      %v2324 = vmul.f32 %v2282, %v807
      %v2325 = vmul.f32 %v2285, %v807
      %v2326 = vmul.f32 %v2288, %v807
      %v2327 = vmul.f32 %v2291, %v807
      %v2328 = vmul.f32 %v2294, %v807
      %v2329 = vmul.f32 %v2297, %v807
      %v2330 = vsub.f32 %v1645, %v2298
      %v2331 = vsub.f32 %v1647, %v2298
      %v2332 = vsub.f32 %v1649, %v2299
      %v2333 = vsub.f32 %v1651, %v2299
      %v2334 = vsub.f32 %v1655, %v2300
      %v2335 = vsub.f32 %v1657, %v2300
      %v2336 = vsub.f32 %v1659, %v2301
      %v2337 = vsub.f32 %v1661, %v2301
      %v2338 = vsub.f32 %v1665, %v2302
      %v2339 = vsub.f32 %v1667, %v2302
      %v2340 = vsub.f32 %v1669, %v2303
      %v2341 = vsub.f32 %v1671, %v2303
      %v2342 = vsub.f32 %v1675, %v2304
      %v2343 = vsub.f32 %v1677, %v2304
      %v2344 = vsub.f32 %v1679, %v2305
      %v2345 = vsub.f32 %v1681, %v2305
      %v2346 = vsub.f32 %v1685, %v2306
      %v2347 = vsub.f32 %v1687, %v2306
      %v2348 = vsub.f32 %v1689, %v2307
      %v2349 = vsub.f32 %v1691, %v2307
      %v2350 = vsub.f32 %v1695, %v2308
      %v2351 = vsub.f32 %v1697, %v2308
      %v2352 = vsub.f32 %v1699, %v2309
      %v2353 = vsub.f32 %v1701, %v2309
      %v2354 = vsub.f32 %v1705, %v2310
      %v2355 = vsub.f32 %v1707, %v2310
      %v2356 = vsub.f32 %v1709, %v2311
      %v2357 = vsub.f32 %v1711, %v2311
      %v2358 = vsub.f32 %v1715, %v2312
      %v2359 = vsub.f32 %v1717, %v2312
      %v2360 = vsub.f32 %v1719, %v2313
      %v2361 = vsub.f32 %v1721, %v2313
      %v2362 = vsub.f32 %v1725, %v2314
      %v2363 = vsub.f32 %v1727, %v2314
      %v2364 = vsub.f32 %v1729, %v2315
      %v2365 = vsub.f32 %v1731, %v2315
      %v2366 = vsub.f32 %v1735, %v2316
      %v2367 = vsub.f32 %v1737, %v2316
      %v2368 = vsub.f32 %v1739, %v2317
      %v2369 = vsub.f32 %v1741, %v2317
      %v2370 = vsub.f32 %v1745, %v2318
      %v2371 = vsub.f32 %v1747, %v2318
      %v2372 = vsub.f32 %v1749, %v2319
      %v2373 = vsub.f32 %v1751, %v2319
      %v2374 = vsub.f32 %v1755, %v2320
      %v2375 = vsub.f32 %v1757, %v2320
      %v2376 = vsub.f32 %v1759, %v2321
      %v2377 = vsub.f32 %v1761, %v2321
      %v2378 = vsub.f32 %v1765, %v2322
      %v2379 = vsub.f32 %v1767, %v2322
      %v2380 = vsub.f32 %v1769, %v2323
      %v2381 = vsub.f32 %v1771, %v2323
      %v2382 = vsub.f32 %v1775, %v2324
      %v2383 = vsub.f32 %v1777, %v2324
      %v2384 = vsub.f32 %v1779, %v2325
      %v2385 = vsub.f32 %v1781, %v2325
      %v2386 = vsub.f32 %v1785, %v2326
      %v2387 = vsub.f32 %v1787, %v2326
      %v2388 = vsub.f32 %v1789, %v2327
      %v2389 = vsub.f32 %v1791, %v2327
      %v2390 = vsub.f32 %v1795, %v2328
      %v2391 = vsub.f32 %v1797, %v2328
      %v2392 = vsub.f32 %v1799, %v2329
      %v2393 = vsub.f32 %v1801, %v2329
      %v2394 = vmul.f32 %v2330, %v2330
      %v2395 = vmul.f32 %v2331, %v2331
      %v2396 = vmul.f32 %v2332, %v2332
      %v2397 = vmul.f32 %v2333, %v2333
      %v2398 = vmul.f32 %v2334, %v2334
      %v2399 = vmul.f32 %v2335, %v2335
      %v2400 = vmul.f32 %v2336, %v2336
      %v2401 = vmul.f32 %v2337, %v2337
      %v2402 = vmul.f32 %v2338, %v2338
      %v2403 = vmul.f32 %v2339, %v2339
      %v2404 = vmul.f32 %v2340, %v2340
      %v2405 = vmul.f32 %v2341, %v2341
      %v2406 = vmul.f32 %v2342, %v2342
      %v2407 = vmul.f32 %v2343, %v2343
      %v2408 = vmul.f32 %v2344, %v2344
      %v2409 = vmul.f32 %v2345, %v2345
      %v2410 = vmul.f32 %v2346, %v2346
      %v2411 = vmul.f32 %v2347, %v2347
      %v2412 = vmul.f32 %v2348, %v2348
      %v2413 = vmul.f32 %v2349, %v2349
      %v2414 = vmul.f32 %v2350, %v2350
      %v2415 = vmul.f32 %v2351, %v2351
      %v2416 = vmul.f32 %v2352, %v2352
      %v2417 = vmul.f32 %v2353, %v2353
      %v2418 = vmul.f32 %v2354, %v2354
      %v2419 = vmul.f32 %v2355, %v2355
      %v2420 = vmul.f32 %v2356, %v2356
      %v2421 = vmul.f32 %v2357, %v2357
      %v2422 = vmul.f32 %v2358, %v2358
      %v2423 = vmul.f32 %v2359, %v2359
      %v2424 = vmul.f32 %v2360, %v2360
      %v2425 = vmul.f32 %v2361, %v2361
      %v2426 = vmul.f32 %v2362, %v2362
      %v2427 = vmul.f32 %v2363, %v2363
      %v2428 = vmul.f32 %v2364, %v2364
      %v2429 = vmul.f32 %v2365, %v2365
      %v2430 = vmul.f32 %v2366, %v2366
      %v2431 = vmul.f32 %v2367, %v2367
      %v2432 = vmul.f32 %v2368, %v2368
      %v2433 = vmul.f32 %v2369, %v2369
      %v2434 = vmul.f32 %v2370, %v2370
      %v2435 = vmul.f32 %v2371, %v2371
      %v2436 = vmul.f32 %v2372, %v2372
      %v2437 = vmul.f32 %v2373, %v2373
      %v2438 = vmul.f32 %v2374, %v2374
      %v2439 = vmul.f32 %v2375, %v2375
      %v2440 = vmul.f32 %v2376, %v2376
      %v2441 = vmul.f32 %v2377, %v2377
      %v2442 = vmul.f32 %v2378, %v2378
      %v2443 = vmul.f32 %v2379, %v2379
      %v2444 = vmul.f32 %v2380, %v2380
      %v2445 = vmul.f32 %v2381, %v2381
      %v2446 = vmul.f32 %v2382, %v2382
      %v2447 = vmul.f32 %v2383, %v2383
      %v2448 = vmul.f32 %v2384, %v2384
      %v2449 = vmul.f32 %v2385, %v2385
      %v2450 = vmul.f32 %v2386, %v2386
      %v2451 = vmul.f32 %v2387, %v2387
      %v2452 = vmul.f32 %v2388, %v2388
      %v2453 = vmul.f32 %v2389, %v2389
      %v2454 = vmul.f32 %v2390, %v2390
      %v2455 = vmul.f32 %v2391, %v2391
      %v2456 = vmul.f32 %v2392, %v2392
      %v2457 = vmul.f32 %v2393, %v2393
      %v2458 = vadd.f32 %v2394, %v2395
      %2459 = vadd.xlane.f32.xlu0 %v2458
      %v2460 = vpop.xlane.xlu0 %2459
      %v2461 = vadd.f32 %v2396, %v2397
      %2462 = vadd.xlane.f32.xlu0 %v2461
      %v2463 = vpop.xlane.xlu0 %2462
      %v2464 = vadd.f32 %v2398, %v2399
      %2465 = vadd.xlane.f32.xlu0 %v2464
      %v2466 = vpop.xlane.xlu0 %2465
      %v2467 = vadd.f32 %v2400, %v2401
      %2468 = vadd.xlane.f32.xlu0 %v2467
      %v2469 = vpop.xlane.xlu0 %2468
      %v2470 = vadd.f32 %v2402, %v2403
      %2471 = vadd.xlane.f32.xlu0 %v2470
      %v2472 = vpop.xlane.xlu0 %2471
      %v2473 = vadd.f32 %v2404, %v2405
      %2474 = vadd.xlane.f32.xlu0 %v2473
      %v2475 = vpop.xlane.xlu0 %2474
      %v2476 = vadd.f32 %v2406, %v2407
      %2477 = vadd.xlane.f32.xlu0 %v2476
      %v2478 = vpop.xlane.xlu0 %2477
      %v2479 = vadd.f32 %v2408, %v2409
      %2480 = vadd.xlane.f32.xlu0 %v2479
      %v2481 = vpop.xlane.xlu0 %2480
      %v2482 = vadd.f32 %v2410, %v2411
      %2483 = vadd.xlane.f32.xlu0 %v2482
      %v2484 = vpop.xlane.xlu0 %2483
      %v2485 = vadd.f32 %v2412, %v2413
      %2486 = vadd.xlane.f32.xlu0 %v2485
      %v2487 = vpop.xlane.xlu0 %2486
      %v2488 = vadd.f32 %v2414, %v2415
      %2489 = vadd.xlane.f32.xlu0 %v2488
      %v2490 = vpop.xlane.xlu0 %2489
      %v2491 = vadd.f32 %v2416, %v2417
      %2492 = vadd.xlane.f32.xlu0 %v2491
      %v2493 = vpop.xlane.xlu0 %2492
      %v2494 = vadd.f32 %v2418, %v2419
      %2495 = vadd.xlane.f32.xlu0 %v2494
      %v2496 = vpop.xlane.xlu0 %2495
      %v2497 = vadd.f32 %v2420, %v2421
      %2498 = vadd.xlane.f32.xlu0 %v2497
      %v2499 = vpop.xlane.xlu0 %2498
      %v2500 = vadd.f32 %v2422, %v2423
      %2501 = vadd.xlane.f32.xlu0 %v2500
      %v2502 = vpop.xlane.xlu0 %2501
      %v2503 = vadd.f32 %v2424, %v2425
      %2504 = vadd.xlane.f32.xlu0 %v2503
      %v2505 = vpop.xlane.xlu0 %2504
      %v2506 = vadd.f32 %v2426, %v2427
      %2507 = vadd.xlane.f32.xlu0 %v2506
      %v2508 = vpop.xlane.xlu0 %2507
      %v2509 = vadd.f32 %v2428, %v2429
      %2510 = vadd.xlane.f32.xlu0 %v2509
      %v2511 = vpop.xlane.xlu0 %2510
      %v2512 = vadd.f32 %v2430, %v2431
      %2513 = vadd.xlane.f32.xlu0 %v2512
      %v2514 = vpop.xlane.xlu0 %2513
      %v2515 = vadd.f32 %v2432, %v2433
      %2516 = vadd.xlane.f32.xlu0 %v2515
      %v2517 = vpop.xlane.xlu0 %2516
      %v2518 = vadd.f32 %v2434, %v2435
      %2519 = vadd.xlane.f32.xlu0 %v2518
      %v2520 = vpop.xlane.xlu0 %2519
      %v2521 = vadd.f32 %v2436, %v2437
      %2522 = vadd.xlane.f32.xlu0 %v2521
      %v2523 = vpop.xlane.xlu0 %2522
      %v2524 = vadd.f32 %v2438, %v2439
      %2525 = vadd.xlane.f32.xlu0 %v2524
      %v2526 = vpop.xlane.xlu0 %2525
      %v2527 = vadd.f32 %v2440, %v2441
      %2528 = vadd.xlane.f32.xlu0 %v2527
      %v2529 = vpop.xlane.xlu0 %2528
      %v2530 = vadd.f32 %v2442, %v2443
      %2531 = vadd.xlane.f32.xlu0 %v2530
      %v2532 = vpop.xlane.xlu0 %2531
      %v2533 = vadd.f32 %v2444, %v2445
      %2534 = vadd.xlane.f32.xlu0 %v2533
      %v2535 = vpop.xlane.xlu0 %2534
      %v2536 = vadd.f32 %v2446, %v2447
      %2537 = vadd.xlane.f32.xlu0 %v2536
      %v2538 = vpop.xlane.xlu0 %2537
      %v2539 = vadd.f32 %v2448, %v2449
      %2540 = vadd.xlane.f32.xlu0 %v2539
      %v2541 = vpop.xlane.xlu0 %2540
      %v2542 = vadd.f32 %v2450, %v2451
      %2543 = vadd.xlane.f32.xlu0 %v2542
      %v2544 = vpop.xlane.xlu0 %2543
      %v2545 = vadd.f32 %v2452, %v2453
      %2546 = vadd.xlane.f32.xlu0 %v2545
      %v2547 = vpop.xlane.xlu0 %2546
      %v2548 = vadd.f32 %v2454, %v2455
      %2549 = vadd.xlane.f32.xlu0 %v2548
      %v2550 = vpop.xlane.xlu0 %2549
      %v2551 = vadd.f32 %v2456, %v2457
      %2552 = vadd.xlane.f32.xlu0 %v2551
      %v2553 = vpop.xlane.xlu0 %2552
      %v2554 = vmul.f32 %v2460, %v807
      %v2555 = vmul.f32 %v2463, %v807
      %v2556 = vmul.f32 %v2466, %v807
      %v2557 = vmul.f32 %v2469, %v807
      %v2558 = vmul.f32 %v2472, %v807
      %v2559 = vmul.f32 %v2475, %v807
      %v2560 = vmul.f32 %v2478, %v807
      %v2561 = vmul.f32 %v2481, %v807
      %v2562 = vmul.f32 %v2484, %v807
      %v2563 = vmul.f32 %v2487, %v807
      %v2564 = vmul.f32 %v2490, %v807
      %v2565 = vmul.f32 %v2493, %v807
      %v2566 = vmul.f32 %v2496, %v807
      %v2567 = vmul.f32 %v2499, %v807
      %v2568 = vmul.f32 %v2502, %v807
      %v2569 = vmul.f32 %v2505, %v807
      %v2570 = vmul.f32 %v2508, %v807
      %v2571 = vmul.f32 %v2511, %v807
      %v2572 = vmul.f32 %v2514, %v807
      %v2573 = vmul.f32 %v2517, %v807
      %v2574 = vmul.f32 %v2520, %v807
      %v2575 = vmul.f32 %v2523, %v807
      %v2576 = vmul.f32 %v2526, %v807
      %v2577 = vmul.f32 %v2529, %v807
      %v2578 = vmul.f32 %v2532, %v807
      %v2579 = vmul.f32 %v2535, %v807
      %v2580 = vmul.f32 %v2538, %v807
      %v2581 = vmul.f32 %v2541, %v807
      %v2582 = vmul.f32 %v2544, %v807
      %v2583 = vmul.f32 %v2547, %v807
      %v2584 = vmul.f32 %v2550, %v807
      %v2585 = vmul.f32 %v2553, %v807
      %v2586 = vadd.f32 %v2554, 1e-06
      %v2587 = vadd.f32 %v2555, 1e-06
      %v2588 = vadd.f32 %v2556, 1e-06
      %v2589 = vadd.f32 %v2557, 1e-06
      %v2590 = vadd.f32 %v2558, 1e-06
      %v2591 = vadd.f32 %v2559, 1e-06
      %v2592 = vadd.f32 %v2560, 1e-06
      %v2593 = vadd.f32 %v2561, 1e-06
      %v2594 = vadd.f32 %v2562, 1e-06
      %v2595 = vadd.f32 %v2563, 1e-06
      %v2596 = vadd.f32 %v2564, 1e-06
      %v2597 = vadd.f32 %v2565, 1e-06
      %v2598 = vadd.f32 %v2566, 1e-06
      %v2599 = vadd.f32 %v2567, 1e-06
      %v2600 = vadd.f32 %v2568, 1e-06
      %v2601 = vadd.f32 %v2569, 1e-06
      %v2602 = vadd.f32 %v2570, 1e-06
      %v2603 = vadd.f32 %v2571, 1e-06
      %v2604 = vadd.f32 %v2572, 1e-06
      %v2605 = vadd.f32 %v2573, 1e-06
      %v2606 = vadd.f32 %v2574, 1e-06
      %v2607 = vadd.f32 %v2575, 1e-06
      %v2608 = vadd.f32 %v2576, 1e-06
      %v2609 = vadd.f32 %v2577, 1e-06
      %v2610 = vadd.f32 %v2578, 1e-06
      %v2611 = vadd.f32 %v2579, 1e-06
      %v2612 = vadd.f32 %v2580, 1e-06
      %v2613 = vadd.f32 %v2581, 1e-06
      %v2614 = vadd.f32 %v2582, 1e-06
      %v2615 = vadd.f32 %v2583, 1e-06
      %v2616 = vadd.f32 %v2584, 1e-06
      %v2617 = vadd.f32 %v2585, 1e-06
      %v2618 = vrsqrt.pop %v2586
      %v2619 = vrsqrt.pop %v2587
      %v2620 = vrsqrt.pop %v2588
      %v2621 = vrsqrt.pop %v2589
      %v2622 = vrsqrt.pop %v2590
      %v2623 = vrsqrt.pop %v2591
      %v2624 = vrsqrt.pop %v2592
      %v2625 = vrsqrt.pop %v2593
      %v2626 = vrsqrt.pop %v2594
      %v2627 = vrsqrt.pop %v2595
      %v2628 = vrsqrt.pop %v2596
      %v2629 = vrsqrt.pop %v2597
      %v2630 = vrsqrt.pop %v2598
      %v2631 = vrsqrt.pop %v2599
      %v2632 = vrsqrt.pop %v2600
      %v2633 = vrsqrt.pop %v2601
      %v2634 = vrsqrt.pop %v2602
      %v2635 = vrsqrt.pop %v2603
      %v2636 = vrsqrt.pop %v2604
      %v2637 = vrsqrt.pop %v2605
      %v2638 = vrsqrt.pop %v2606
      %v2639 = vrsqrt.pop %v2607
      %v2640 = vrsqrt.pop %v2608
      %v2641 = vrsqrt.pop %v2609
      %v2642 = vrsqrt.pop %v2610
      %v2643 = vrsqrt.pop %v2611
      %v2644 = vrsqrt.pop %v2612
      %v2645 = vrsqrt.pop %v2613
      %v2646 = vrsqrt.pop %v2614
      %v2647 = vrsqrt.pop %v2615
      %v2648 = vrsqrt.pop %v2616
      %v2649 = vrsqrt.pop %v2617
      %v2650 = vmul.f32 %v2330, %v2618
      %v2651 = vmul.f32 %v2331, %v2618
      %v2652 = vmul.f32 %v2332, %v2619
      %v2653 = vmul.f32 %v2333, %v2619
      %v2654 = vmul.f32 %v2334, %v2620
      %v2655 = vmul.f32 %v2335, %v2620
      %v2656 = vmul.f32 %v2336, %v2621
      %v2657 = vmul.f32 %v2337, %v2621
      %v2658 = vmul.f32 %v2338, %v2622
      %v2659 = vmul.f32 %v2339, %v2622
      %v2660 = vmul.f32 %v2340, %v2623
      %v2661 = vmul.f32 %v2341, %v2623
      %v2662 = vmul.f32 %v2342, %v2624
      %v2663 = vmul.f32 %v2343, %v2624
      %v2664 = vmul.f32 %v2344, %v2625
      %v2665 = vmul.f32 %v2345, %v2625
      %v2666 = vmul.f32 %v2346, %v2626
      %v2667 = vmul.f32 %v2347, %v2626
      %v2668 = vmul.f32 %v2348, %v2627
      %v2669 = vmul.f32 %v2349, %v2627
      %v2670 = vmul.f32 %v2350, %v2628
      %v2671 = vmul.f32 %v2351, %v2628
      %v2672 = vmul.f32 %v2352, %v2629
      %v2673 = vmul.f32 %v2353, %v2629
      %v2674 = vmul.f32 %v2354, %v2630
      %v2675 = vmul.f32 %v2355, %v2630
      %v2676 = vmul.f32 %v2356, %v2631
      %v2677 = vmul.f32 %v2357, %v2631
      %v2678 = vmul.f32 %v2358, %v2632
      %v2679 = vmul.f32 %v2359, %v2632
      %v2680 = vmul.f32 %v2360, %v2633
      %v2681 = vmul.f32 %v2361, %v2633
      %v2682 = vmul.f32 %v2362, %v2634
      %v2683 = vmul.f32 %v2363, %v2634
      %v2684 = vmul.f32 %v2364, %v2635
      %v2685 = vmul.f32 %v2365, %v2635
      %v2686 = vmul.f32 %v2366, %v2636
      %v2687 = vmul.f32 %v2367, %v2636
      %v2688 = vmul.f32 %v2368, %v2637
      %v2689 = vmul.f32 %v2369, %v2637
      %v2690 = vmul.f32 %v2370, %v2638
      %v2691 = vmul.f32 %v2371, %v2638
      %v2692 = vmul.f32 %v2372, %v2639
      %v2693 = vmul.f32 %v2373, %v2639
      %v2694 = vmul.f32 %v2374, %v2640
      %v2695 = vmul.f32 %v2375, %v2640
      %v2696 = vmul.f32 %v2376, %v2641
      %v2697 = vmul.f32 %v2377, %v2641
      %v2698 = vmul.f32 %v2378, %v2642
      %v2699 = vmul.f32 %v2379, %v2642
      %v2700 = vmul.f32 %v2380, %v2643
      %v2701 = vmul.f32 %v2381, %v2643
      %v2702 = vmul.f32 %v2382, %v2644
      %v2703 = vmul.f32 %v2383, %v2644
      %v2704 = vmul.f32 %v2384, %v2645
      %v2705 = vmul.f32 %v2385, %v2645
      %v2706 = vmul.f32 %v2386, %v2646
      %v2707 = vmul.f32 %v2387, %v2646
      %v2708 = vmul.f32 %v2388, %v2647
      %v2709 = vmul.f32 %v2389, %v2647
      %v2710 = vmul.f32 %v2390, %v2648
      %v2711 = vmul.f32 %v2391, %v2648
      %v2712 = vmul.f32 %v2392, %v2649
      %v2713 = vmul.f32 %v2393, %v2649
      %v2715 = vlaneseq
      %v2716 = vshrl.u32 %v2715, 7
      %v2717 = vsub.s32 0, %v2716
      %v2718 = vrot.slane %v2200, %v2717
      %v2719 = vlaneseq
      %v2720 = vshrl.u32 %v2719, 7
      %v2721 = vsub.s32 1, %v2720
      %v2722 = vrot.slane %v2200, %v2721
      %v2725 = vmul.f32 %v2650, %v2718
      %v2726 = vmul.f32 %v2651, %v2722
      %v2727 = vmul.f32 %v2652, %v2718
      %v2728 = vmul.f32 %v2653, %v2722
      %v2729 = vmul.f32 %v2654, %v2718
      %v2730 = vmul.f32 %v2655, %v2722
      %v2731 = vmul.f32 %v2656, %v2718
      %v2732 = vmul.f32 %v2657, %v2722
      %v2733 = vmul.f32 %v2658, %v2718
      %v2734 = vmul.f32 %v2659, %v2722
      %v2735 = vmul.f32 %v2660, %v2718
      %v2736 = vmul.f32 %v2661, %v2722
      %v2737 = vmul.f32 %v2662, %v2718
      %v2738 = vmul.f32 %v2663, %v2722
      %v2739 = vmul.f32 %v2664, %v2718
      %v2740 = vmul.f32 %v2665, %v2722
      %v2741 = vmul.f32 %v2666, %v2718
      %v2742 = vmul.f32 %v2667, %v2722
      %v2743 = vmul.f32 %v2668, %v2718
      %v2744 = vmul.f32 %v2669, %v2722
      %v2745 = vmul.f32 %v2670, %v2718
      %v2746 = vmul.f32 %v2671, %v2722
      %v2747 = vmul.f32 %v2672, %v2718
      %v2748 = vmul.f32 %v2673, %v2722
      %v2749 = vmul.f32 %v2674, %v2718
      %v2750 = vmul.f32 %v2675, %v2722
      %v2751 = vmul.f32 %v2676, %v2718
      %v2752 = vmul.f32 %v2677, %v2722
      %v2753 = vmul.f32 %v2678, %v2718
      %v2754 = vmul.f32 %v2679, %v2722
      %v2755 = vmul.f32 %v2680, %v2718
      %v2756 = vmul.f32 %v2681, %v2722
      %v2757 = vmul.f32 %v2682, %v2718
      %v2758 = vmul.f32 %v2683, %v2722
      %v2759 = vmul.f32 %v2684, %v2718
      %v2760 = vmul.f32 %v2685, %v2722
      %v2761 = vmul.f32 %v2686, %v2718
      %v2762 = vmul.f32 %v2687, %v2722
      %v2763 = vmul.f32 %v2688, %v2718
      %v2764 = vmul.f32 %v2689, %v2722
      %v2765 = vmul.f32 %v2690, %v2718
      %v2766 = vmul.f32 %v2691, %v2722
      %v2767 = vmul.f32 %v2692, %v2718
      %v2768 = vmul.f32 %v2693, %v2722
      %v2769 = vmul.f32 %v2694, %v2718
      %v2770 = vmul.f32 %v2695, %v2722
      %v2771 = vmul.f32 %v2696, %v2718
      %v2772 = vmul.f32 %v2697, %v2722
      %v2773 = vmul.f32 %v2698, %v2718
      %v2774 = vmul.f32 %v2699, %v2722
      %v2775 = vmul.f32 %v2700, %v2718
      %v2776 = vmul.f32 %v2701, %v2722
      %v2777 = vmul.f32 %v2702, %v2718
      %v2778 = vmul.f32 %v2703, %v2722
      %v2779 = vmul.f32 %v2704, %v2718
      %v2780 = vmul.f32 %v2705, %v2722
      %v2781 = vmul.f32 %v2706, %v2718
      %v2782 = vmul.f32 %v2707, %v2722
      %v2783 = vmul.f32 %v2708, %v2718
      %v2784 = vmul.f32 %v2709, %v2722
      %v2785 = vmul.f32 %v2710, %v2718
      %v2786 = vmul.f32 %v2711, %v2722
      %v2787 = vmul.f32 %v2712, %v2718
      %v2788 = vmul.f32 %v2713, %v2722
      %v2790 = vlaneseq
      %v2791 = vshrl.u32 %v2790, 7
      %v2792 = vsub.s32 0, %v2791
      %v2793 = vrot.slane %v2201, %v2792
      %v2794 = vlaneseq
      %v2795 = vshrl.u32 %v2794, 7
      %v2796 = vsub.s32 1, %v2795
      %v2797 = vrot.slane %v2201, %v2796
      %v2800 = vadd.f32 %v2725, %v2793
      %v2801 = vadd.f32 %v2726, %v2797
      %v2802 = vadd.f32 %v2727, %v2793
      %v2803 = vadd.f32 %v2728, %v2797
      %v2804 = vadd.f32 %v2729, %v2793
      %v2805 = vadd.f32 %v2730, %v2797
      %v2806 = vadd.f32 %v2731, %v2793
      %v2807 = vadd.f32 %v2732, %v2797
      %v2808 = vadd.f32 %v2733, %v2793
      %v2809 = vadd.f32 %v2734, %v2797
      %v2810 = vadd.f32 %v2735, %v2793
      %v2811 = vadd.f32 %v2736, %v2797
      %v2812 = vadd.f32 %v2737, %v2793
      %v2813 = vadd.f32 %v2738, %v2797
      %v2814 = vadd.f32 %v2739, %v2793
      %v2815 = vadd.f32 %v2740, %v2797
      %v2816 = vadd.f32 %v2741, %v2793
      %v2817 = vadd.f32 %v2742, %v2797
      %v2818 = vadd.f32 %v2743, %v2793
      %v2819 = vadd.f32 %v2744, %v2797
      %v2820 = vadd.f32 %v2745, %v2793
      %v2821 = vadd.f32 %v2746, %v2797
      %v2822 = vadd.f32 %v2747, %v2793
      %v2823 = vadd.f32 %v2748, %v2797
      %v2824 = vadd.f32 %v2749, %v2793
      %v2825 = vadd.f32 %v2750, %v2797
      %v2826 = vadd.f32 %v2751, %v2793
      %v2827 = vadd.f32 %v2752, %v2797
      %v2828 = vadd.f32 %v2753, %v2793
      %v2829 = vadd.f32 %v2754, %v2797
      %v2830 = vadd.f32 %v2755, %v2793
      %v2831 = vadd.f32 %v2756, %v2797
      %v2832 = vadd.f32 %v2757, %v2793
      %v2833 = vadd.f32 %v2758, %v2797
      %v2834 = vadd.f32 %v2759, %v2793
      %v2835 = vadd.f32 %v2760, %v2797
      %v2836 = vadd.f32 %v2761, %v2793
      %v2837 = vadd.f32 %v2762, %v2797
      %v2838 = vadd.f32 %v2763, %v2793
      %v2839 = vadd.f32 %v2764, %v2797
      %v2840 = vadd.f32 %v2765, %v2793
      %v2841 = vadd.f32 %v2766, %v2797
      %v2842 = vadd.f32 %v2767, %v2793
      %v2843 = vadd.f32 %v2768, %v2797
      %v2844 = vadd.f32 %v2769, %v2793
      %v2845 = vadd.f32 %v2770, %v2797
      %v2846 = vadd.f32 %v2771, %v2793
      %v2847 = vadd.f32 %v2772, %v2797
      %v2848 = vadd.f32 %v2773, %v2793
      %v2849 = vadd.f32 %v2774, %v2797
      %v2850 = vadd.f32 %v2775, %v2793
      %v2851 = vadd.f32 %v2776, %v2797
      %v2852 = vadd.f32 %v2777, %v2793
      %v2853 = vadd.f32 %v2778, %v2797
      %v2854 = vadd.f32 %v2779, %v2793
      %v2855 = vadd.f32 %v2780, %v2797
      %v2856 = vadd.f32 %v2781, %v2793
      %v2857 = vadd.f32 %v2782, %v2797
      %v2858 = vadd.f32 %v2783, %v2793
      %v2859 = vadd.f32 %v2784, %v2797
      %v2860 = vadd.f32 %v2785, %v2793
      %v2861 = vadd.f32 %v2786, %v2797
      %v2862 = vadd.f32 %v2787, %v2793
      %v2863 = vadd.f32 %v2788, %v2797
      %v2864 = vld [vmem:[%s592] sm:$0x3]
      %v2865 = vld [vmem:[%s623] sm:$0xff]
      %v2866 = vld [vmem:[%s623 + $0x8] sm:$0xff]
      %v2867 = vld [vmem:[%s623 + $0x10] sm:$0xff]
      %v2868 = vld [vmem:[%s623 + $0x18] sm:$0xff]
      %v2869 = vld [vmem:[%s623 + $0x20] sm:$0xff]
      %v2870 = vld [vmem:[%s623 + $0x28] sm:$0xff]
      %v2871 = vld [vmem:[%s623 + $0x30] sm:$0xff]
      %v2872 = vld [vmem:[%s623 + $0x38] sm:$0xff]
      %v2873 = vld [vmem:[%s623 + $0x40] sm:$0xff]
      %v2874 = vld [vmem:[%s623 + $0x48] sm:$0xff]
      %v2875 = vld [vmem:[%s623 + $0x50] sm:$0xff]
      %v2876 = vld [vmem:[%s623 + $0x58] sm:$0xff]
      %v2877 = vld [vmem:[%s623 + $0x60] sm:$0xff]
      %v2878 = vld [vmem:[%s623 + $0x68] sm:$0xff]
      %v2879 = vld [vmem:[%s623 + $0x70] sm:$0xff]
      %v2880 = vld [vmem:[%s623 + $0x78] sm:$0xff]
      %v2881 = vld [vmem:[%s623 + $0x80] sm:$0xff]
      %v2882 = vld [vmem:[%s623 + $0x88] sm:$0xff]
      %v2883 = vld [vmem:[%s623 + $0x90] sm:$0xff]
      %v2884 = vld [vmem:[%s623 + $0x98] sm:$0xff]
      %v2885 = vld [vmem:[%s623 + $0xa0] sm:$0xff]
      %v2886 = vld [vmem:[%s623 + $0xa8] sm:$0xff]
      %v2887 = vld [vmem:[%s623 + $0xb0] sm:$0xff]
      %v2888 = vld [vmem:[%s623 + $0xb8] sm:$0xff]
      %v2889 = vld [vmem:[%s623 + $0xc0] sm:$0xff]
      %v2890 = vld [vmem:[%s623 + $0xc8] sm:$0xff]
      %v2891 = vld [vmem:[%s623 + $0xd0] sm:$0xff]
      %v2892 = vld [vmem:[%s623 + $0xd8] sm:$0xff]
      %v2893 = vld [vmem:[%s623 + $0xe0] sm:$0xff]
      %v2894 = vld [vmem:[%s623 + $0xe8] sm:$0xff]
      %v2895 = vld [vmem:[%s623 + $0xf0] sm:$0xff]
      %v2896 = vld [vmem:[%s623 + $0xf8] sm:$0xff]
      %v2897 = vld [vmem:[%s627] sm:$0x3]
      %v2898 = vpack.c.bf16 %v2864, %v2864
      %v2899 = vpack.c.bf16 %v2802, %v2800
      %v2900 = vpack.c.bf16 %v2806, %v2804
      %v2901 = vpack.c.bf16 %v2810, %v2808
      %v2902 = vpack.c.bf16 %v2814, %v2812
      %v2903 = vpack.c.bf16 %v2818, %v2816
      %v2904 = vpack.c.bf16 %v2822, %v2820
      %v2905 = vpack.c.bf16 %v2826, %v2824
      %v2906 = vpack.c.bf16 %v2830, %v2828
      %v2907 = vpack.c.bf16 %v2834, %v2832
      %v2908 = vpack.c.bf16 %v2838, %v2836
      %v2909 = vpack.c.bf16 %v2842, %v2840
      %v2910 = vpack.c.bf16 %v2846, %v2844
      %v2911 = vpack.c.bf16 %v2850, %v2848
      %v2912 = vpack.c.bf16 %v2854, %v2852
      %v2913 = vpack.c.bf16 %v2858, %v2856
      %v2914 = vpack.c.bf16 %v2862, %v2860
      %v2915 = vpack.c.bf16 %v2046, %v2042
      %v2916 = vpack.c.bf16 %v2056, %v2052
      %v2917 = vpack.c.bf16 %v2066, %v2062
      %v2918 = vpack.c.bf16 %v2076, %v2072
      %v2919 = vpack.c.bf16 %v2086, %v2082
      %v2920 = vpack.c.bf16 %v2096, %v2092
      %v2921 = vpack.c.bf16 %v2106, %v2102
      %v2922 = vpack.c.bf16 %v2116, %v2112
      %v2923 = vpack.c.bf16 %v2126, %v2122
      %v2924 = vpack.c.bf16 %v2136, %v2132
      %v2925 = vpack.c.bf16 %v2146, %v2142
      %v2926 = vpack.c.bf16 %v2156, %v2152
      %v2927 = vpack.c.bf16 %v2166, %v2162
      %v2928 = vpack.c.bf16 %v2176, %v2172
      %v2929 = vpack.c.bf16 %v2186, %v2182
      %v2930 = vpack.c.bf16 %v2196, %v2192
      %2931 = vmatprep.subr.bf16.mxu0 0
      %2932 = vmatpush1.bf16.xpose.msra.mxu0 %v2899
      %2933 = vmatprep.subr.bf16.mxu0 0
      %2934 = vmatpush1.bf16.xpose.msra.mxu0 %v2900
      %2935 = vmatprep.subr.bf16.mxu0 0
      %2936 = vmatpush1.bf16.xpose.msra.mxu0 %v2901
      %2937 = vmatprep.subr.bf16.mxu0 0
      %2938 = vmatpush1.bf16.xpose.msra.mxu0 %v2902
      %2939 = vmatprep.subr.bf16.mxu0 0
      %2940 = vmatpush1.bf16.xpose.msra.mxu0 %v2903
      %2941 = vmatprep.subr.bf16.mxu0 0
      %2942 = vmatpush1.bf16.xpose.msra.mxu0 %v2904
      %2943 = vmatprep.subr.bf16.mxu0 0
      %2944 = vmatpush1.bf16.xpose.msra.mxu0 %v2905
      %2945 = vmatprep.subr.bf16.mxu0 0
      %2946 = vmatpush1.bf16.xpose.msra.mxu0 %v2906
      %2947 = vmatprep.subr.bf16.mxu0 0
      %2948 = vmatpush1.bf16.xpose.msra.mxu0 %v2907
      %2949 = vmatprep.subr.bf16.mxu0 0
      %2950 = vmatpush1.bf16.xpose.msra.mxu0 %v2908
      %2951 = vmatprep.subr.bf16.mxu0 0
      %2952 = vmatpush1.bf16.xpose.msra.mxu0 %v2909
      %2953 = vmatprep.subr.bf16.mxu0 0
      %2954 = vmatpush1.bf16.xpose.msra.mxu0 %v2910
      %2955 = vmatprep.subr.bf16.mxu0 0
      %2956 = vmatpush1.bf16.xpose.msra.mxu0 %v2911
      %2957 = vmatprep.subr.bf16.mxu0 0
      %2958 = vmatpush1.bf16.xpose.msra.mxu0 %v2912
      %2959 = vmatprep.subr.bf16.mxu0 0
      %2960 = vmatpush1.bf16.xpose.msra.mxu0 %v2913
      %2961 = vmatprep.subr.bf16.mxu0 0
      %2962 = vmatpush1.bf16.xpose.msra.mxu0 %v2914
      %2963 = vmatprep.mubr.bf16.mxu0 0
      %2964 = vmatmul.mubr.bf16.gmra.mrb[0].mxu0 %v2898
      %v2965 = vpop.f32.mrb[0].mxu0
      %v2966 = vadd.f32 0.0, %v2965
      %v2967 = vpop.f32.mrb[0].mxu0
      %v2968 = vadd.f32 0.0, %v2967
      %v2969 = vpop.f32.mrb[0].mxu0
      %v2970 = vpop.f32.mrb[0].mxu0
      %2971 = vdwg.mxu0
      %v2972 = vmul.f32 %v2966, 0.088388346
      %v2973 = vmul.f32 %v2968, 0.088388346
      %vm2974 = vcmask 1040384
      %v2975 = vsel %vm2974, %v2972, -inf
      %v2976 = vsel %vm2974, %v2973, -inf
      %v2977 = vmax.f32 %v2975, %v2976
      %2978 = vmax.xlane.f32.xlu0 %v2977
      %v2979 = vpop.xlane.xlu0 %2978
      %v2980 = vsub.f32 %v2972, %v2979
      %v2981 = vsub.f32 %v2973, %v2979
      %v2982 = vmul.f32 %v2980, 1.442695
      %v2983 = vpow.pop %v2982
      %v2984 = vmul.f32 %v2981, 1.442695
      %v2985 = vpow.pop %v2984
      %v2986 = vsel %vm2974, %v2983, 0.0
      %v2987 = vsel %vm2974, %v2985, 0.0
      %v2988 = vadd.f32 %v2986, %v2987
      %2989 = vadd.xlane.f32.xlu0 %v2988
      %v2990 = vpop.xlane.xlu0 %2989
      %v2991 = vrcp.pop %v2990
      %v2992 = vmul.f32 %v2983, %v2991
      %v2993 = vmul.f32 %v2985, %v2991
      %v2994 = vpack.c.bf16 %v2992, %v2992
      %v2995 = vpack.c.bf16 %v2993, %v2993
      %2996 = vmatprep.subr.bf16.mxu0 0
      %2997 = vmatpush1.bf16.msra.mxu0 %v2915
      %2998 = vmatprep.subr.bf16.mxu0 0
      %2999 = vmatpush1.bf16.msra.mxu0 %v2916
      %3000 = vmatprep.subr.bf16.mxu0 0
      %3001 = vmatpush1.bf16.msra.mxu0 %v2917
      %3002 = vmatprep.subr.bf16.mxu0 0
      %3003 = vmatpush1.bf16.msra.mxu0 %v2918
      %3004 = vmatprep.subr.bf16.mxu0 0
      %3005 = vmatpush1.bf16.msra.mxu0 %v2919
      %3006 = vmatprep.subr.bf16.mxu0 0
      %3007 = vmatpush1.bf16.msra.mxu0 %v2920
      %3008 = vmatprep.subr.bf16.mxu0 0
      %3009 = vmatpush1.bf16.msra.mxu0 %v2921
      %3010 = vmatprep.subr.bf16.mxu0 0
      %3011 = vmatpush1.bf16.msra.mxu0 %v2922
      %3012 = vmatprep.subr.bf16.mxu0 0
      %3013 = vmatpush1.bf16.msra.mxu0 %v2923
      %3014 = vmatprep.subr.bf16.mxu0 0
      %3015 = vmatpush1.bf16.msra.mxu0 %v2924
      %3016 = vmatprep.subr.bf16.mxu0 0
      %3017 = vmatpush1.bf16.msra.mxu0 %v2925
      %3018 = vmatprep.subr.bf16.mxu0 0
      %3019 = vmatpush1.bf16.msra.mxu0 %v2926
      %3020 = vmatprep.subr.bf16.mxu0 0
      %3021 = vmatpush1.bf16.msra.mxu0 %v2927
      %3022 = vmatprep.subr.bf16.mxu0 0
      %3023 = vmatpush1.bf16.msra.mxu0 %v2928
      %3024 = vmatprep.subr.bf16.mxu0 0
      %3025 = vmatpush1.bf16.msra.mxu0 %v2929
      %3026 = vmatprep.subr.bf16.mxu0 0
      %3027 = vmatpush1.bf16.msra.mxu0 %v2930
      %3028 = vmatprep.mubr.bf16.mxu0 %v2995
      %3029 = vmatmul.mubr.bf16.gmra.mrb[0].mxu0 %v2994
      %v3030 = vpop.f32.mrb[0].mxu0
      %v3031 = vadd.f32 0.0, %v3030
      %v3032 = vpop.f32.mrb[0].mxu0
      %v3033 = vpop.f32.mrb[0].mxu0
      %v3034 = vpop.f32.mrb[0].mxu0
      %3035 = vdwg.mxu0
      %v3036 = vpack.c.bf16 %v3031, %v3031
      %v3053 = vunpack.c.l.b16 %v2865
      %v3054 = vunpack.c.h.b16 %v2865
      %v3055 = vunpack.c.l.b16 %v2866
      %v3056 = vunpack.c.h.b16 %v2866
      %v3057 = vunpack.c.l.b16 %v2867
      %v3058 = vunpack.c.h.b16 %v2867
      %v3059 = vunpack.c.l.b16 %v2868
      %v3060 = vunpack.c.h.b16 %v2868
      %v3061 = vunpack.c.l.b16 %v2869
      %v3062 = vunpack.c.h.b16 %v2869
      %v3063 = vunpack.c.l.b16 %v2870
      %v3064 = vunpack.c.h.b16 %v2870
      %v3065 = vunpack.c.l.b16 %v2871
      %v3066 = vunpack.c.h.b16 %v2871
      %v3067 = vunpack.c.l.b16 %v2872
      %v3068 = vunpack.c.h.b16 %v2872
      %v3069 = vunpack.c.l.b16 %v2873
      %v3070 = vunpack.c.h.b16 %v2873
      %v3071 = vunpack.c.l.b16 %v2874
      %v3072 = vunpack.c.h.b16 %v2874
      %v3073 = vunpack.c.l.b16 %v2875
      %v3074 = vunpack.c.h.b16 %v2875
      %v3075 = vunpack.c.l.b16 %v2876
      %v3076 = vunpack.c.h.b16 %v2876
      %v3077 = vunpack.c.l.b16 %v2877
      %v3078 = vunpack.c.h.b16 %v2877
      %v3079 = vunpack.c.l.b16 %v2878
      %v3080 = vunpack.c.h.b16 %v2878
      %v3081 = vunpack.c.l.b16 %v2879
      %v3082 = vunpack.c.h.b16 %v2879
      %v3083 = vunpack.c.l.b16 %v2880
      %v3084 = vunpack.c.h.b16 %v2880
      %v3085 = vpack.c.b16 %v3055, %v3053
      %v3086 = vpack.c.b16 %v3056, %v3054
      %v3087 = vpack.c.b16 %v3059, %v3057
      %v3088 = vpack.c.b16 %v3060, %v3058
      %v3089 = vpack.c.b16 %v3063, %v3061
      %v3090 = vpack.c.b16 %v3064, %v3062
      %v3091 = vpack.c.b16 %v3067, %v3065
      %v3092 = vpack.c.b16 %v3068, %v3066
      %v3093 = vpack.c.b16 %v3071, %v3069
      %v3094 = vpack.c.b16 %v3072, %v3070
      %v3095 = vpack.c.b16 %v3075, %v3073
      %v3096 = vpack.c.b16 %v3076, %v3074
      %v3097 = vpack.c.b16 %v3079, %v3077
      %v3098 = vpack.c.b16 %v3080, %v3078
      %v3099 = vpack.c.b16 %v3083, %v3081
      %v3100 = vpack.c.b16 %v3084, %v3082
      %3117 = vmatprep.subr.bf16.mxu0 %v3086
      %3118 = vmatpush1.bf16.msra.mxu0 %v3085
      %3119 = vmatprep.subr.bf16.mxu0 %v3088
      %3120 = vmatpush1.bf16.msra.mxu0 %v3087
      %3121 = vmatprep.subr.bf16.mxu0 %v3090
      %3122 = vmatpush1.bf16.msra.mxu0 %v3089
      %3123 = vmatprep.subr.bf16.mxu0 %v3092
      %3124 = vmatpush1.bf16.msra.mxu0 %v3091
      %3125 = vmatprep.subr.bf16.mxu0 %v3094
      %3126 = vmatpush1.bf16.msra.mxu0 %v3093
      %3127 = vmatprep.subr.bf16.mxu0 %v3096
      %3128 = vmatpush1.bf16.msra.mxu0 %v3095
      %3129 = vmatprep.subr.bf16.mxu0 %v3098
      %3130 = vmatpush1.bf16.msra.mxu0 %v3097
      %3131 = vmatprep.subr.bf16.mxu0 %v3100
      %3132 = vmatpush1.bf16.msra.mxu0 %v3099
      %3133 = vmatprep.subr.bf16.mxu0 0
      %3134 = vmatpush1.bf16.msra.mxu0 0
      %3135 = vmatprep.subr.bf16.mxu0 0
      %3136 = vmatpush1.bf16.msra.mxu0 0
      %3137 = vmatprep.subr.bf16.mxu0 0
      %3138 = vmatpush1.bf16.msra.mxu0 0
      %3139 = vmatprep.subr.bf16.mxu0 0
      %3140 = vmatpush1.bf16.msra.mxu0 0
      %3141 = vmatprep.subr.bf16.mxu0 0
      %3142 = vmatpush1.bf16.msra.mxu0 0
      %3143 = vmatprep.subr.bf16.mxu0 0
      %3144 = vmatpush1.bf16.msra.mxu0 0
      %3145 = vmatprep.subr.bf16.mxu0 0
      %3146 = vmatpush1.bf16.msra.mxu0 0
      %3147 = vmatprep.subr.bf16.mxu0 0
      %3148 = vmatpush1.bf16.msra.mxu0 0
      %3149 = vmatprep.mubr.bf16.mxu0 0
      %3150 = vmatmul.mubr.bf16.gmra.mrb[0].mxu0 %v3036
      %v3151 = vpop.f32.mrb[0].mxu0
      %v3152 = vadd.f32 0.0, %v3151
      %v3153 = vpop.f32.mrb[0].mxu0
      %v3154 = vadd.f32 0.0, %v3153
      %v3155 = vpop.f32.mrb[0].mxu0
      %v3156 = vpop.f32.mrb[0].mxu0
      %3157 = vdwg.mxu0
      %v3160 = vcombine.low %v3152, %v3154
      %v3162 = vunpack.c.l.s4 1966171168
      %v3163 = vunpack.c.0.s8 %v3162
      %v3164 = vlaneseq
      %v3165 = vshrl.u32 %v3164, 7
      %v3166 = vsub.s32 %v3163, %v3165
      %v3167 = vrot.slane %v3160, %v3166
      %v3169 = vunpack.c.l.s4 1966171168
      %v3170 = vunpack.c.0.s8 %v3169
      %v3171 = vlaneseq
      %v3172 = vshrl.u32 %v3171, 7
      %v3173 = vsub.s32 %v3170, %v3172
      %v3174 = vrot.slane %v3167, %v3173
      %v3176 = vadd.f32 %v2897, %v3174
      %v3178 = vlaneseq
      %v3179 = vshrl.u32 %v3178, 7
      %v3180 = vsub.s32 1, %v3179
      %v3181 = vrot.slane %v2864, %v3180
      %v3183 = vpack.c.bf16 %v3181, %v3181
      %v3184 = vpack.c.bf16 %v2803, %v2801
      %v3185 = vpack.c.bf16 %v2807, %v2805
      %v3186 = vpack.c.bf16 %v2811, %v2809
      %v3187 = vpack.c.bf16 %v2815, %v2813
      %v3188 = vpack.c.bf16 %v2819, %v2817
      %v3189 = vpack.c.bf16 %v2823, %v2821
      %v3190 = vpack.c.bf16 %v2827, %v2825
      %v3191 = vpack.c.bf16 %v2831, %v2829
      %v3192 = vpack.c.bf16 %v2835, %v2833
      %v3193 = vpack.c.bf16 %v2839, %v2837
      %v3194 = vpack.c.bf16 %v2843, %v2841
      %v3195 = vpack.c.bf16 %v2847, %v2845
      %v3196 = vpack.c.bf16 %v2851, %v2849
      %v3197 = vpack.c.bf16 %v2855, %v2853
      %v3198 = vpack.c.bf16 %v2859, %v2857
      %v3199 = vpack.c.bf16 %v2863, %v2861
      %v3200 = vpack.c.bf16 %v2048, %v2044
      %v3201 = vpack.c.bf16 %v2058, %v2054
      %v3202 = vpack.c.bf16 %v2068, %v2064
      %v3203 = vpack.c.bf16 %v2078, %v2074
      %v3204 = vpack.c.bf16 %v2088, %v2084
      %v3205 = vpack.c.bf16 %v2098, %v2094
      %v3206 = vpack.c.bf16 %v2108, %v2104
      %v3207 = vpack.c.bf16 %v2118, %v2114
      %v3208 = vpack.c.bf16 %v2128, %v2124
      %v3209 = vpack.c.bf16 %v2138, %v2134
      %v3210 = vpack.c.bf16 %v2148, %v2144
      %v3211 = vpack.c.bf16 %v2158, %v2154
      %v3212 = vpack.c.bf16 %v2168, %v2164
      %v3213 = vpack.c.bf16 %v2178, %v2174
      %v3214 = vpack.c.bf16 %v2188, %v2184
      %v3215 = vpack.c.bf16 %v2198, %v2194
      %3216 = vmatprep.subr.bf16.mxu0 0
      %3217 = vmatpush1.bf16.xpose.msra.mxu0 %v3184
      %3218 = vmatprep.subr.bf16.mxu0 0
      %3219 = vmatpush1.bf16.xpose.msra.mxu0 %v3185
      %3220 = vmatprep.subr.bf16.mxu0 0
      %3221 = vmatpush1.bf16.xpose.msra.mxu0 %v3186
      %3222 = vmatprep.subr.bf16.mxu0 0
      %3223 = vmatpush1.bf16.xpose.msra.mxu0 %v3187
      %3224 = vmatprep.subr.bf16.mxu0 0
      %3225 = vmatpush1.bf16.xpose.msra.mxu0 %v3188
      %3226 = vmatprep.subr.bf16.mxu0 0
      %3227 = vmatpush1.bf16.xpose.msra.mxu0 %v3189
      %3228 = vmatprep.subr.bf16.mxu0 0
      %3229 = vmatpush1.bf16.xpose.msra.mxu0 %v3190
      %3230 = vmatprep.subr.bf16.mxu0 0
      %3231 = vmatpush1.bf16.xpose.msra.mxu0 %v3191
      %3232 = vmatprep.subr.bf16.mxu0 0
      %3233 = vmatpush1.bf16.xpose.msra.mxu0 %v3192
      %3234 = vmatprep.subr.bf16.mxu0 0
      %3235 = vmatpush1.bf16.xpose.msra.mxu0 %v3193
      %3236 = vmatprep.subr.bf16.mxu0 0
      %3237 = vmatpush1.bf16.xpose.msra.mxu0 %v3194
      %3238 = vmatprep.subr.bf16.mxu0 0
      %3239 = vmatpush1.bf16.xpose.msra.mxu0 %v3195
      %3240 = vmatprep.subr.bf16.mxu0 0
      %3241 = vmatpush1.bf16.xpose.msra.mxu0 %v3196
      %3242 = vmatprep.subr.bf16.mxu0 0
      %3243 = vmatpush1.bf16.xpose.msra.mxu0 %v3197
      %3244 = vmatprep.subr.bf16.mxu0 0
      %3245 = vmatpush1.bf16.xpose.msra.mxu0 %v3198
      %3246 = vmatprep.subr.bf16.mxu0 0
      %3247 = vmatpush1.bf16.xpose.msra.mxu0 %v3199
      %3248 = vmatprep.mubr.bf16.mxu0 0
      %3249 = vmatmul.mubr.bf16.gmra.mrb[0].mxu0 %v3183
      %v3250 = vpop.f32.mrb[0].mxu0
      %v3251 = vadd.f32 0.0, %v3250
      %v3252 = vpop.f32.mrb[0].mxu0
      %v3253 = vadd.f32 0.0, %v3252
      %v3254 = vpop.f32.mrb[0].mxu0
      %v3255 = vpop.f32.mrb[0].mxu0
      %3256 = vdwg.mxu0
      %v3257 = vmul.f32 %v3251, 0.088388346
      %v3258 = vmul.f32 %v3253, 0.088388346
      %v3259 = vsel %vm2974, %v3257, -inf
      %v3260 = vsel %vm2974, %v3258, -inf
      %v3261 = vmax.f32 %v3259, %v3260
      %3262 = vmax.xlane.f32.xlu0 %v3261
      %v3263 = vpop.xlane.xlu0 %3262
      %v3264 = vsub.f32 %v3257, %v3263
      %v3265 = vsub.f32 %v3258, %v3263
      %v3266 = vmul.f32 %v3264, 1.442695
      %v3267 = vpow.pop %v3266
      %v3268 = vmul.f32 %v3265, 1.442695
      %v3269 = vpow.pop %v3268
      %v3270 = vsel %vm2974, %v3267, 0.0
      %v3271 = vsel %vm2974, %v3269, 0.0
      %v3272 = vadd.f32 %v3270, %v3271
      %3273 = vadd.xlane.f32.xlu0 %v3272
      %v3274 = vpop.xlane.xlu0 %3273
      %v3275 = vrcp.pop %v3274
      %v3276 = vmul.f32 %v3267, %v3275
      %v3277 = vmul.f32 %v3269, %v3275
      %v3278 = vpack.c.bf16 %v3276, %v3276
      %v3279 = vpack.c.bf16 %v3277, %v3277
      %3280 = vmatprep.subr.bf16.mxu0 0
      %3281 = vmatpush1.bf16.msra.mxu0 %v3200
      %3282 = vmatprep.subr.bf16.mxu0 0
      %3283 = vmatpush1.bf16.msra.mxu0 %v3201
      %3284 = vmatprep.subr.bf16.mxu0 0
      %3285 = vmatpush1.bf16.msra.mxu0 %v3202
      %3286 = vmatprep.subr.bf16.mxu0 0
      %3287 = vmatpush1.bf16.msra.mxu0 %v3203
      %3288 = vmatprep.subr.bf16.mxu0 0
      %3289 = vmatpush1.bf16.msra.mxu0 %v3204
      %3290 = vmatprep.subr.bf16.mxu0 0
      %3291 = vmatpush1.bf16.msra.mxu0 %v3205
      %3292 = vmatprep.subr.bf16.mxu0 0
      %3293 = vmatpush1.bf16.msra.mxu0 %v3206
      %3294 = vmatprep.subr.bf16.mxu0 0
      %3295 = vmatpush1.bf16.msra.mxu0 %v3207
      %3296 = vmatprep.subr.bf16.mxu0 0
      %3297 = vmatpush1.bf16.msra.mxu0 %v3208
      %3298 = vmatprep.subr.bf16.mxu0 0
      %3299 = vmatpush1.bf16.msra.mxu0 %v3209
      %3300 = vmatprep.subr.bf16.mxu0 0
      %3301 = vmatpush1.bf16.msra.mxu0 %v3210
      %3302 = vmatprep.subr.bf16.mxu0 0
      %3303 = vmatpush1.bf16.msra.mxu0 %v3211
      %3304 = vmatprep.subr.bf16.mxu0 0
      %3305 = vmatpush1.bf16.msra.mxu0 %v3212
      %3306 = vmatprep.subr.bf16.mxu0 0
      %3307 = vmatpush1.bf16.msra.mxu0 %v3213
      %3308 = vmatprep.subr.bf16.mxu0 0
      %3309 = vmatpush1.bf16.msra.mxu0 %v3214
      %3310 = vmatprep.subr.bf16.mxu0 0
      %3311 = vmatpush1.bf16.msra.mxu0 %v3215
      %3312 = vmatprep.mubr.bf16.mxu0 %v3279
      %3313 = vmatmul.mubr.bf16.gmra.mrb[0].mxu0 %v3278
      %v3314 = vpop.f32.mrb[0].mxu0
      %v3315 = vadd.f32 0.0, %v3314
      %v3316 = vpop.f32.mrb[0].mxu0
      %v3317 = vpop.f32.mrb[0].mxu0
      %v3318 = vpop.f32.mrb[0].mxu0
      %3319 = vdwg.mxu0
      %v3320 = vpack.c.bf16 %v3315, %v3315
      %v3337 = vunpack.c.l.b16 %v2881
      %v3338 = vunpack.c.h.b16 %v2881
      %v3339 = vunpack.c.l.b16 %v2882
      %v3340 = vunpack.c.h.b16 %v2882
      %v3341 = vunpack.c.l.b16 %v2883
      %v3342 = vunpack.c.h.b16 %v2883
      %v3343 = vunpack.c.l.b16 %v2884
      %v3344 = vunpack.c.h.b16 %v2884
      %v3345 = vunpack.c.l.b16 %v2885
      %v3346 = vunpack.c.h.b16 %v2885
      %v3347 = vunpack.c.l.b16 %v2886
      %v3348 = vunpack.c.h.b16 %v2886
      %v3349 = vunpack.c.l.b16 %v2887
      %v3350 = vunpack.c.h.b16 %v2887
      %v3351 = vunpack.c.l.b16 %v2888
      %v3352 = vunpack.c.h.b16 %v2888
      %v3353 = vunpack.c.l.b16 %v2889
      %v3354 = vunpack.c.h.b16 %v2889
      %v3355 = vunpack.c.l.b16 %v2890
      %v3356 = vunpack.c.h.b16 %v2890
      %v3357 = vunpack.c.l.b16 %v2891
      %v3358 = vunpack.c.h.b16 %v2891
      %v3359 = vunpack.c.l.b16 %v2892
      %v3360 = vunpack.c.h.b16 %v2892
      %v3361 = vunpack.c.l.b16 %v2893
      %v3362 = vunpack.c.h.b16 %v2893
      %v3363 = vunpack.c.l.b16 %v2894
      %v3364 = vunpack.c.h.b16 %v2894
      %v3365 = vunpack.c.l.b16 %v2895
      %v3366 = vunpack.c.h.b16 %v2895
      %v3367 = vunpack.c.l.b16 %v2896
      %v3368 = vunpack.c.h.b16 %v2896
      %v3369 = vpack.c.b16 %v3339, %v3337
      %v3370 = vpack.c.b16 %v3340, %v3338
      %v3371 = vpack.c.b16 %v3343, %v3341
      %v3372 = vpack.c.b16 %v3344, %v3342
      %v3373 = vpack.c.b16 %v3347, %v3345
      %v3374 = vpack.c.b16 %v3348, %v3346
      %v3375 = vpack.c.b16 %v3351, %v3349
      %v3376 = vpack.c.b16 %v3352, %v3350
      %v3377 = vpack.c.b16 %v3355, %v3353
      %v3378 = vpack.c.b16 %v3356, %v3354
      %v3379 = vpack.c.b16 %v3359, %v3357
      %v3380 = vpack.c.b16 %v3360, %v3358
      %v3381 = vpack.c.b16 %v3363, %v3361
      %v3382 = vpack.c.b16 %v3364, %v3362
      %v3383 = vpack.c.b16 %v3367, %v3365
      %v3384 = vpack.c.b16 %v3368, %v3366
      %3401 = vmatprep.subr.bf16.mxu0 %v3370
      %3402 = vmatpush1.bf16.msra.mxu0 %v3369
      %3403 = vmatprep.subr.bf16.mxu0 %v3372
      %3404 = vmatpush1.bf16.msra.mxu0 %v3371
      %3405 = vmatprep.subr.bf16.mxu0 %v3374
      %3406 = vmatpush1.bf16.msra.mxu0 %v3373
      %3407 = vmatprep.subr.bf16.mxu0 %v3376
      %3408 = vmatpush1.bf16.msra.mxu0 %v3375
      %3409 = vmatprep.subr.bf16.mxu0 %v3378
      %3410 = vmatpush1.bf16.msra.mxu0 %v3377
      %3411 = vmatprep.subr.bf16.mxu0 %v3380
      %3412 = vmatpush1.bf16.msra.mxu0 %v3379
      %3413 = vmatprep.subr.bf16.mxu0 %v3382
      %3414 = vmatpush1.bf16.msra.mxu0 %v3381
      %3415 = vmatprep.subr.bf16.mxu0 %v3384
      %3416 = vmatpush1.bf16.msra.mxu0 %v3383
      %3417 = vmatprep.subr.bf16.mxu0 0
      %3418 = vmatpush1.bf16.msra.mxu0 0
      %3419 = vmatprep.subr.bf16.mxu0 0
      %3420 = vmatpush1.bf16.msra.mxu0 0
      %3421 = vmatprep.subr.bf16.mxu0 0
      %3422 = vmatpush1.bf16.msra.mxu0 0
      %3423 = vmatprep.subr.bf16.mxu0 0
      %3424 = vmatpush1.bf16.msra.mxu0 0
      %3425 = vmatprep.subr.bf16.mxu0 0
      %3426 = vmatpush1.bf16.msra.mxu0 0
      %3427 = vmatprep.subr.bf16.mxu0 0
      %3428 = vmatpush1.bf16.msra.mxu0 0
      %3429 = vmatprep.subr.bf16.mxu0 0
      %3430 = vmatpush1.bf16.msra.mxu0 0
      %3431 = vmatprep.subr.bf16.mxu0 0
      %3432 = vmatpush1.bf16.msra.mxu0 0
      %3433 = vmatprep.mubr.bf16.mxu0 0
      %3434 = vmatmul.mubr.bf16.gmra.mrb[0].mxu0 %v3320
      %v3435 = vpop.f32.mrb[0].mxu0
      %v3436 = vadd.f32 0.0, %v3435
      %v3437 = vpop.f32.mrb[0].mxu0
      %v3438 = vadd.f32 0.0, %v3437
      %v3439 = vpop.f32.mrb[0].mxu0
      %v3440 = vpop.f32.mrb[0].mxu0
      %3441 = vdwg.mxu0
      %v3444 = vcombine.low %v3436, %v3438
      %v3446 = vunpack.c.l.s4 1966171168
      %v3447 = vunpack.c.0.s8 %v3446
      %v3448 = vlaneseq
      %v3449 = vshrl.u32 %v3448, 7
      %v3450 = vsub.s32 %v3447, %v3449
      %v3451 = vrot.slane %v3444, %v3450
      %v3453 = vunpack.c.l.s4 1966171168
      %v3454 = vunpack.c.0.s8 %v3453
      %v3455 = vlaneseq
      %v3456 = vshrl.u32 %v3455, 7
      %v3457 = vsub.s32 %v3454, %v3456
      %v3458 = vrot.slane %v3451, %v3457
      %v3460 = vadd.f32 %v3176, %v3458
      %v3461 = vlaneseq
      %vm3462 = vcmp.ge.s32.totalorder %v3461, 0
      %vm3463 = vcmp.lt.s32.totalorder %v3461, 256
      %vm3464 = vmand %vm3462, %vm3463
      %3465 = vst.msk [vmem:[%s643] sm:$0x3] %vm3464, %v3460
      %p3466 = scmp.lt.s32.totalorder %s27, 2
      %s3467 = scalar_select %p3466, %s27, 2
      %p3468 = scmp.lt.s32.totalorder %s28, 1
      %s3469 = scalar_select %p3468, %s28, 1
      %s3470 = smul.addr %s3469, 2
      %s3471 = smul.addr %s3467, 4
      %s3472 = sadd.s32 %s3470, %s3471
      %s3473 = scalar_lea.vmem %s12, %s3472
      // Predicated region
      $region69: #{_forward_impl.1} parent=67 // pred_check
        %p3474 = pneg %p369
      $region70: #{_forward_impl.1} parent=67 // pred_check_branch
        %3476 = sbr.rel (%p3474) target = $region72
      $region71: #{_forward_impl.1} parent=67 // pred_region
        _
      $region72: #{_forward_impl.1} parent=67 // pred_fallthru
        _
    $region68: #{_forward_impl.1} parent=5 // pred_fallthru
      _
    %p3477 = scmp.le.s32.totalorder 2, %s18
    // Predicated region
    $region73: #{_forward_impl.1} parent=5 // pred_check
      %p3478 = pneg %p3477
    $region74: #{_forward_impl.1} parent=5 // pred_check_branch
      %3480 = sbr.rel (%p3478) target = $region76
    $region75: #{_forward_impl.1} parent=5 // pred_region
      %s3481 = ssub.s32 %s18, 2
      // Predicated region
      $region77: #{_forward_impl.1} parent=75 // pred_check
        %p3482 = pneg %p375
      $region78: #{_forward_impl.1} parent=75 // pred_check_branch
        %3484 = sbr.rel (%p3482) target = $region80
      $region79: #{_forward_impl.1} parent=75 // pred_region
        %p3485 = scmp.lt.s32.totalorder %s29, 2
        %s3486 = scalar_select %p3485, %s29, 2
        %p3487 = scmp.lt.s32.totalorder %s30, 1
        %s3488 = scalar_select %p3487, %s30, 1
        %s3489 = smul.addr %s3488, 2
        %s3490 = smul.addr %s3486, 4
        %s3491 = sadd.s32 %s3489, %s3490
        %s3492 = scalar_lea.vmem %s12, %s3491
      $region80: #{_forward_impl.1} parent=75 // pred_fallthru
        _
    $region76: #{_forward_impl.1} parent=5 // pred_fallthru
      _
  $region6: #{_forward_impl.1} parent=0 // loop_footer
    %s22 = sadd.s32 1, %s18
  $region7: #{_forward_impl.1} parent=0 // loop_footer_branch
    %17 = sbr.rel target = $region3
  $region8: #{_forward_impl.1} parent=0 // loop_exit
    _

</llo_original>
